<compile_context>
chip_gen: v7x
topology: tpu7x:2x2x1
jax: 0.10.0
libtpu: 0.0.40
codegen_flags: <defaults>
</compile_context>

<pallas_src>
import numpy as np
import jax
import jax.numpy as jnp
from jax.experimental import pallas as pl
from jax.experimental.pallas import tpu as pltpu

# ----- small config consistent with the module ----------------------------
B, S = 2, 8
VOCAB = 100
D_BERT = 32            # bert hidden_size
H_LSTM = 16            # lstm hidden_size per direction
G = 4 * H_LSTM         # gate columns per direction
E = 2 * H_LSTM         # bidirectional lstm output == attention embed_dim
NH = 4                 # attention num_heads
HD = E // NH           # head dim
NUM_TAGS = 8
OUT_PAD = 128          # lane-dense padded logits width
LN_EPS = 1e-5
NEG_INF = -1e9


def _mm(a, b):
    """bf16-operand matmul with f32 accumulation (MXU-native)."""
    return jnp.dot(a.astype(jnp.bfloat16), b.astype(jnp.bfloat16),
                   preferred_element_type=jnp.float32)


# ===========================================================================
# Fused kernel: emb gather+LN -> BiLSTM -> LN1 -> MHA (key padding mask) ->
#               residual -> LN2 -> classifier.  One batch element per
#               ("parallel") grid step.
# ===========================================================================
def fused_kernel(ids_ref, kbias_ref, emb_ref, pos_ref,
                 w_lstm_ref, w_attn_ref, vecp_ref, out_ref):
    f32 = jnp.float32
    bf16 = jnp.bfloat16

    def layer_norm(v, g, b):
        mu = jnp.mean(v, axis=-1, keepdims=True)
        var = jnp.mean((v - mu) ** 2, axis=-1, keepdims=True)
        return (v - mu) * jax.lax.rsqrt(var + LN_EPS) * g + b

    vecp = vecp_ref[...]                                    # (16, 128) f32 biases/LN

    # ---------------- BERT stand-in: exact one-hot gather -> +pos -> LN -----
    ids = ids_ref[...]                                      # (S, 1) int32
    iota = jax.lax.broadcasted_iota(jnp.int32, (S, VOCAB), 1)
    onehot = (iota == ids).astype(f32)                      # (S, VOCAB)
    emb = jnp.dot(onehot, emb_ref[...],
                  preferred_element_type=f32,
                  precision=jax.lax.Precision.HIGHEST)      # exact row gather
    x = layer_norm(emb + pos_ref[...],
                   vecp[0:1, 0:D_BERT], vecp[1:2, 0:D_BERT])

    # ---------------- BiLSTM (fwd & bwd interleaved, gate order i,f,o,g) ----
    wih = w_lstm_ref[0:D_BERT, :]                           # (32,128) bf16 [Wih_f|Wih_b]
    whh = w_lstm_ref[D_BERT:D_BERT + H_LSTM, :]             # (16,128) bf16 [Whh_f|Whh_b]
    b_lstm = vecp[9:10, :]                                  # (1,128) f32   [b_f  |b_b ]

    # input contribution to both directions' gates: one (8,32)@(32,128) matmul
    xg = jnp.dot(x.astype(bf16), wih, preferred_element_type=f32) + b_lstm  # (S,128)

    h = jnp.zeros((2, H_LSTM), f32)                         # row0 = fwd, row1 = bwd
    c = jnp.zeros((2, H_LSTM), f32)
    outs_f = [None] * S
    outs_b = [None] * S
    for t in range(S):                                      # S=8, fully inline
        tb = S - 1 - t
        # ONE recurrent matmul for both directions: (2,16)@(16,128)
        hg = jnp.dot(h.astype(bf16), whh, preferred_element_type=f32)
        gates = jnp.concatenate(
            [xg[t:t + 1, 0:G] + hg[0:1, 0:G],               # fwd gates at time t
             xg[tb:tb + 1, G:2 * G] + hg[1:2, G:2 * G]],    # bwd gates at time tb
            axis=0)                                         # (2, G)
        sig = jax.nn.sigmoid(gates[:, 0:3 * H_LSTM])        # i, f, o in one pass
        ig = sig[:, 0:H_LSTM]
        fg = sig[:, H_LSTM:2 * H_LSTM]
        og = sig[:, 2 * H_LSTM:3 * H_LSTM]
        gg = jnp.tanh(gates[:, 3 * H_LSTM:4 * H_LSTM])
        c = fg * c + ig * gg
        h = og * jnp.tanh(c)
        outs_f[t] = h[0:1, :]
        outs_b[tb] = h[1:2, :]
    # vreg-resident (S, E); never touches a VMEM scratch
    lstm_out = jnp.concatenate(
        [jnp.concatenate(outs_f, axis=0), jnp.concatenate(outs_b, axis=0)],
        axis=-1)

    # ---------------- LN1 -> MHA -> residual -> LN2 -> classifier -----------
    ln1 = layer_norm(lstm_out, vecp[2:3, 0:E], vecp[3:4, 0:E])
    ln1_bf = ln1.astype(bf16)                               # hoisted cast

    wa = w_attn_ref[...]                                    # (E, 4E+128) bf16
    wqkv = wa[:, 0:3 * E]
    wo = wa[:, 3 * E:4 * E]
    wc_pad = wa[:, 4 * E:4 * E + OUT_PAD]                   # zero-padded classifier

    qkv = jnp.dot(ln1_bf, wqkv, preferred_element_type=f32) + vecp[6:7, 0:3 * E]
    q_bf = qkv[:, 0:E].astype(bf16)
    k_bf = qkv[:, E:2 * E].astype(bf16)
    v_bf = qkv[:, 2 * E:3 * E].astype(bf16)

    scale = 1.0 / (HD ** 0.5)
    key_bias = kbias_ref[:, 0:NH * S]                       # (1, NH*S), pre-tiled

    # all 4 heads' scores in one (S, NH*S) slab -> single softmax pass
    s = jnp.concatenate(
        [jnp.einsum('qd,kd->qk',
                    q_bf[:, hh * HD:(hh + 1) * HD],
                    k_bf[:, hh * HD:(hh + 1) * HD],
                    preferred_element_type=f32) for hh in range(NH)],
        axis=-1) * scale + key_bias
    m = jnp.max(s, axis=-1, keepdims=True)                  # one max pass
    p = jnp.exp(s - m)                                      # one exp pass
    l = jnp.concatenate(
        [jnp.sum(p[:, hh * S:(hh + 1) * S], axis=-1, keepdims=True)
         for hh in range(NH)], axis=-1)                     # (S, NH)
    inv = pl.reciprocal(l, approx=True)                     # one EUP reciprocal
    oh = jnp.concatenate(
        [jnp.dot((p[:, hh * S:(hh + 1) * S] * inv[:, hh:hh + 1]).astype(bf16),
                 v_bf[:, hh * HD:(hh + 1) * HD],
                 preferred_element_type=f32) for hh in range(NH)],
        axis=-1)                                            # (S, E)
    attn = jnp.dot(oh.astype(bf16), wo, preferred_element_type=f32) + vecp[7:8, 0:E]

    combined = ln1 + attn                                   # residual (post-LN lstm)
    ln2 = layer_norm(combined, vecp[4:5, 0:E], vecp[5:6, 0:E])
    # lane-dense (S, 128) store; cols >= NUM_TAGS are exactly zero (padded W/b)
    out_ref[...] = jnp.dot(ln2.astype(bf16), wc_pad,
                           preferred_element_type=f32) + vecp[8:9, :]


def fused_head(ids3, kbias, packed):
    return pl.pallas_call(
        fused_kernel,
        out_shape=jax.ShapeDtypeStruct((B, S, OUT_PAD), jnp.float32),
        grid=(B,),
        in_specs=[
            pl.BlockSpec((None, S, 1), lambda b: (b, 0, 0)),               # input_ids
            pl.BlockSpec((None, 1, 128), lambda b: (b, 0, 0)),             # key bias
            pl.BlockSpec((VOCAB, D_BERT), lambda b: (0, 0)),               # emb table
            pl.BlockSpec((S, D_BERT), lambda b: (0, 0)),                   # pos emb
            pl.BlockSpec((D_BERT + H_LSTM, 2 * G), lambda b: (0, 0)),      # LSTM W bf16
            pl.BlockSpec((E, 4 * E + OUT_PAD), lambda b: (0, 0)),          # attn W bf16
            pl.BlockSpec((16, 128), lambda b: (0, 0)),                     # biases/LN f32
        ],
        out_specs=pl.BlockSpec((None, S, OUT_PAD), lambda b: (b, 0, 0)),
        compiler_params=pltpu.CompilerParams(
            dimension_semantics=("parallel",)),    # batch shards across TCs on v7x
    )(ids3, kbias, packed['emb'], packed['pos'],
      packed['w_lstm'], packed['w_attn'], packed['vecp'])


# ===========================================================================
# Parameters (deterministic), host-side packing, glue, pure-JAX reference
# ===========================================================================
def init_params(key):
    ks = jax.random.split(key, 24)
    rnd = lambda k, shape, s=0.1: s * jax.random.normal(k, shape, jnp.float32)
    p = {}
    p['emb'] = rnd(ks[0], (VOCAB, D_BERT), 1.0)
    p['pos'] = rnd(ks[1], (S, D_BERT), 0.1)
    p['bert_ln_g'] = jnp.ones((D_BERT,), jnp.float32)
    p['bert_ln_b'] = jnp.zeros((D_BERT,), jnp.float32)
    # LSTM weights stored pre-transposed: (in, 4H) / (H, 4H); bias = b_ih + b_hh
    p['wih_f_t'] = rnd(ks[2], (D_BERT, G))
    p['whh_f_t'] = rnd(ks[3], (H_LSTM, G))
    p['b_f'] = rnd(ks[4], (1, G))
    p['wih_b_t'] = rnd(ks[5], (D_BERT, G))
    p['whh_b_t'] = rnd(ks[6], (H_LSTM, G))
    p['b_b'] = rnd(ks[7], (1, G))
    p['ln1_g'] = 1.0 + rnd(ks[8], (1, E)); p['ln1_b'] = rnd(ks[9], (1, E))
    p['wq_t'] = rnd(ks[10], (E, E)); p['bq'] = rnd(ks[11], (1, E))
    p['wk_t'] = rnd(ks[12], (E, E)); p['bk'] = rnd(ks[13], (1, E))
    p['wv_t'] = rnd(ks[14], (E, E)); p['bv'] = rnd(ks[15], (1, E))
    p['wo_t'] = rnd(ks[16], (E, E)); p['bo'] = rnd(ks[17], (1, E))
    p['ln2_g'] = 1.0 + rnd(ks[18], (1, E)); p['ln2_b'] = rnd(ks[19], (1, E))
    p['wc_t'] = rnd(ks[20], (E, NUM_TAGS)); p['bc'] = rnd(ks[21], (1, NUM_TAGS))
    return p


def _reorder_gates(w):
    """PyTorch LSTM gate order (i,f,g,o) -> kernel order (i,f,o,g) on last dim."""
    return jnp.concatenate([w[..., 0:2 * H_LSTM],
                            w[..., 3 * H_LSTM:4 * H_LSTM],
                            w[..., 2 * H_LSTM:3 * H_LSTM]], axis=-1)


def pack_params(p):
    """Pack the small parameter tensors into a few lane-dense arrays (weights bf16)."""
    w_lstm = jnp.zeros((D_BERT + H_LSTM, 2 * G), jnp.float32)
    w_lstm = w_lstm.at[:D_BERT, 0:G].set(_reorder_gates(p['wih_f_t']))
    w_lstm = w_lstm.at[:D_BERT, G:2 * G].set(_reorder_gates(p['wih_b_t']))
    w_lstm = w_lstm.at[D_BERT:, 0:G].set(_reorder_gates(p['whh_f_t']))
    w_lstm = w_lstm.at[D_BERT:, G:2 * G].set(_reorder_gates(p['whh_b_t']))

    w_attn = jnp.zeros((E, 4 * E + OUT_PAD), jnp.float32)
    w_attn = w_attn.at[:, 0:E].set(p['wq_t'])
    w_attn = w_attn.at[:, E:2 * E].set(p['wk_t'])
    w_attn = w_attn.at[:, 2 * E:3 * E].set(p['wv_t'])
    w_attn = w_attn.at[:, 3 * E:4 * E].set(p['wo_t'])
    w_attn = w_attn.at[:, 4 * E:4 * E + NUM_TAGS].set(p['wc_t'])   # rest stays zero

    vecp = jnp.zeros((16, 128), jnp.float32)
    vecp = vecp.at[0, 0:D_BERT].set(p['bert_ln_g'])
    vecp = vecp.at[1, 0:D_BERT].set(p['bert_ln_b'])
    vecp = vecp.at[2, 0:E].set(p['ln1_g'][0])
    vecp = vecp.at[3, 0:E].set(p['ln1_b'][0])
    vecp = vecp.at[4, 0:E].set(p['ln2_g'][0])
    vecp = vecp.at[5, 0:E].set(p['ln2_b'][0])
    vecp = vecp.at[6, 0:E].set(p['bq'][0])
    vecp = vecp.at[6, E:2 * E].set(p['bk'][0])
    vecp = vecp.at[6, 2 * E:3 * E].set(p['bv'][0])
    vecp = vecp.at[7, 0:E].set(p['bo'][0])
    vecp = vecp.at[8, 0:NUM_TAGS].set(p['bc'][0])
    vecp = vecp.at[9, 0:G].set(_reorder_gates(p['b_f'])[0])
    vecp = vecp.at[9, G:2 * G].set(_reorder_gates(p['b_b'])[0])

    return {'emb': p['emb'], 'pos': p['pos'],
            'w_lstm': w_lstm.astype(jnp.bfloat16),
            'w_attn': w_attn.astype(jnp.bfloat16),
            'vecp': vecp}


def _layer_norm_ref(v, g, b):
    mu = jnp.mean(v, axis=-1, keepdims=True)
    var = jnp.mean((v - mu) ** 2, axis=-1, keepdims=True)
    return (v - mu) * jax.lax.rsqrt(var + LN_EPS) * g + b


def bert_stand_in(input_ids, p):
    # TODO(synk): BertModel.from_pretrained (full pretrained encoder stack) has no
    # in-script equivalent; deterministic stand-in = token+position embedding + LayerNorm.
    emb = p['emb'][input_ids] + p['pos'][None]
    return _layer_norm_ref(emb, p['bert_ln_g'], p['bert_ln_b'])


def punctuation_forward(input_ids, attention_mask, packed):
    ids3 = input_ids.astype(jnp.int32).reshape(B, S, 1)
    # key_padding_mask bias, pre-tiled per head, padded to 128 lanes
    kb = jnp.where(attention_mask > 0, 0.0, NEG_INF).astype(jnp.float32)   # (B, S)
    kb = jnp.tile(kb, (1, NH))                                             # (B, NH*S)
    kb = jnp.pad(kb, ((0, 0), (0, 128 - NH * S))).reshape(B, 1, 128)
    logits_pad = fused_head(ids3, kb, packed)                              # (B,S,128)
    # TODO(synk): labels / CrossEntropyLoss branch not implemented (inference path only).
    return logits_pad[:, :, :NUM_TAGS]


def reference_forward(input_ids, attention_mask, p):
    seq_out = bert_stand_in(input_ids, p)                   # bert_dropout = identity

    def lstm_dir(x, wih_t, whh_t, b, reverse):
        h = jnp.zeros((B, H_LSTM), jnp.float32)
        c = jnp.zeros((B, H_LSTM), jnp.float32)
        outs = [None] * S
        order = range(S - 1, -1, -1) if reverse else range(S)
        for t in order:
            gates = _mm(x[:, t], wih_t) + _mm(h, whh_t) + b
            i = jax.nn.sigmoid(gates[:, 0 * H_LSTM:1 * H_LSTM])
            f = jax.nn.sigmoid(gates[:, 1 * H_LSTM:2 * H_LSTM])
            g = jnp.tanh(gates[:, 2 * H_LSTM:3 * H_LSTM])
            o = jax.nn.sigmoid(gates[:, 3 * H_LSTM:4 * H_LSTM])
            c = f * c + i * g
            h = o * jnp.tanh(c)
            outs[t] = h
        return jnp.stack(outs, axis=1)

    hf = lstm_dir(seq_out, p['wih_f_t'], p['whh_f_t'], p['b_f'], False)
    hb = lstm_dir(seq_out, p['wih_b_t'], p['whh_b_t'], p['b_b'], True)
    lstm_out = jnp.concatenate([hf, hb], axis=-1)

    ln1 = _layer_norm_ref(lstm_out, p['ln1_g'], p['ln1_b'])
    q = _mm(ln1, p['wq_t']) + p['bq']
    k = _mm(ln1, p['wk_t']) + p['bk']
    v = _mm(ln1, p['wv_t']) + p['bv']
    qh = q.reshape(B, S, NH, HD).transpose(0, 2, 1, 3)
    kh = k.reshape(B, S, NH, HD).transpose(0, 2, 1, 3)
    vh = v.reshape(B, S, NH, HD).transpose(0, 2, 1, 3)
    scale = 1.0 / (HD ** 0.5)
    key_bias = jnp.where(attention_mask.astype(jnp.float32) > 0.5, 0.0, NEG_INF)
    s = jnp.einsum('bhqd,bhkd->bhqk', qh.astype(jnp.bfloat16), kh.astype(jnp.bfloat16),
                   preferred_element_type=jnp.float32) * scale
    s = s + key_bias[:, None, None, :]
    pmat = jax.nn.softmax(s, axis=-1)
    oh = jnp.einsum('bhqk,bhkd->bhqd', pmat.astype(jnp.bfloat16), vh.astype(jnp.bfloat16),
                    preferred_element_type=jnp.float32)
    attn = _mm(oh.transpose(0, 2, 1, 3).reshape(B, S, E), p['wo_t']) + p['bo']
    combined = ln1 + attn
    ln2 = _layer_norm_ref(combined, p['ln2_g'], p['ln2_b'])
    return _mm(ln2, p['wc_t']) + p['bc']


if __name__ == "__main__":
    key = jax.random.PRNGKey(0)
    kp, kid = jax.random.split(key)
    params = init_params(kp)
    packed = pack_params(params)

    input_ids = jax.random.randint(kid, (B, S), 0, VOCAB)
    attention_mask = jnp.ones((B, S), jnp.int32).at[1, 6:].set(0)   # batch 1 has padding

    forward = jax.jit(punctuation_forward)          # one dispatch for the whole forward
    logits = jax.block_until_ready(forward(input_ids, attention_mask, packed))
    assert logits.shape == (B, S, NUM_TAGS)

    ref = jax.block_until_ready(
        jax.jit(reference_forward)(input_ids, attention_mask, params))
    np.testing.assert_allclose(np.asarray(logits), np.asarray(ref),
                               atol=1e-2, rtol=1e-2)
    print("KERNEL_OK")
</pallas_src>

<mosaic_0001>
module attributes {stable_mosaic.version = 11 : i64} {
  func.func @fused_kernel(%arg0: i32, %arg1: memref<1x8x1xi32, #tpu.memory_space<vmem>>, %arg2: memref<1x1x128xf32, #tpu.memory_space<vmem>>, %arg3: memref<100x32xf32, #tpu.memory_space<vmem>>, %arg4: memref<8x32xf32, #tpu.memory_space<vmem>>, %arg5: memref<48x128xbf16, #tpu.memory_space<vmem>>, %arg6: memref<32x256xbf16, #tpu.memory_space<vmem>>, %arg7: memref<16x128xf32, #tpu.memory_space<vmem>>, %arg8: memref<1x8x128xf32, #tpu.memory_space<vmem>>) attributes {dimension_semantics = [#tpu.dimension_semantics<parallel>], iteration_bounds = array<i64: 2>, scalar_prefetch = 0 : i64, scratch_operands = 0 : i64, tpu.core_type = #tpu.core_type<tc>, window_params = [{transform_indices = @transform_0, window_bounds = array<i64: 1, 8, 1>}, {transform_indices = @transform_1, window_bounds = array<i64: 1, 1, 128>}, {pipeline_mode = #tpu.pipeline_mode<synchronous>, transform_indices = @transform_2, window_bounds = array<i64: 100, 32>}, {pipeline_mode = #tpu.pipeline_mode<synchronous>, transform_indices = @transform_3, window_bounds = array<i64: 8, 32>}, {pipeline_mode = #tpu.pipeline_mode<synchronous>, transform_indices = @transform_4, window_bounds = array<i64: 48, 128>}, {pipeline_mode = #tpu.pipeline_mode<synchronous>, transform_indices = @transform_5, window_bounds = array<i64: 32, 256>}, {pipeline_mode = #tpu.pipeline_mode<synchronous>, transform_indices = @transform_6, window_bounds = array<i64: 16, 128>}, {transform_indices = @transform_7, window_bounds = array<i64: 1, 8, 128>}]} {
    %c0 = arith.constant 0 : index
    %c0_0 = arith.constant 0 : index
    %0 = vector.load %arg7[%c0, %c0_0] : memref<16x128xf32, #tpu.memory_space<vmem>>, vector<16x128xf32>
    %c0_1 = arith.constant 0 : index
    %c0_2 = arith.constant 0 : index
    %c0_3 = arith.constant 0 : index
    %1 = vector.load %arg1[%c0_1, %c0_2, %c0_3] : memref<1x8x1xi32, #tpu.memory_space<vmem>>, vector<1x8x1xi32>
    %2 = vector.shape_cast %1 : vector<1x8x1xi32> to vector<8x1xi32>
    %3 = tpu.iota {dimensions = array<i32: 1>} : vector<8x100xi32>
    %4 = vector.broadcast %2 : vector<8x1xi32> to vector<8x100xi32>
    %5 = arith.cmpi eq, %3, %4 : vector<8x100xi32>
    %6 = arith.extui %5 : vector<8x100xi1> to vector<8x100xi32>
    %7 = arith.sitofp %6 : vector<8x100xi32> to vector<8x100xf32>
    %c0_4 = arith.constant 0 : index
    %c0_5 = arith.constant 0 : index
    %8 = vector.load %arg3[%c0_4, %c0_5] : memref<100x32xf32, #tpu.memory_space<vmem>>, vector<100x32xf32>
    %cst = arith.constant dense<0.000000e+00> : vector<8x32xf32>
    %9 = tpu.matmul %7, %8, %cst {dimension_numbers = #tpu.dot_dimension_numbers<[1], [0], [0], [1], [0, 0, 1, 1], [], []>, precision = #tpu.contract_precision<fp32>} : vector<8x100xf32>, vector<100x32xf32>, vector<8x32xf32> -> vector<8x32xf32>
    %c0_6 = arith.constant 0 : index
    %c0_7 = arith.constant 0 : index
    %10 = vector.load %arg4[%c0_6, %c0_7] : memref<8x32xf32, #tpu.memory_space<vmem>>, vector<8x32xf32>
    %11 = arith.addf %9, %10 : vector<8x32xf32>
    %12 = vector.extract_strided_slice %0 {offsets = [0, 0], sizes = [1, 32], strides = [1, 1]} : vector<16x128xf32> to vector<1x32xf32>
    %13 = vector.extract_strided_slice %0 {offsets = [1, 0], sizes = [1, 32], strides = [1, 1]} : vector<16x128xf32> to vector<1x32xf32>
    %cst_8 = arith.constant dense<0.000000e+00> : vector<8xf32>
    %14 = vector.multi_reduction <add>, %11, %cst_8 [1] : vector<8x32xf32> to vector<8xf32>
    %15 = vector.shape_cast %14 : vector<8xf32> to vector<8x1xf32>
    %cst_9 = arith.constant 3.200000e+01 : f32
    %16 = vector.broadcast %cst_9 : f32 to vector<8x1xf32>
    %17 = arith.divf %15, %16 : vector<8x1xf32>
    %18 = vector.broadcast %17 : vector<8x1xf32> to vector<8x32xf32>
    %19 = arith.subf %11, %18 : vector<8x32xf32>
    %20 = arith.mulf %19, %19 : vector<8x32xf32>
    %cst_10 = arith.constant dense<0.000000e+00> : vector<8xf32>
    %21 = vector.multi_reduction <add>, %20, %cst_10 [1] : vector<8x32xf32> to vector<8xf32>
    %22 = vector.shape_cast %21 : vector<8xf32> to vector<8x1xf32>
    %cst_11 = arith.constant 3.200000e+01 : f32
    %23 = vector.broadcast %cst_11 : f32 to vector<8x1xf32>
    %24 = arith.divf %22, %23 : vector<8x1xf32>
    %25 = vector.broadcast %17 : vector<8x1xf32> to vector<8x32xf32>
    %26 = arith.subf %11, %25 : vector<8x32xf32>
    %cst_12 = arith.constant 9.99999974E-6 : f32
    %27 = vector.broadcast %cst_12 : f32 to vector<8x1xf32>
    %28 = arith.addf %24, %27 : vector<8x1xf32>
    %29 = math.rsqrt %28 : vector<8x1xf32>
    %30 = vector.broadcast %29 : vector<8x1xf32> to vector<8x32xf32>
    %31 = arith.mulf %26, %30 : vector<8x32xf32>
    %32 = vector.broadcast %12 : vector<1x32xf32> to vector<8x32xf32>
    %33 = arith.mulf %31, %32 : vector<8x32xf32>
    %34 = vector.broadcast %13 : vector<1x32xf32> to vector<8x32xf32>
    %35 = arith.addf %33, %34 : vector<8x32xf32>
    %c0_13 = arith.constant 0 : index
    %c0_14 = arith.constant 0 : index
    %36 = vector.load %arg5[%c0_13, %c0_14] : memref<48x128xbf16, #tpu.memory_space<vmem>>, vector<32x128xbf16>
    %c32 = arith.constant 32 : index
    %c0_15 = arith.constant 0 : index
    %37 = vector.load %arg5[%c32, %c0_15] : memref<48x128xbf16, #tpu.memory_space<vmem>>, vector<16x128xbf16>
    %38 = vector.extract_strided_slice %0 {offsets = [9, 0], sizes = [1, 128], strides = [1, 1]} : vector<16x128xf32> to vector<1x128xf32>
    %39 = arith.truncf %35 : vector<8x32xf32> to vector<8x32xbf16>
    %cst_16 = arith.constant dense<0.000000e+00> : vector<8x128xf32>
    %40 = tpu.matmul %39, %36, %cst_16 {dimension_numbers = #tpu.dot_dimension_numbers<[1], [0], [0], [1], [0, 0, 1, 1], [], []>} : vector<8x32xbf16>, vector<32x128xbf16>, vector<8x128xf32> -> vector<8x128xf32>
    %41 = vector.broadcast %38 : vector<1x128xf32> to vector<8x128xf32>
    %42 = arith.addf %40, %41 : vector<8x128xf32>
    %cst_17 = arith.constant 0.000000e+00 : f32
    %43 = vector.broadcast %cst_17 : f32 to vector<2x16xf32>
    %cst_18 = arith.constant 0.000000e+00 : f32
    %44 = vector.broadcast %cst_18 : f32 to vector<2x16xf32>
    %45 = arith.truncf %43 : vector<2x16xf32> to vector<2x16xbf16>
    %cst_19 = arith.constant dense<0.000000e+00> : vector<2x128xf32>
    %46 = tpu.matmul %45, %37, %cst_19 {dimension_numbers = #tpu.dot_dimension_numbers<[1], [0], [0], [1], [0, 0, 1, 1], [], []>} : vector<2x16xbf16>, vector<16x128xbf16>, vector<2x128xf32> -> vector<2x128xf32>
    %47 = vector.extract_strided_slice %42 {offsets = [0, 0], sizes = [1, 64], strides = [1, 1]} : vector<8x128xf32> to vector<1x64xf32>
    %48 = vector.extract_strided_slice %46 {offsets = [0, 0], sizes = [1, 64], strides = [1, 1]} : vector<2x128xf32> to vector<1x64xf32>
    %49 = arith.addf %47, %48 : vector<1x64xf32>
    %50 = vector.extract_strided_slice %42 {offsets = [7, 64], sizes = [1, 64], strides = [1, 1]} : vector<8x128xf32> to vector<1x64xf32>
    %51 = vector.extract_strided_slice %46 {offsets = [1, 64], sizes = [1, 64], strides = [1, 1]} : vector<2x128xf32> to vector<1x64xf32>
    %52 = arith.addf %50, %51 : vector<1x64xf32>
    %53 = tpu.concatenate %49, %52 in 0 : vector<1x64xf32>, vector<1x64xf32> -> vector<2x64xf32>
    %54 = vector.extract_strided_slice %53 {offsets = [0, 0], sizes = [2, 48], strides = [1, 1]} : vector<2x64xf32> to vector<2x48xf32>
    %55 = arith.negf %54 : vector<2x48xf32>
    %56 = math.exp %55 : vector<2x48xf32>
    %cst_20 = arith.constant 1.000000e+00 : f32
    %57 = vector.broadcast %cst_20 : f32 to vector<2x48xf32>
    %58 = arith.addf %57, %56 : vector<2x48xf32>
    %59 = arith.divf %57, %58 : vector<2x48xf32>
    %60 = vector.extract_strided_slice %59 {offsets = [0, 0], sizes = [2, 16], strides = [1, 1]} : vector<2x48xf32> to vector<2x16xf32>
    %61 = vector.extract_strided_slice %59 {offsets = [0, 16], sizes = [2, 16], strides = [1, 1]} : vector<2x48xf32> to vector<2x16xf32>
    %62 = vector.extract_strided_slice %59 {offsets = [0, 32], sizes = [2, 16], strides = [1, 1]} : vector<2x48xf32> to vector<2x16xf32>
    %63 = vector.extract_strided_slice %53 {offsets = [0, 48], sizes = [2, 16], strides = [1, 1]} : vector<2x64xf32> to vector<2x16xf32>
    %64 = math.tanh %63 : vector<2x16xf32>
    %65 = arith.mulf %61, %44 : vector<2x16xf32>
    %66 = arith.mulf %60, %64 : vector<2x16xf32>
    %67 = arith.addf %65, %66 : vector<2x16xf32>
    %68 = math.tanh %67 : vector<2x16xf32>
    %69 = arith.mulf %62, %68 : vector<2x16xf32>
    %70 = vector.extract_strided_slice %69 {offsets = [0, 0], sizes = [1, 16], strides = [1, 1]} : vector<2x16xf32> to vector<1x16xf32>
    %71 = vector.extract_strided_slice %69 {offsets = [1, 0], sizes = [1, 16], strides = [1, 1]} : vector<2x16xf32> to vector<1x16xf32>
    %72 = arith.truncf %69 : vector<2x16xf32> to vector<2x16xbf16>
    %cst_21 = arith.constant dense<0.000000e+00> : vector<2x128xf32>
    %73 = tpu.matmul %72, %37, %cst_21 {dimension_numbers = #tpu.dot_dimension_numbers<[1], [0], [0], [1], [0, 0, 1, 1], [], []>} : vector<2x16xbf16>, vector<16x128xbf16>, vector<2x128xf32> -> vector<2x128xf32>
    %74 = vector.extract_strided_slice %42 {offsets = [1, 0], sizes = [1, 64], strides = [1, 1]} : vector<8x128xf32> to vector<1x64xf32>
    %75 = vector.extract_strided_slice %73 {offsets = [0, 0], sizes = [1, 64], strides = [1, 1]} : vector<2x128xf32> to vector<1x64xf32>
    %76 = arith.addf %74, %75 : vector<1x64xf32>
    %77 = vector.extract_strided_slice %42 {offsets = [6, 64], sizes = [1, 64], strides = [1, 1]} : vector<8x128xf32> to vector<1x64xf32>
    %78 = vector.extract_strided_slice %73 {offsets = [1, 64], sizes = [1, 64], strides = [1, 1]} : vector<2x128xf32> to vector<1x64xf32>
    %79 = arith.addf %77, %78 : vector<1x64xf32>
    %80 = tpu.concatenate %76, %79 in 0 : vector<1x64xf32>, vector<1x64xf32> -> vector<2x64xf32>
    %81 = vector.extract_strided_slice %80 {offsets = [0, 0], sizes = [2, 48], strides = [1, 1]} : vector<2x64xf32> to vector<2x48xf32>
    %82 = arith.negf %81 : vector<2x48xf32>
    %83 = math.exp %82 : vector<2x48xf32>
    %cst_22 = arith.constant 1.000000e+00 : f32
    %84 = vector.broadcast %cst_22 : f32 to vector<2x48xf32>
    %85 = arith.addf %84, %83 : vector<2x48xf32>
    %86 = arith.divf %84, %85 : vector<2x48xf32>
    %87 = vector.extract_strided_slice %86 {offsets = [0, 0], sizes = [2, 16], strides = [1, 1]} : vector<2x48xf32> to vector<2x16xf32>
    %88 = vector.extract_strided_slice %86 {offsets = [0, 16], sizes = [2, 16], strides = [1, 1]} : vector<2x48xf32> to vector<2x16xf32>
    %89 = vector.extract_strided_slice %86 {offsets = [0, 32], sizes = [2, 16], strides = [1, 1]} : vector<2x48xf32> to vector<2x16xf32>
    %90 = vector.extract_strided_slice %80 {offsets = [0, 48], sizes = [2, 16], strides = [1, 1]} : vector<2x64xf32> to vector<2x16xf32>
    %91 = math.tanh %90 : vector<2x16xf32>
    %92 = arith.mulf %88, %67 : vector<2x16xf32>
    %93 = arith.mulf %87, %91 : vector<2x16xf32>
    %94 = arith.addf %92, %93 : vector<2x16xf32>
    %95 = math.tanh %94 : vector<2x16xf32>
    %96 = arith.mulf %89, %95 : vector<2x16xf32>
    %97 = vector.extract_strided_slice %96 {offsets = [0, 0], sizes = [1, 16], strides = [1, 1]} : vector<2x16xf32> to vector<1x16xf32>
    %98 = vector.extract_strided_slice %96 {offsets = [1, 0], sizes = [1, 16], strides = [1, 1]} : vector<2x16xf32> to vector<1x16xf32>
    %99 = arith.truncf %96 : vector<2x16xf32> to vector<2x16xbf16>
    %cst_23 = arith.constant dense<0.000000e+00> : vector<2x128xf32>
    %100 = tpu.matmul %99, %37, %cst_23 {dimension_numbers = #tpu.dot_dimension_numbers<[1], [0], [0], [1], [0, 0, 1, 1], [], []>} : vector<2x16xbf16>, vector<16x128xbf16>, vector<2x128xf32> -> vector<2x128xf32>
    %101 = vector.extract_strided_slice %42 {offsets = [2, 0], sizes = [1, 64], strides = [1, 1]} : vector<8x128xf32> to vector<1x64xf32>
    %102 = vector.extract_strided_slice %100 {offsets = [0, 0], sizes = [1, 64], strides = [1, 1]} : vector<2x128xf32> to vector<1x64xf32>
    %103 = arith.addf %101, %102 : vector<1x64xf32>
    %104 = vector.extract_strided_slice %42 {offsets = [5, 64], sizes = [1, 64], strides = [1, 1]} : vector<8x128xf32> to vector<1x64xf32>
    %105 = vector.extract_strided_slice %100 {offsets = [1, 64], sizes = [1, 64], strides = [1, 1]} : vector<2x128xf32> to vector<1x64xf32>
    %106 = arith.addf %104, %105 : vector<1x64xf32>
    %107 = tpu.concatenate %103, %106 in 0 : vector<1x64xf32>, vector<1x64xf32> -> vector<2x64xf32>
    %108 = vector.extract_strided_slice %107 {offsets = [0, 0], sizes = [2, 48], strides = [1, 1]} : vector<2x64xf32> to vector<2x48xf32>
    %109 = arith.negf %108 : vector<2x48xf32>
    %110 = math.exp %109 : vector<2x48xf32>
    %cst_24 = arith.constant 1.000000e+00 : f32
    %111 = vector.broadcast %cst_24 : f32 to vector<2x48xf32>
    %112 = arith.addf %111, %110 : vector<2x48xf32>
    %113 = arith.divf %111, %112 : vector<2x48xf32>
    %114 = vector.extract_strided_slice %113 {offsets = [0, 0], sizes = [2, 16], strides = [1, 1]} : vector<2x48xf32> to vector<2x16xf32>
    %115 = vector.extract_strided_slice %113 {offsets = [0, 16], sizes = [2, 16], strides = [1, 1]} : vector<2x48xf32> to vector<2x16xf32>
    %116 = vector.extract_strided_slice %113 {offsets = [0, 32], sizes = [2, 16], strides = [1, 1]} : vector<2x48xf32> to vector<2x16xf32>
    %117 = vector.extract_strided_slice %107 {offsets = [0, 48], sizes = [2, 16], strides = [1, 1]} : vector<2x64xf32> to vector<2x16xf32>
    %118 = math.tanh %117 : vector<2x16xf32>
    %119 = arith.mulf %115, %94 : vector<2x16xf32>
    %120 = arith.mulf %114, %118 : vector<2x16xf32>
    %121 = arith.addf %119, %120 : vector<2x16xf32>
    %122 = math.tanh %121 : vector<2x16xf32>
    %123 = arith.mulf %116, %122 : vector<2x16xf32>
    %124 = vector.extract_strided_slice %123 {offsets = [0, 0], sizes = [1, 16], strides = [1, 1]} : vector<2x16xf32> to vector<1x16xf32>
    %125 = vector.extract_strided_slice %123 {offsets = [1, 0], sizes = [1, 16], strides = [1, 1]} : vector<2x16xf32> to vector<1x16xf32>
    %126 = arith.truncf %123 : vector<2x16xf32> to vector<2x16xbf16>
    %cst_25 = arith.constant dense<0.000000e+00> : vector<2x128xf32>
    %127 = tpu.matmul %126, %37, %cst_25 {dimension_numbers = #tpu.dot_dimension_numbers<[1], [0], [0], [1], [0, 0, 1, 1], [], []>} : vector<2x16xbf16>, vector<16x128xbf16>, vector<2x128xf32> -> vector<2x128xf32>
    %128 = vector.extract_strided_slice %42 {offsets = [3, 0], sizes = [1, 64], strides = [1, 1]} : vector<8x128xf32> to vector<1x64xf32>
    %129 = vector.extract_strided_slice %127 {offsets = [0, 0], sizes = [1, 64], strides = [1, 1]} : vector<2x128xf32> to vector<1x64xf32>
    %130 = arith.addf %128, %129 : vector<1x64xf32>
    %131 = vector.extract_strided_slice %42 {offsets = [4, 64], sizes = [1, 64], strides = [1, 1]} : vector<8x128xf32> to vector<1x64xf32>
    %132 = vector.extract_strided_slice %127 {offsets = [1, 64], sizes = [1, 64], strides = [1, 1]} : vector<2x128xf32> to vector<1x64xf32>
    %133 = arith.addf %131, %132 : vector<1x64xf32>
    %134 = tpu.concatenate %130, %133 in 0 : vector<1x64xf32>, vector<1x64xf32> -> vector<2x64xf32>
    %135 = vector.extract_strided_slice %134 {offsets = [0, 0], sizes = [2, 48], strides = [1, 1]} : vector<2x64xf32> to vector<2x48xf32>
    %136 = arith.negf %135 : vector<2x48xf32>
    %137 = math.exp %136 : vector<2x48xf32>
    %cst_26 = arith.constant 1.000000e+00 : f32
    %138 = vector.broadcast %cst_26 : f32 to vector<2x48xf32>
    %139 = arith.addf %138, %137 : vector<2x48xf32>
    %140 = arith.divf %138, %139 : vector<2x48xf32>
    %141 = vector.extract_strided_slice %140 {offsets = [0, 0], sizes = [2, 16], strides = [1, 1]} : vector<2x48xf32> to vector<2x16xf32>
    %142 = vector.extract_strided_slice %140 {offsets = [0, 16], sizes = [2, 16], strides = [1, 1]} : vector<2x48xf32> to vector<2x16xf32>
    %143 = vector.extract_strided_slice %140 {offsets = [0, 32], sizes = [2, 16], strides = [1, 1]} : vector<2x48xf32> to vector<2x16xf32>
    %144 = vector.extract_strided_slice %134 {offsets = [0, 48], sizes = [2, 16], strides = [1, 1]} : vector<2x64xf32> to vector<2x16xf32>
    %145 = math.tanh %144 : vector<2x16xf32>
    %146 = arith.mulf %142, %121 : vector<2x16xf32>
    %147 = arith.mulf %141, %145 : vector<2x16xf32>
    %148 = arith.addf %146, %147 : vector<2x16xf32>
    %149 = math.tanh %148 : vector<2x16xf32>
    %150 = arith.mulf %143, %149 : vector<2x16xf32>
    %151 = vector.extract_strided_slice %150 {offsets = [0, 0], sizes = [1, 16], strides = [1, 1]} : vector<2x16xf32> to vector<1x16xf32>
    %152 = vector.extract_strided_slice %150 {offsets = [1, 0], sizes = [1, 16], strides = [1, 1]} : vector<2x16xf32> to vector<1x16xf32>
    %153 = arith.truncf %150 : vector<2x16xf32> to vector<2x16xbf16>
    %cst_27 = arith.constant dense<0.000000e+00> : vector<2x128xf32>
    %154 = tpu.matmul %153, %37, %cst_27 {dimension_numbers = #tpu.dot_dimension_numbers<[1], [0], [0], [1], [0, 0, 1, 1], [], []>} : vector<2x16xbf16>, vector<16x128xbf16>, vector<2x128xf32> -> vector<2x128xf32>
    %155 = vector.extract_strided_slice %42 {offsets = [4, 0], sizes = [1, 64], strides = [1, 1]} : vector<8x128xf32> to vector<1x64xf32>
    %156 = vector.extract_strided_slice %154 {offsets = [0, 0], sizes = [1, 64], strides = [1, 1]} : vector<2x128xf32> to vector<1x64xf32>
    %157 = arith.addf %155, %156 : vector<1x64xf32>
    %158 = vector.extract_strided_slice %42 {offsets = [3, 64], sizes = [1, 64], strides = [1, 1]} : vector<8x128xf32> to vector<1x64xf32>
    %159 = vector.extract_strided_slice %154 {offsets = [1, 64], sizes = [1, 64], strides = [1, 1]} : vector<2x128xf32> to vector<1x64xf32>
    %160 = arith.addf %158, %159 : vector<1x64xf32>
    %161 = tpu.concatenate %157, %160 in 0 : vector<1x64xf32>, vector<1x64xf32> -> vector<2x64xf32>
    %162 = vector.extract_strided_slice %161 {offsets = [0, 0], sizes = [2, 48], strides = [1, 1]} : vector<2x64xf32> to vector<2x48xf32>
    %163 = arith.negf %162 : vector<2x48xf32>
    %164 = math.exp %163 : vector<2x48xf32>
    %cst_28 = arith.constant 1.000000e+00 : f32
    %165 = vector.broadcast %cst_28 : f32 to vector<2x48xf32>
    %166 = arith.addf %165, %164 : vector<2x48xf32>
    %167 = arith.divf %165, %166 : vector<2x48xf32>
    %168 = vector.extract_strided_slice %167 {offsets = [0, 0], sizes = [2, 16], strides = [1, 1]} : vector<2x48xf32> to vector<2x16xf32>
    %169 = vector.extract_strided_slice %167 {offsets = [0, 16], sizes = [2, 16], strides = [1, 1]} : vector<2x48xf32> to vector<2x16xf32>
    %170 = vector.extract_strided_slice %167 {offsets = [0, 32], sizes = [2, 16], strides = [1, 1]} : vector<2x48xf32> to vector<2x16xf32>
    %171 = vector.extract_strided_slice %161 {offsets = [0, 48], sizes = [2, 16], strides = [1, 1]} : vector<2x64xf32> to vector<2x16xf32>
    %172 = math.tanh %171 : vector<2x16xf32>
    %173 = arith.mulf %169, %148 : vector<2x16xf32>
    %174 = arith.mulf %168, %172 : vector<2x16xf32>
    %175 = arith.addf %173, %174 : vector<2x16xf32>
    %176 = math.tanh %175 : vector<2x16xf32>
    %177 = arith.mulf %170, %176 : vector<2x16xf32>
    %178 = vector.extract_strided_slice %177 {offsets = [0, 0], sizes = [1, 16], strides = [1, 1]} : vector<2x16xf32> to vector<1x16xf32>
    %179 = vector.extract_strided_slice %177 {offsets = [1, 0], sizes = [1, 16], strides = [1, 1]} : vector<2x16xf32> to vector<1x16xf32>
    %180 = arith.truncf %177 : vector<2x16xf32> to vector<2x16xbf16>
    %cst_29 = arith.constant dense<0.000000e+00> : vector<2x128xf32>
    %181 = tpu.matmul %180, %37, %cst_29 {dimension_numbers = #tpu.dot_dimension_numbers<[1], [0], [0], [1], [0, 0, 1, 1], [], []>} : vector<2x16xbf16>, vector<16x128xbf16>, vector<2x128xf32> -> vector<2x128xf32>
    %182 = vector.extract_strided_slice %42 {offsets = [5, 0], sizes = [1, 64], strides = [1, 1]} : vector<8x128xf32> to vector<1x64xf32>
    %183 = vector.extract_strided_slice %181 {offsets = [0, 0], sizes = [1, 64], strides = [1, 1]} : vector<2x128xf32> to vector<1x64xf32>
    %184 = arith.addf %182, %183 : vector<1x64xf32>
    %185 = vector.extract_strided_slice %42 {offsets = [2, 64], sizes = [1, 64], strides = [1, 1]} : vector<8x128xf32> to vector<1x64xf32>
    %186 = vector.extract_strided_slice %181 {offsets = [1, 64], sizes = [1, 64], strides = [1, 1]} : vector<2x128xf32> to vector<1x64xf32>
    %187 = arith.addf %185, %186 : vector<1x64xf32>
    %188 = tpu.concatenate %184, %187 in 0 : vector<1x64xf32>, vector<1x64xf32> -> vector<2x64xf32>
    %189 = vector.extract_strided_slice %188 {offsets = [0, 0], sizes = [2, 48], strides = [1, 1]} : vector<2x64xf32> to vector<2x48xf32>
    %190 = arith.negf %189 : vector<2x48xf32>
    %191 = math.exp %190 : vector<2x48xf32>
    %cst_30 = arith.constant 1.000000e+00 : f32
    %192 = vector.broadcast %cst_30 : f32 to vector<2x48xf32>
    %193 = arith.addf %192, %191 : vector<2x48xf32>
    %194 = arith.divf %192, %193 : vector<2x48xf32>
    %195 = vector.extract_strided_slice %194 {offsets = [0, 0], sizes = [2, 16], strides = [1, 1]} : vector<2x48xf32> to vector<2x16xf32>
    %196 = vector.extract_strided_slice %194 {offsets = [0, 16], sizes = [2, 16], strides = [1, 1]} : vector<2x48xf32> to vector<2x16xf32>
    %197 = vector.extract_strided_slice %194 {offsets = [0, 32], sizes = [2, 16], strides = [1, 1]} : vector<2x48xf32> to vector<2x16xf32>
    %198 = vector.extract_strided_slice %188 {offsets = [0, 48], sizes = [2, 16], strides = [1, 1]} : vector<2x64xf32> to vector<2x16xf32>
    %199 = math.tanh %198 : vector<2x16xf32>
    %200 = arith.mulf %196, %175 : vector<2x16xf32>
    %201 = arith.mulf %195, %199 : vector<2x16xf32>
    %202 = arith.addf %200, %201 : vector<2x16xf32>
    %203 = math.tanh %202 : vector<2x16xf32>
    %204 = arith.mulf %197, %203 : vector<2x16xf32>
    %205 = vector.extract_strided_slice %204 {offsets = [0, 0], sizes = [1, 16], strides = [1, 1]} : vector<2x16xf32> to vector<1x16xf32>
    %206 = vector.extract_strided_slice %204 {offsets = [1, 0], sizes = [1, 16], strides = [1, 1]} : vector<2x16xf32> to vector<1x16xf32>
    %207 = arith.truncf %204 : vector<2x16xf32> to vector<2x16xbf16>
    %cst_31 = arith.constant dense<0.000000e+00> : vector<2x128xf32>
    %208 = tpu.matmul %207, %37, %cst_31 {dimension_numbers = #tpu.dot_dimension_numbers<[1], [0], [0], [1], [0, 0, 1, 1], [], []>} : vector<2x16xbf16>, vector<16x128xbf16>, vector<2x128xf32> -> vector<2x128xf32>
    %209 = vector.extract_strided_slice %42 {offsets = [6, 0], sizes = [1, 64], strides = [1, 1]} : vector<8x128xf32> to vector<1x64xf32>
    %210 = vector.extract_strided_slice %208 {offsets = [0, 0], sizes = [1, 64], strides = [1, 1]} : vector<2x128xf32> to vector<1x64xf32>
    %211 = arith.addf %209, %210 : vector<1x64xf32>
    %212 = vector.extract_strided_slice %42 {offsets = [1, 64], sizes = [1, 64], strides = [1, 1]} : vector<8x128xf32> to vector<1x64xf32>
    %213 = vector.extract_strided_slice %208 {offsets = [1, 64], sizes = [1, 64], strides = [1, 1]} : vector<2x128xf32> to vector<1x64xf32>
    %214 = arith.addf %212, %213 : vector<1x64xf32>
    %215 = tpu.concatenate %211, %214 in 0 : vector<1x64xf32>, vector<1x64xf32> -> vector<2x64xf32>
    %216 = vector.extract_strided_slice %215 {offsets = [0, 0], sizes = [2, 48], strides = [1, 1]} : vector<2x64xf32> to vector<2x48xf32>
    %217 = arith.negf %216 : vector<2x48xf32>
    %218 = math.exp %217 : vector<2x48xf32>
    %cst_32 = arith.constant 1.000000e+00 : f32
    %219 = vector.broadcast %cst_32 : f32 to vector<2x48xf32>
    %220 = arith.addf %219, %218 : vector<2x48xf32>
    %221 = arith.divf %219, %220 : vector<2x48xf32>
    %222 = vector.extract_strided_slice %221 {offsets = [0, 0], sizes = [2, 16], strides = [1, 1]} : vector<2x48xf32> to vector<2x16xf32>
    %223 = vector.extract_strided_slice %221 {offsets = [0, 16], sizes = [2, 16], strides = [1, 1]} : vector<2x48xf32> to vector<2x16xf32>
    %224 = vector.extract_strided_slice %221 {offsets = [0, 32], sizes = [2, 16], strides = [1, 1]} : vector<2x48xf32> to vector<2x16xf32>
    %225 = vector.extract_strided_slice %215 {offsets = [0, 48], sizes = [2, 16], strides = [1, 1]} : vector<2x64xf32> to vector<2x16xf32>
    %226 = math.tanh %225 : vector<2x16xf32>
    %227 = arith.mulf %223, %202 : vector<2x16xf32>
    %228 = arith.mulf %222, %226 : vector<2x16xf32>
    %229 = arith.addf %227, %228 : vector<2x16xf32>
    %230 = math.tanh %229 : vector<2x16xf32>
    %231 = arith.mulf %224, %230 : vector<2x16xf32>
    %232 = vector.extract_strided_slice %231 {offsets = [0, 0], sizes = [1, 16], strides = [1, 1]} : vector<2x16xf32> to vector<1x16xf32>
    %233 = vector.extract_strided_slice %231 {offsets = [1, 0], sizes = [1, 16], strides = [1, 1]} : vector<2x16xf32> to vector<1x16xf32>
    %234 = arith.truncf %231 : vector<2x16xf32> to vector<2x16xbf16>
    %cst_33 = arith.constant dense<0.000000e+00> : vector<2x128xf32>
    %235 = tpu.matmul %234, %37, %cst_33 {dimension_numbers = #tpu.dot_dimension_numbers<[1], [0], [0], [1], [0, 0, 1, 1], [], []>} : vector<2x16xbf16>, vector<16x128xbf16>, vector<2x128xf32> -> vector<2x128xf32>
    %236 = vector.extract_strided_slice %42 {offsets = [7, 0], sizes = [1, 64], strides = [1, 1]} : vector<8x128xf32> to vector<1x64xf32>
    %237 = vector.extract_strided_slice %235 {offsets = [0, 0], sizes = [1, 64], strides = [1, 1]} : vector<2x128xf32> to vector<1x64xf32>
    %238 = arith.addf %236, %237 : vector<1x64xf32>
    %239 = vector.extract_strided_slice %42 {offsets = [0, 64], sizes = [1, 64], strides = [1, 1]} : vector<8x128xf32> to vector<1x64xf32>
    %240 = vector.extract_strided_slice %235 {offsets = [1, 64], sizes = [1, 64], strides = [1, 1]} : vector<2x128xf32> to vector<1x64xf32>
    %241 = arith.addf %239, %240 : vector<1x64xf32>
    %242 = tpu.concatenate %238, %241 in 0 : vector<1x64xf32>, vector<1x64xf32> -> vector<2x64xf32>
    %243 = vector.extract_strided_slice %242 {offsets = [0, 0], sizes = [2, 48], strides = [1, 1]} : vector<2x64xf32> to vector<2x48xf32>
    %244 = arith.negf %243 : vector<2x48xf32>
    %245 = math.exp %244 : vector<2x48xf32>
    %cst_34 = arith.constant 1.000000e+00 : f32
    %246 = vector.broadcast %cst_34 : f32 to vector<2x48xf32>
    %247 = arith.addf %246, %245 : vector<2x48xf32>
    %248 = arith.divf %246, %247 : vector<2x48xf32>
    %249 = vector.extract_strided_slice %248 {offsets = [0, 0], sizes = [2, 16], strides = [1, 1]} : vector<2x48xf32> to vector<2x16xf32>
    %250 = vector.extract_strided_slice %248 {offsets = [0, 16], sizes = [2, 16], strides = [1, 1]} : vector<2x48xf32> to vector<2x16xf32>
    %251 = vector.extract_strided_slice %248 {offsets = [0, 32], sizes = [2, 16], strides = [1, 1]} : vector<2x48xf32> to vector<2x16xf32>
    %252 = vector.extract_strided_slice %242 {offsets = [0, 48], sizes = [2, 16], strides = [1, 1]} : vector<2x64xf32> to vector<2x16xf32>
    %253 = math.tanh %252 : vector<2x16xf32>
    %254 = arith.mulf %250, %229 : vector<2x16xf32>
    %255 = arith.mulf %249, %253 : vector<2x16xf32>
    %256 = arith.addf %254, %255 : vector<2x16xf32>
    %257 = math.tanh %256 : vector<2x16xf32>
    %258 = arith.mulf %251, %257 : vector<2x16xf32>
    %259 = vector.extract_strided_slice %258 {offsets = [0, 0], sizes = [1, 16], strides = [1, 1]} : vector<2x16xf32> to vector<1x16xf32>
    %260 = vector.extract_strided_slice %258 {offsets = [1, 0], sizes = [1, 16], strides = [1, 1]} : vector<2x16xf32> to vector<1x16xf32>
    %261 = tpu.concatenate %70, %97, %124, %151, %178, %205, %232, %259 in 0 : vector<1x16xf32>, vector<1x16xf32>, vector<1x16xf32>, vector<1x16xf32>, vector<1x16xf32>, vector<1x16xf32>, vector<1x16xf32>, vector<1x16xf32> -> vector<8x16xf32>
    %262 = tpu.concatenate %260, %233, %206, %179, %152, %125, %98, %71 in 0 : vector<1x16xf32>, vector<1x16xf32>, vector<1x16xf32>, vector<1x16xf32>, vector<1x16xf32>, vector<1x16xf32>, vector<1x16xf32>, vector<1x16xf32> -> vector<8x16xf32>
    %263 = tpu.concatenate %261, %262 in 1 : vector<8x16xf32>, vector<8x16xf32> -> vector<8x32xf32>
    %264 = vector.extract_strided_slice %0 {offsets = [2, 0], sizes = [1, 32], strides = [1, 1]} : vector<16x128xf32> to vector<1x32xf32>
    %265 = vector.extract_strided_slice %0 {offsets = [3, 0], sizes = [1, 32], strides = [1, 1]} : vector<16x128xf32> to vector<1x32xf32>
    %cst_35 = arith.constant dense<0.000000e+00> : vector<8xf32>
    %266 = vector.multi_reduction <add>, %263, %cst_35 [1] : vector<8x32xf32> to vector<8xf32>
    %267 = vector.shape_cast %266 : vector<8xf32> to vector<8x1xf32>
    %cst_36 = arith.constant 3.200000e+01 : f32
    %268 = vector.broadcast %cst_36 : f32 to vector<8x1xf32>
    %269 = arith.divf %267, %268 : vector<8x1xf32>
    %270 = vector.broadcast %269 : vector<8x1xf32> to vector<8x32xf32>
    %271 = arith.subf %263, %270 : vector<8x32xf32>
    %272 = arith.mulf %271, %271 : vector<8x32xf32>
    %cst_37 = arith.constant dense<0.000000e+00> : vector<8xf32>
    %273 = vector.multi_reduction <add>, %272, %cst_37 [1] : vector<8x32xf32> to vector<8xf32>
    %274 = vector.shape_cast %273 : vector<8xf32> to vector<8x1xf32>
    %cst_38 = arith.constant 3.200000e+01 : f32
    %275 = vector.broadcast %cst_38 : f32 to vector<8x1xf32>
    %276 = arith.divf %274, %275 : vector<8x1xf32>
    %277 = vector.broadcast %269 : vector<8x1xf32> to vector<8x32xf32>
    %278 = arith.subf %263, %277 : vector<8x32xf32>
    %cst_39 = arith.constant 9.99999974E-6 : f32
    %279 = vector.broadcast %cst_39 : f32 to vector<8x1xf32>
    %280 = arith.addf %276, %279 : vector<8x1xf32>
    %281 = math.rsqrt %280 : vector<8x1xf32>
    %282 = vector.broadcast %281 : vector<8x1xf32> to vector<8x32xf32>
    %283 = arith.mulf %278, %282 : vector<8x32xf32>
    %284 = vector.broadcast %264 : vector<1x32xf32> to vector<8x32xf32>
    %285 = arith.mulf %283, %284 : vector<8x32xf32>
    %286 = vector.broadcast %265 : vector<1x32xf32> to vector<8x32xf32>
    %287 = arith.addf %285, %286 : vector<8x32xf32>
    %288 = arith.truncf %287 : vector<8x32xf32> to vector<8x32xbf16>
    %c0_40 = arith.constant 0 : index
    %c0_41 = arith.constant 0 : index
    %289 = vector.load %arg6[%c0_40, %c0_41] : memref<32x256xbf16, #tpu.memory_space<vmem>>, vector<32x256xbf16>
    %290 = vector.extract_strided_slice %289 {offsets = [0, 0], sizes = [32, 96], strides = [1, 1]} : vector<32x256xbf16> to vector<32x96xbf16>
    %291 = vector.extract_strided_slice %289 {offsets = [0, 96], sizes = [32, 32], strides = [1, 1]} : vector<32x256xbf16> to vector<32x32xbf16>
    %292 = vector.extract_strided_slice %289 {offsets = [0, 128], sizes = [32, 128], strides = [1, 1]} : vector<32x256xbf16> to vector<32x128xbf16>
    %cst_42 = arith.constant dense<0.000000e+00> : vector<8x96xf32>
    %293 = tpu.matmul %288, %290, %cst_42 {dimension_numbers = #tpu.dot_dimension_numbers<[1], [0], [0], [1], [0, 0, 1, 1], [], []>} : vector<8x32xbf16>, vector<32x96xbf16>, vector<8x96xf32> -> vector<8x96xf32>
    %294 = vector.extract_strided_slice %0 {offsets = [6, 0], sizes = [1, 96], strides = [1, 1]} : vector<16x128xf32> to vector<1x96xf32>
    %295 = vector.broadcast %294 : vector<1x96xf32> to vector<8x96xf32>
    %296 = arith.addf %293, %295 : vector<8x96xf32>
    %297 = vector.extract_strided_slice %296 {offsets = [0, 0], sizes = [8, 32], strides = [1, 1]} : vector<8x96xf32> to vector<8x32xf32>
    %298 = arith.truncf %297 : vector<8x32xf32> to vector<8x32xbf16>
    %299 = vector.extract_strided_slice %296 {offsets = [0, 32], sizes = [8, 32], strides = [1, 1]} : vector<8x96xf32> to vector<8x32xf32>
    %300 = arith.truncf %299 : vector<8x32xf32> to vector<8x32xbf16>
    %301 = vector.extract_strided_slice %296 {offsets = [0, 64], sizes = [8, 32], strides = [1, 1]} : vector<8x96xf32> to vector<8x32xf32>
    %302 = arith.truncf %301 : vector<8x32xf32> to vector<8x32xbf16>
    %c0_43 = arith.constant 0 : index
    %c0_44 = arith.constant 0 : index
    %c0_45 = arith.constant 0 : index
    %303 = vector.load %arg2[%c0_43, %c0_44, %c0_45] : memref<1x1x128xf32, #tpu.memory_space<vmem>>, vector<1x1x32xf32>
    %304 = vector.shape_cast %303 : vector<1x1x32xf32> to vector<1x32xf32>
    %305 = vector.extract_strided_slice %298 {offsets = [0, 0], sizes = [8, 8], strides = [1, 1]} : vector<8x32xbf16> to vector<8x8xbf16>
    %306 = vector.extract_strided_slice %300 {offsets = [0, 0], sizes = [8, 8], strides = [1, 1]} : vector<8x32xbf16> to vector<8x8xbf16>
    "tpu.trace_start"() <{level = 10 : i32, message = "qd,kd->qk"}> : () -> ()
    %cst_46 = arith.constant dense<0.000000e+00> : vector<8x8xf32>
    %307 = tpu.matmul %305, %306, %cst_46 {dimension_numbers = #tpu.dot_dimension_numbers<[1], [1], [0], [0], [0, 0, 1, 0], [], []>} : vector<8x8xbf16>, vector<8x8xbf16>, vector<8x8xf32> -> vector<8x8xf32>
    "tpu.trace_stop"() : () -> ()
    %308 = vector.extract_strided_slice %298 {offsets = [0, 8], sizes = [8, 8], strides = [1, 1]} : vector<8x32xbf16> to vector<8x8xbf16>
    %309 = vector.extract_strided_slice %300 {offsets = [0, 8], sizes = [8, 8], strides = [1, 1]} : vector<8x32xbf16> to vector<8x8xbf16>
    "tpu.trace_start"() <{level = 10 : i32, message = "qd,kd->qk"}> : () -> ()
    %cst_47 = arith.constant dense<0.000000e+00> : vector<8x8xf32>
    %310 = tpu.matmul %308, %309, %cst_47 {dimension_numbers = #tpu.dot_dimension_numbers<[1], [1], [0], [0], [0, 0, 1, 0], [], []>} : vector<8x8xbf16>, vector<8x8xbf16>, vector<8x8xf32> -> vector<8x8xf32>
    "tpu.trace_stop"() : () -> ()
    %311 = vector.extract_strided_slice %298 {offsets = [0, 16], sizes = [8, 8], strides = [1, 1]} : vector<8x32xbf16> to vector<8x8xbf16>
    %312 = vector.extract_strided_slice %300 {offsets = [0, 16], sizes = [8, 8], strides = [1, 1]} : vector<8x32xbf16> to vector<8x8xbf16>
    "tpu.trace_start"() <{level = 10 : i32, message = "qd,kd->qk"}> : () -> ()
    %cst_48 = arith.constant dense<0.000000e+00> : vector<8x8xf32>
    %313 = tpu.matmul %311, %312, %cst_48 {dimension_numbers = #tpu.dot_dimension_numbers<[1], [1], [0], [0], [0, 0, 1, 0], [], []>} : vector<8x8xbf16>, vector<8x8xbf16>, vector<8x8xf32> -> vector<8x8xf32>
    "tpu.trace_stop"() : () -> ()
    %314 = vector.extract_strided_slice %298 {offsets = [0, 24], sizes = [8, 8], strides = [1, 1]} : vector<8x32xbf16> to vector<8x8xbf16>
    %315 = vector.extract_strided_slice %300 {offsets = [0, 24], sizes = [8, 8], strides = [1, 1]} : vector<8x32xbf16> to vector<8x8xbf16>
    "tpu.trace_start"() <{level = 10 : i32, message = "qd,kd->qk"}> : () -> ()
    %cst_49 = arith.constant dense<0.000000e+00> : vector<8x8xf32>
    %316 = tpu.matmul %314, %315, %cst_49 {dimension_numbers = #tpu.dot_dimension_numbers<[1], [1], [0], [0], [0, 0, 1, 0], [], []>} : vector<8x8xbf16>, vector<8x8xbf16>, vector<8x8xf32> -> vector<8x8xf32>
    "tpu.trace_stop"() : () -> ()
    %317 = tpu.concatenate %307, %310, %313, %316 in 1 : vector<8x8xf32>, vector<8x8xf32>, vector<8x8xf32>, vector<8x8xf32> -> vector<8x32xf32>
    %cst_50 = arith.constant 0.353553385 : f32
    %318 = vector.broadcast %cst_50 : f32 to vector<8x32xf32>
    %319 = arith.mulf %317, %318 : vector<8x32xf32>
    %320 = vector.broadcast %304 : vector<1x32xf32> to vector<8x32xf32>
    %321 = arith.addf %319, %320 : vector<8x32xf32>
    %cst_51 = arith.constant dense<0xFF800000> : vector<8xf32>
    %322 = vector.multi_reduction <maximumf>, %321, %cst_51 [1] : vector<8x32xf32> to vector<8xf32>
    %323 = vector.shape_cast %322 : vector<8xf32> to vector<8x1xf32>
    %324 = vector.broadcast %323 : vector<8x1xf32> to vector<8x32xf32>
    %325 = arith.subf %321, %324 : vector<8x32xf32>
    %326 = math.exp %325 : vector<8x32xf32>
    %327 = vector.extract_strided_slice %326 {offsets = [0, 0], sizes = [8, 8], strides = [1, 1]} : vector<8x32xf32> to vector<8x8xf32>
    %cst_52 = arith.constant dense<0.000000e+00> : vector<8xf32>
    %328 = vector.multi_reduction <add>, %327, %cst_52 [1] : vector<8x8xf32> to vector<8xf32>
    %329 = vector.shape_cast %328 : vector<8xf32> to vector<8x1xf32>
    %330 = vector.extract_strided_slice %326 {offsets = [0, 8], sizes = [8, 8], strides = [1, 1]} : vector<8x32xf32> to vector<8x8xf32>
    %cst_53 = arith.constant dense<0.000000e+00> : vector<8xf32>
    %331 = vector.multi_reduction <add>, %330, %cst_53 [1] : vector<8x8xf32> to vector<8xf32>
    %332 = vector.shape_cast %331 : vector<8xf32> to vector<8x1xf32>
    %333 = vector.extract_strided_slice %326 {offsets = [0, 16], sizes = [8, 8], strides = [1, 1]} : vector<8x32xf32> to vector<8x8xf32>
    %cst_54 = arith.constant dense<0.000000e+00> : vector<8xf32>
    %334 = vector.multi_reduction <add>, %333, %cst_54 [1] : vector<8x8xf32> to vector<8xf32>
    %335 = vector.shape_cast %334 : vector<8xf32> to vector<8x1xf32>
    %336 = vector.extract_strided_slice %326 {offsets = [0, 24], sizes = [8, 8], strides = [1, 1]} : vector<8x32xf32> to vector<8x8xf32>
    %cst_55 = arith.constant dense<0.000000e+00> : vector<8xf32>
    %337 = vector.multi_reduction <add>, %336, %cst_55 [1] : vector<8x8xf32> to vector<8xf32>
    %338 = vector.shape_cast %337 : vector<8xf32> to vector<8x1xf32>
    %339 = tpu.concatenate %329, %332, %335, %338 in 1 : vector<8x1xf32>, vector<8x1xf32>, vector<8x1xf32>, vector<8x1xf32> -> vector<8x4xf32>
    %340 = tpu.reciprocal %339 {approx = true} : vector<8x4xf32> -> vector<8x4xf32>
    %341 = vector.extract_strided_slice %326 {offsets = [0, 0], sizes = [8, 8], strides = [1, 1]} : vector<8x32xf32> to vector<8x8xf32>
    %342 = vector.extract_strided_slice %340 {offsets = [0, 0], sizes = [8, 1], strides = [1, 1]} : vector<8x4xf32> to vector<8x1xf32>
    %343 = vector.broadcast %342 : vector<8x1xf32> to vector<8x8xf32>
    %344 = arith.mulf %341, %343 : vector<8x8xf32>
    %345 = arith.truncf %344 : vector<8x8xf32> to vector<8x8xbf16>
    %346 = vector.extract_strided_slice %302 {offsets = [0, 0], sizes = [8, 8], strides = [1, 1]} : vector<8x32xbf16> to vector<8x8xbf16>
    %cst_56 = arith.constant dense<0.000000e+00> : vector<8x8xf32>
    %347 = tpu.matmul %345, %346, %cst_56 {dimension_numbers = #tpu.dot_dimension_numbers<[1], [0], [0], [1], [0, 0, 1, 1], [], []>} : vector<8x8xbf16>, vector<8x8xbf16>, vector<8x8xf32> -> vector<8x8xf32>
    %348 = vector.extract_strided_slice %326 {offsets = [0, 8], sizes = [8, 8], strides = [1, 1]} : vector<8x32xf32> to vector<8x8xf32>
    %349 = vector.extract_strided_slice %340 {offsets = [0, 1], sizes = [8, 1], strides = [1, 1]} : vector<8x4xf32> to vector<8x1xf32>
    %350 = vector.broadcast %349 : vector<8x1xf32> to vector<8x8xf32>
    %351 = arith.mulf %348, %350 : vector<8x8xf32>
    %352 = arith.truncf %351 : vector<8x8xf32> to vector<8x8xbf16>
    %353 = vector.extract_strided_slice %302 {offsets = [0, 8], sizes = [8, 8], strides = [1, 1]} : vector<8x32xbf16> to vector<8x8xbf16>
    %cst_57 = arith.constant dense<0.000000e+00> : vector<8x8xf32>
    %354 = tpu.matmul %352, %353, %cst_57 {dimension_numbers = #tpu.dot_dimension_numbers<[1], [0], [0], [1], [0, 0, 1, 1], [], []>} : vector<8x8xbf16>, vector<8x8xbf16>, vector<8x8xf32> -> vector<8x8xf32>
    %355 = vector.extract_strided_slice %326 {offsets = [0, 16], sizes = [8, 8], strides = [1, 1]} : vector<8x32xf32> to vector<8x8xf32>
    %356 = vector.extract_strided_slice %340 {offsets = [0, 2], sizes = [8, 1], strides = [1, 1]} : vector<8x4xf32> to vector<8x1xf32>
    %357 = vector.broadcast %356 : vector<8x1xf32> to vector<8x8xf32>
    %358 = arith.mulf %355, %357 : vector<8x8xf32>
    %359 = arith.truncf %358 : vector<8x8xf32> to vector<8x8xbf16>
    %360 = vector.extract_strided_slice %302 {offsets = [0, 16], sizes = [8, 8], strides = [1, 1]} : vector<8x32xbf16> to vector<8x8xbf16>
    %cst_58 = arith.constant dense<0.000000e+00> : vector<8x8xf32>
    %361 = tpu.matmul %359, %360, %cst_58 {dimension_numbers = #tpu.dot_dimension_numbers<[1], [0], [0], [1], [0, 0, 1, 1], [], []>} : vector<8x8xbf16>, vector<8x8xbf16>, vector<8x8xf32> -> vector<8x8xf32>
    %362 = vector.extract_strided_slice %326 {offsets = [0, 24], sizes = [8, 8], strides = [1, 1]} : vector<8x32xf32> to vector<8x8xf32>
    %363 = vector.extract_strided_slice %340 {offsets = [0, 3], sizes = [8, 1], strides = [1, 1]} : vector<8x4xf32> to vector<8x1xf32>
    %364 = vector.broadcast %363 : vector<8x1xf32> to vector<8x8xf32>
    %365 = arith.mulf %362, %364 : vector<8x8xf32>
    %366 = arith.truncf %365 : vector<8x8xf32> to vector<8x8xbf16>
    %367 = vector.extract_strided_slice %302 {offsets = [0, 24], sizes = [8, 8], strides = [1, 1]} : vector<8x32xbf16> to vector<8x8xbf16>
    %cst_59 = arith.constant dense<0.000000e+00> : vector<8x8xf32>
    %368 = tpu.matmul %366, %367, %cst_59 {dimension_numbers = #tpu.dot_dimension_numbers<[1], [0], [0], [1], [0, 0, 1, 1], [], []>} : vector<8x8xbf16>, vector<8x8xbf16>, vector<8x8xf32> -> vector<8x8xf32>
    %369 = tpu.concatenate %347, %354, %361, %368 in 1 : vector<8x8xf32>, vector<8x8xf32>, vector<8x8xf32>, vector<8x8xf32> -> vector<8x32xf32>
    %370 = arith.truncf %369 : vector<8x32xf32> to vector<8x32xbf16>
    %cst_60 = arith.constant dense<0.000000e+00> : vector<8x32xf32>
    %371 = tpu.matmul %370, %291, %cst_60 {dimension_numbers = #tpu.dot_dimension_numbers<[1], [0], [0], [1], [0, 0, 1, 1], [], []>} : vector<8x32xbf16>, vector<32x32xbf16>, vector<8x32xf32> -> vector<8x32xf32>
    %372 = vector.extract_strided_slice %0 {offsets = [7, 0], sizes = [1, 32], strides = [1, 1]} : vector<16x128xf32> to vector<1x32xf32>
    %373 = vector.broadcast %372 : vector<1x32xf32> to vector<8x32xf32>
    %374 = arith.addf %371, %373 : vector<8x32xf32>
    %375 = arith.addf %287, %374 : vector<8x32xf32>
    %376 = vector.extract_strided_slice %0 {offsets = [4, 0], sizes = [1, 32], strides = [1, 1]} : vector<16x128xf32> to vector<1x32xf32>
    %377 = vector.extract_strided_slice %0 {offsets = [5, 0], sizes = [1, 32], strides = [1, 1]} : vector<16x128xf32> to vector<1x32xf32>
    %cst_61 = arith.constant dense<0.000000e+00> : vector<8xf32>
    %378 = vector.multi_reduction <add>, %375, %cst_61 [1] : vector<8x32xf32> to vector<8xf32>
    %379 = vector.shape_cast %378 : vector<8xf32> to vector<8x1xf32>
    %cst_62 = arith.constant 3.200000e+01 : f32
    %380 = vector.broadcast %cst_62 : f32 to vector<8x1xf32>
    %381 = arith.divf %379, %380 : vector<8x1xf32>
    %382 = vector.broadcast %381 : vector<8x1xf32> to vector<8x32xf32>
    %383 = arith.subf %375, %382 : vector<8x32xf32>
    %384 = arith.mulf %383, %383 : vector<8x32xf32>
    %cst_63 = arith.constant dense<0.000000e+00> : vector<8xf32>
    %385 = vector.multi_reduction <add>, %384, %cst_63 [1] : vector<8x32xf32> to vector<8xf32>
    %386 = vector.shape_cast %385 : vector<8xf32> to vector<8x1xf32>
    %cst_64 = arith.constant 3.200000e+01 : f32
    %387 = vector.broadcast %cst_64 : f32 to vector<8x1xf32>
    %388 = arith.divf %386, %387 : vector<8x1xf32>
    %389 = vector.broadcast %381 : vector<8x1xf32> to vector<8x32xf32>
    %390 = arith.subf %375, %389 : vector<8x32xf32>
    %cst_65 = arith.constant 9.99999974E-6 : f32
    %391 = vector.broadcast %cst_65 : f32 to vector<8x1xf32>
    %392 = arith.addf %388, %391 : vector<8x1xf32>
    %393 = math.rsqrt %392 : vector<8x1xf32>
    %394 = vector.broadcast %393 : vector<8x1xf32> to vector<8x32xf32>
    %395 = arith.mulf %390, %394 : vector<8x32xf32>
    %396 = vector.broadcast %376 : vector<1x32xf32> to vector<8x32xf32>
    %397 = arith.mulf %395, %396 : vector<8x32xf32>
    %398 = vector.broadcast %377 : vector<1x32xf32> to vector<8x32xf32>
    %399 = arith.addf %397, %398 : vector<8x32xf32>
    %400 = arith.truncf %399 : vector<8x32xf32> to vector<8x32xbf16>
    %cst_66 = arith.constant dense<0.000000e+00> : vector<8x128xf32>
    %401 = tpu.matmul %400, %292, %cst_66 {dimension_numbers = #tpu.dot_dimension_numbers<[1], [0], [0], [1], [0, 0, 1, 1], [], []>} : vector<8x32xbf16>, vector<32x128xbf16>, vector<8x128xf32> -> vector<8x128xf32>
    %402 = vector.extract_strided_slice %0 {offsets = [8, 0], sizes = [1, 128], strides = [1, 1]} : vector<16x128xf32> to vector<1x128xf32>
    %403 = vector.broadcast %402 : vector<1x128xf32> to vector<8x128xf32>
    %404 = arith.addf %401, %403 : vector<8x128xf32>
    %c0_67 = arith.constant 0 : index
    %c0_68 = arith.constant 0 : index
    %c0_69 = arith.constant 0 : index
    %405 = vector.load %arg8[%c0_67, %c0_68, %c0_69] : memref<1x8x128xf32, #tpu.memory_space<vmem>>, vector<1x8x128xf32>
    %406 = vector.shape_cast %405 : vector<1x8x128xf32> to vector<8x128xf32>
    %407 = vector.shape_cast %404 : vector<8x128xf32> to vector<1x8x128xf32>
    tpu.vector_store %arg8[%c0_67, %c0_68, %c0_69], %407 {strides = array<i32>} : memref<1x8x128xf32, #tpu.memory_space<vmem>>, vector<1x8x128xf32>,
    return
  }
  func.func @transform_0(%arg0: i32) -> (i32, i32, i32) {
    %c0_i32 = arith.constant 0 : i32
    %c0_i32_0 = arith.constant 0 : i32
    %c0_i32_1 = arith.constant 0 : i32
    return %arg0, %c0_i32, %c0_i32_0 : i32, i32, i32
  }
  func.func @transform_1(%arg0: i32) -> (i32, i32, i32) {
    %c0_i32 = arith.constant 0 : i32
    %c0_i32_0 = arith.constant 0 : i32
    %c0_i32_1 = arith.constant 0 : i32
    return %arg0, %c0_i32, %c0_i32_0 : i32, i32, i32
  }
  func.func @transform_2(%arg0: i32) -> (i32, i32) {
    %c0_i32 = arith.constant 0 : i32
    %c0_i32_0 = arith.constant 0 : i32
    %c0_i32_1 = arith.constant 0 : i32
    return %c0_i32, %c0_i32_0 : i32, i32
  }
  func.func @transform_3(%arg0: i32) -> (i32, i32) {
    %c0_i32 = arith.constant 0 : i32
    %c0_i32_0 = arith.constant 0 : i32
    %c0_i32_1 = arith.constant 0 : i32
    return %c0_i32, %c0_i32_0 : i32, i32
  }
  func.func @transform_4(%arg0: i32) -> (i32, i32) {
    %c0_i32 = arith.constant 0 : i32
    %c0_i32_0 = arith.constant 0 : i32
    %c0_i32_1 = arith.constant 0 : i32
    return %c0_i32, %c0_i32_0 : i32, i32
  }
  func.func @transform_5(%arg0: i32) -> (i32, i32) {
    %c0_i32 = arith.constant 0 : i32
    %c0_i32_0 = arith.constant 0 : i32
    %c0_i32_1 = arith.constant 0 : i32
    return %c0_i32, %c0_i32_0 : i32, i32
  }
  func.func @transform_6(%arg0: i32) -> (i32, i32) {
    %c0_i32 = arith.constant 0 : i32
    %c0_i32_0 = arith.constant 0 : i32
    %c0_i32_1 = arith.constant 0 : i32
    return %c0_i32, %c0_i32_0 : i32, i32
  }
  func.func @transform_7(%arg0: i32) -> (i32, i32, i32) {
    %c0_i32 = arith.constant 0 : i32
    %c0_i32_0 = arith.constant 0 : i32
    %c0_i32_1 = arith.constant 0 : i32
    return %arg0, %c0_i32, %c0_i32_0 : i32, i32, i32
  }
}

</mosaic_0001>

<llo_original>
// kernel: tile.9
$region0: #{tile.9}
  %s0 = inlined_call_operand.vmem [shape: f32[2,4,8], index: 0, kind: input, shape index: {}]
  %s1 = inlined_call_operand.vmem [shape: f32[2,32], index: 1, kind: output, shape index: {}]
  $region1: #{tile.9} parent=0
    #allocation0 [shape = 'u8[4096]{0}', space=vmem, size = 0x1000, scoped, tag = 'scoped mem for output reshape']
    #allocation1 [shape = 'u8[8192]{0}', space=vmem, size = 0x2000, scoped, tag = 'scoped mem for input reshape']
    %s3 = sshllo.u32 0, 4
    %s4 = scalar_lea.vmem %s0, 4
    %v5 = vld [vmem:[%s4] sm:%s3]
    %s6 = scalar_lea.vmem [#allocation1], 8
    %7 = vst [vmem:[%s6] sm:%s3] %v5
    %v8 = vld [vmem:[%s0] sm:%s3]
    %9 = vst [vmem:[#allocation1] sm:%s3] %v8
    %s10 = smov 3
    %v11 = vld [vmem:[#allocation1] ss:$8 sm:%s10]
    %vm12 = vcmask 64512
    %13 = vst.msk [vmem:[#allocation0] sm:$0x3] %vm12, %v11
    %s14 = scalar_lea.vmem [#allocation1], 3
    %s15 = smov 3
    %v16 = vld [vmem:[%s14] ss:$8 sm:%s15]
    %17 = vrot.lane.b32.xlu0 %v16, 24
    %v18 = vpop.permute.xlu0 %17
    %vm19 = vcmask 261312
    %20 = vst.msk [vmem:[#allocation0] sm:$0x3] %vm19, %v18
    %s21 = scalar_lea.vmem [#allocation1], 2
    %s22 = smov 3
    %v23 = vld [vmem:[%s21] ss:$8 sm:%s22]
    %24 = vrot.lane.b32.xlu0 %v23, 16
    %v25 = vpop.permute.xlu0 %24
    %vm26 = vcmask 195712
    %27 = vst.msk [vmem:[#allocation0] sm:$0x3] %vm26, %v25
    %s28 = scalar_lea.vmem [#allocation1], 1
    %s29 = smov 3
    %v30 = vld [vmem:[%s28] ss:$8 sm:%s29]
    %31 = vrot.lane.b32.xlu0 %v30, 8
    %v32 = vpop.permute.xlu0 %31
    %vm33 = vcmask 130112
    %34 = vst.msk [vmem:[#allocation0] sm:$0x3] %vm33, %v32
    %s36 = sshllo.u32 0, 2
    %v38 = vld [vmem:[#allocation0] sm:%s36]
    %s39 = sshllo.u32 0, 2
    %40 = vst [vmem:[%s1] sm:%s39] %v38

// kernel: punctuation_forward.1
$region0: #{punctuation_forward.1}
  #allocation0 [shape = 'u32[]', space=smem, size = 0x4, offset = 0x4, fixed_abs, tag = 'smem constant byte address 0x4 - core index']
  #allocation1 [shape = 'u32[144,128]{1,0:T(1,128)}', space=vmem, size = 0x12000, scoped, tag = 'internal scratch']
  %s0 = inlined_call_operand.vmem [shape: s32[2,8,1], index: 0, kind: input, shape index: {}]
  %s1 = inlined_call_operand.vmem [shape: f32[2,1,128], index: 1, kind: input, shape index: {}]
  %s2 = inlined_call_operand.vmem [shape: f32[100,32], index: 2, kind: input, shape index: {}]
  %s3 = inlined_call_operand.vmem [shape: f32[8,32], index: 3, kind: input, shape index: {}]
  %s4 = inlined_call_operand.vmem [shape: bf16[48,128], index: 4, kind: input, shape index: {}]
  %s5 = inlined_call_operand.vmem [shape: bf16[32,256], index: 5, kind: input, shape index: {}]
  %s6 = inlined_call_operand.vmem [shape: f32[16,128], index: 6, kind: input, shape index: {}]
  %s7 = inlined_call_operand.hbm [shape: f32[2,8,128], index: 7, kind: output, shape index: {}]
  %s8 = sld [smem:[#allocation0]]
  $region61: #{punctuation_forward.1} parent=0
    _
  %s10 = ssub.s32 1, %s8
  %s11 = scalar_select 0, %s10, %s8
  $region1: #{punctuation_forward.1} parent=0
    #allocation2 [shape = 'u8[8192]{0}', space=vmem, size = 0x2000, scoped, tag = 'output window, operand 0']
    #allocation3 [shape = 's32[2]{0}', space=sflag, size = 0x8, scoped, tag = 'scoped memory for punctuation_forward.1']
    %12 = vsyncpa [#allocation3], 0
    %s13 = scalar_lea.sflag [#allocation3], 1
    %14 = vsyncpa %s13, 0
    loop: start=0, step=1, limit=4
    $region2: #{punctuation_forward.1} parent=1 // loop_pre_header
      _
    $region3: #{punctuation_forward.1} parent=1 // loop_header
      %s16 = sphi 0, %s20
      %p17 = scmp.ge.s32.totalorder %s16, 4
      %s26 = sphi 0, %s28
      %s29 = sphi 0, %s26
      %s30 = sphi 0, %s29
      %s46 = sphi 0, %s30
      %s52 = sphi 0, %s54
      %s55 = sphi 0, %s52
      %s56 = sphi 0, %s55
      %s72 = sphi 0, %s56
      %s76 = sphi 0, %s76
      %s78 = sphi 0, %s76
      %s79 = sphi 0, %s78
      %s93 = sphi 0, %s79
      %s97 = sphi 0, %s97
      %s99 = sphi 0, %s97
      %s100 = sphi 0, %s99
      %s114 = sphi 0, %s100
      %s118 = sphi 0, %s118
      %s120 = sphi 0, %s118
      %s121 = sphi 0, %s120
      %s135 = sphi 0, %s121
      %s139 = sphi 0, %s139
      %s141 = sphi 0, %s139
      %s142 = sphi 0, %s141
      %s156 = sphi 0, %s142
      %s160 = sphi 0, %s160
      %s162 = sphi 0, %s160
      %s163 = sphi 0, %s162
      %s177 = sphi 0, %s163
      %s183 = sphi 0, %s185
      %s186 = sphi 0, %s183
      %s187 = sphi 0, %s186
      %s203 = sphi 0, %s187
    $region4: #{punctuation_forward.1} parent=1 // loop_header_branch
      %19 = sbr.rel (%p17) target = $region8
    $region5: #{punctuation_forward.1} parent=1 // loop_body
      %s21 = ssub.s32 %s16, 1
      %s22 = ssub.s32 %s16, 2
      %s23 = sadd.s32 %s16, 1
      %s24 = ssub.s32 %s16, %s23
      %p25 = scmp.eq.s32.totalorder %s24, 0
      %s27 = sadd.s32 %s26, 1
      %s28 = scalar_select %p25, %s26, %s27
      %p31 = pneg %p25
      %p32 = scmp.eq.s32.totalorder %s16, 1
      %p33 = por %p31, %p32
      %p34 = scmp.ne.s32.totalorder %s26, %s29
      %p35 = scmp.eq.s32.totalorder %s16, 0
      %p36 = por %p34, %p35
      %p37 = scmp.ne.s32.totalorder %s26, %s29
      %p38 = scmp.eq.s32.totalorder %s21, 1
      %p39 = por %p37, %p38
      %p40 = scmp.ne.s32.totalorder %s29, %s30
      %p41 = scmp.eq.s32.totalorder %s21, 0
      %p42 = por %p40, %p41
      %p43 = scmp.ne.s32.totalorder %s29, %s30
      %p44 = scmp.eq.s32.totalorder %s22, 1
      %p45 = por %p43, %p44
      %p47 = scmp.ne.s32.totalorder %s30, %s46
      %p48 = scmp.eq.s32.totalorder %s22, 0
      %p49 = por %p47, %p48
      %s50 = ssub.s32 %s16, %s23
      %p51 = scmp.eq.s32.totalorder %s50, 0
      %s53 = sadd.s32 %s52, 1
      %s54 = scalar_select %p51, %s52, %s53
      %p57 = pneg %p51
      %p58 = scmp.eq.s32.totalorder %s16, 1
      %p59 = por %p57, %p58
      %p60 = scmp.ne.s32.totalorder %s52, %s55
      %p61 = scmp.eq.s32.totalorder %s16, 0
      %p62 = por %p60, %p61
      %p63 = scmp.ne.s32.totalorder %s52, %s55
      %p64 = scmp.eq.s32.totalorder %s21, 1
      %p65 = por %p63, %p64
      %p66 = scmp.ne.s32.totalorder %s55, %s56
      %p67 = scmp.eq.s32.totalorder %s21, 0
      %p68 = por %p66, %p67
      %p69 = scmp.ne.s32.totalorder %s55, %s56
      %p70 = scmp.eq.s32.totalorder %s22, 1
      %p71 = por %p69, %p70
      %p73 = scmp.ne.s32.totalorder %s56, %s72
      %p74 = scmp.eq.s32.totalorder %s22, 0
      %p75 = por %p73, %p74
      %s77 = sadd.s32 %s76, 1
      %p80 = scmp.eq.s32.totalorder %s16, 1
      %p81 = scmp.ne.s32.totalorder %s76, %s78
      %p82 = scmp.eq.s32.totalorder %s16, 0
      %p83 = por %p81, %p82
      %p84 = scmp.ne.s32.totalorder %s76, %s78
      %p85 = scmp.eq.s32.totalorder %s21, 1
      %p86 = por %p84, %p85
      %p87 = scmp.ne.s32.totalorder %s78, %s79
      %p88 = scmp.eq.s32.totalorder %s21, 0
      %p89 = por %p87, %p88
      %p90 = scmp.ne.s32.totalorder %s78, %s79
      %p91 = scmp.eq.s32.totalorder %s22, 1
      %p92 = por %p90, %p91
      %p94 = scmp.ne.s32.totalorder %s79, %s93
      %p95 = scmp.eq.s32.totalorder %s22, 0
      %p96 = por %p94, %p95
      %s98 = sadd.s32 %s97, 1
      %p101 = scmp.eq.s32.totalorder %s16, 1
      %p102 = scmp.ne.s32.totalorder %s97, %s99
      %p103 = scmp.eq.s32.totalorder %s16, 0
      %p104 = por %p102, %p103
      %p105 = scmp.ne.s32.totalorder %s97, %s99
      %p106 = scmp.eq.s32.totalorder %s21, 1
      %p107 = por %p105, %p106
      %p108 = scmp.ne.s32.totalorder %s99, %s100
      %p109 = scmp.eq.s32.totalorder %s21, 0
      %p110 = por %p108, %p109
      %p111 = scmp.ne.s32.totalorder %s99, %s100
      %p112 = scmp.eq.s32.totalorder %s22, 1
      %p113 = por %p111, %p112
      %p115 = scmp.ne.s32.totalorder %s100, %s114
      %p116 = scmp.eq.s32.totalorder %s22, 0
      %p117 = por %p115, %p116
      %s119 = sadd.s32 %s118, 1
      %p122 = scmp.eq.s32.totalorder %s16, 1
      %p123 = scmp.ne.s32.totalorder %s118, %s120
      %p124 = scmp.eq.s32.totalorder %s16, 0
      %p125 = por %p123, %p124
      %p126 = scmp.ne.s32.totalorder %s118, %s120
      %p127 = scmp.eq.s32.totalorder %s21, 1
      %p128 = por %p126, %p127
      %p129 = scmp.ne.s32.totalorder %s120, %s121
      %p130 = scmp.eq.s32.totalorder %s21, 0
      %p131 = por %p129, %p130
      %p132 = scmp.ne.s32.totalorder %s120, %s121
      %p133 = scmp.eq.s32.totalorder %s22, 1
      %p134 = por %p132, %p133
      %p136 = scmp.ne.s32.totalorder %s121, %s135
      %p137 = scmp.eq.s32.totalorder %s22, 0
      %p138 = por %p136, %p137
      %s140 = sadd.s32 %s139, 1
      %p143 = scmp.eq.s32.totalorder %s16, 1
      %p144 = scmp.ne.s32.totalorder %s139, %s141
      %p145 = scmp.eq.s32.totalorder %s16, 0
      %p146 = por %p144, %p145
      %p147 = scmp.ne.s32.totalorder %s139, %s141
      %p148 = scmp.eq.s32.totalorder %s21, 1
      %p149 = por %p147, %p148
      %p150 = scmp.ne.s32.totalorder %s141, %s142
      %p151 = scmp.eq.s32.totalorder %s21, 0
      %p152 = por %p150, %p151
      %p153 = scmp.ne.s32.totalorder %s141, %s142
      %p154 = scmp.eq.s32.totalorder %s22, 1
      %p155 = por %p153, %p154
      %p157 = scmp.ne.s32.totalorder %s142, %s156
      %p158 = scmp.eq.s32.totalorder %s22, 0
      %p159 = por %p157, %p158
      %s161 = sadd.s32 %s160, 1
      %p164 = scmp.eq.s32.totalorder %s16, 1
      %p165 = scmp.ne.s32.totalorder %s160, %s162
      %p166 = scmp.eq.s32.totalorder %s16, 0
      %p167 = por %p165, %p166
      %p168 = scmp.ne.s32.totalorder %s160, %s162
      %p169 = scmp.eq.s32.totalorder %s21, 1
      %p170 = por %p168, %p169
      %p171 = scmp.ne.s32.totalorder %s162, %s163
      %p172 = scmp.eq.s32.totalorder %s21, 0
      %p173 = por %p171, %p172
      %p174 = scmp.ne.s32.totalorder %s162, %s163
      %p175 = scmp.eq.s32.totalorder %s22, 1
      %p176 = por %p174, %p175
      %p178 = scmp.ne.s32.totalorder %s163, %s177
      %p179 = scmp.eq.s32.totalorder %s22, 0
      %p180 = por %p178, %p179
      %s181 = ssub.s32 %s16, %s23
      %p182 = scmp.eq.s32.totalorder %s181, 0
      %s184 = sadd.s32 %s183, 1
      %s185 = scalar_select %p182, %s183, %s184
      %p188 = pneg %p182
      %p189 = scmp.eq.s32.totalorder %s16, 1
      %p190 = por %p188, %p189
      %p191 = scmp.ne.s32.totalorder %s183, %s186
      %p192 = scmp.eq.s32.totalorder %s16, 0
      %p193 = por %p191, %p192
      %p194 = scmp.ne.s32.totalorder %s183, %s186
      %p195 = scmp.eq.s32.totalorder %s21, 1
      %p196 = por %p194, %p195
      %p197 = scmp.ne.s32.totalorder %s186, %s187
      %p198 = scmp.eq.s32.totalorder %s21, 0
      %p199 = por %p197, %p198
      %p200 = scmp.ne.s32.totalorder %s186, %s187
      %p201 = scmp.eq.s32.totalorder %s22, 1
      %p202 = por %p200, %p201
      %p204 = scmp.ne.s32.totalorder %s187, %s203
      %p205 = scmp.eq.s32.totalorder %s22, 0
      %p206 = por %p204, %p205
      %p207 = scmp.le.s32.totalorder 1, %s16
      %p208 = scmp.lt.s32.totalorder %s16, 3
      %p209 = pnand %p207, %p208
      %p210 = pneg %p209
      // Predicated region
      $region9: #{punctuation_forward.1} parent=5 // pred_check
        _
      $region10: #{punctuation_forward.1} parent=5 // pred_check_branch
        %212 = sbr.rel (%p209) target = $region12
      $region11: #{punctuation_forward.1} parent=5 // pred_region
        %s213 = ssub.s32 %s16, 1
        // Predicated region
        $region13: #{punctuation_forward.1} parent=11 // pred_check
          %p214 = pneg %p89
        $region14: #{punctuation_forward.1} parent=11 // pred_check_branch
          %216 = sbr.rel (%p214) target = $region16
        $region15: #{punctuation_forward.1} parent=11 // pred_region
          _
        $region16: #{punctuation_forward.1} parent=11 // pred_fallthru
          _
        // Predicated region
        $region17: #{punctuation_forward.1} parent=11 // pred_check
          %p217 = pneg %p110
        $region18: #{punctuation_forward.1} parent=11 // pred_check_branch
          %219 = sbr.rel (%p217) target = $region20
        $region19: #{punctuation_forward.1} parent=11 // pred_region
          _
        $region20: #{punctuation_forward.1} parent=11 // pred_fallthru
          _
        // Predicated region
        $region21: #{punctuation_forward.1} parent=11 // pred_check
          %p220 = pneg %p131
        $region22: #{punctuation_forward.1} parent=11 // pred_check_branch
          %222 = sbr.rel (%p220) target = $region24
        $region23: #{punctuation_forward.1} parent=11 // pred_region
          _
        $region24: #{punctuation_forward.1} parent=11 // pred_fallthru
          _
        // Predicated region
        $region25: #{punctuation_forward.1} parent=11 // pred_check
          %p223 = pneg %p152
        $region26: #{punctuation_forward.1} parent=11 // pred_check_branch
          %225 = sbr.rel (%p223) target = $region28
        $region27: #{punctuation_forward.1} parent=11 // pred_region
          _
        $region28: #{punctuation_forward.1} parent=11 // pred_fallthru
          _
        // Predicated region
        $region29: #{punctuation_forward.1} parent=11 // pred_check
          %p226 = pneg %p173
        $region30: #{punctuation_forward.1} parent=11 // pred_check_branch
          %228 = sbr.rel (%p226) target = $region32
        $region31: #{punctuation_forward.1} parent=11 // pred_region
          _
        $region32: #{punctuation_forward.1} parent=11 // pred_fallthru
          _
      $region12: #{punctuation_forward.1} parent=5 // pred_fallthru
        _
      %p229 = scmp.lt.s32.totalorder %s16, 2
      // Predicated region
      $region33: #{punctuation_forward.1} parent=5 // pred_check
        %p230 = pneg %p229
      $region34: #{punctuation_forward.1} parent=5 // pred_check_branch
        %232 = sbr.rel (%p230) target = $region36
      $region35: #{punctuation_forward.1} parent=5 // pred_region
        // Predicated region
        $region37: #{punctuation_forward.1} parent=35 // pred_check
          %p233 = pneg %p36
        $region38: #{punctuation_forward.1} parent=35 // pred_check_branch
          %235 = sbr.rel (%p233) target = $region40
        $region39: #{punctuation_forward.1} parent=35 // pred_region
          %p236 = scmp.lt.s32.totalorder %s16, 1
          %s237 = scalar_select %p236, %s16, 1
          %s238 = smul.addr %s237, 8
          %s239 = scalar_lea.vmem %s0, %s238
        $region40: #{punctuation_forward.1} parent=35 // pred_fallthru
          _
        // Predicated region
        $region41: #{punctuation_forward.1} parent=35 // pred_check
          %p240 = pneg %p62
        $region42: #{punctuation_forward.1} parent=35 // pred_check_branch
          %242 = sbr.rel (%p240) target = $region44
        $region43: #{punctuation_forward.1} parent=35 // pred_region
          %p243 = scmp.lt.s32.totalorder %s16, 1
          %s244 = scalar_select %p243, %s16, 1
          %s245 = scalar_lea.vmem %s1, %s244
        $region44: #{punctuation_forward.1} parent=35 // pred_fallthru
          _
      $region36: #{punctuation_forward.1} parent=5 // pred_fallthru
        _
      %p246 = scmp.le.s32.totalorder 1, %s16
      %p247 = scmp.lt.s32.totalorder %s16, 3
      %p248 = pnand %p246, %p247
      %p249 = pneg %p248
      // Predicated region
      $region45: #{punctuation_forward.1} parent=5 // pred_check
        _
      $region46: #{punctuation_forward.1} parent=5 // pred_check_branch
        %251 = sbr.rel (%p248) target = $region48
      $region47: #{punctuation_forward.1} parent=5 // pred_region
        %s252 = ssub.s32 %s16, 1
        %p253 = scmp.lt.s32.totalorder %s21, 1
        %s254 = scalar_select %p253, %s21, 1
        %s255 = smul.addr %s254, 8
        %s256 = scalar_lea.vmem %s0, %s255
        %p257 = pneg %p42
        %p258 = pneg %p39
        %p259 = scmp.lt.s32.totalorder %s21, 1
        %s260 = scalar_select %p259, %s21, 1
        %s261 = scalar_lea.vmem %s1, %s260
        %p262 = pneg %p68
        %p263 = pneg %p65
        %p264 = pneg %p89
        %p265 = pneg %p86
        %p266 = pneg %p110
        %p267 = pneg %p107
        %p268 = pneg %p131
        %p269 = pneg %p128
        %p270 = pneg %p152
        %p271 = pneg %p149
        %p272 = pneg %p173
        %p273 = pneg %p170
        %p274 = pneg %p199
        %p275 = pneg %p196
        %s276 = sand.u32 %s186, 1
        %s277 = scalar_lea.sflag [#allocation3], %s276
        %s278 = sand.u32 %s186, 1
        %s279 = smul.addr %s278, 8
        %s280 = scalar_lea.vmem [#allocation2], %s279
        %p281 = scmp.lt.s32.totalorder %s21, 1
        %s282 = scalar_select %p281, %s21, 1
        %s283 = smul.addr %s282, 8
        %s284 = scalar_lea.vmem %s0, %s283
        %p285 = scmp.lt.s32.totalorder %s21, 1
        %s286 = scalar_select %p285, %s21, 1
        %s287 = scalar_lea.vmem %s1, %s286
        %v289 = vld [vmem:[%s6] sm:$0xff]
        %v290 = vld [vmem:[%s6 + $0x8] sm:$0xff]
        %v291 = vld [vmem:[%s284] sm:$0xff]
        %v292 = vlaneseq
        %v293 = vand.u32 %v292, 127
        %294 = vset.pattern.permute.xlu0 0
        %295 = vperm.xlu0 %294, %v291
        %v296 = vpop.permute.xlu0 %295
        %vm297 = vcmp.eq.s32.totalorder %v293, %v296
        %v298 = vsel %vm297, 1, 0
        %v299 = vcvt.s32.f32 %v298
        %v300 = vld [vmem:[%s2] sm:$0xff]
        %v301 = vld [vmem:[%s2 + $0x8] sm:$0xff]
        %v302 = vld [vmem:[%s2 + $0x10] sm:$0xff]
        %v303 = vld [vmem:[%s2 + $0x18] sm:$0xff]
        %v304 = vld [vmem:[%s2 + $0x20] sm:$0xff]
        %v305 = vld [vmem:[%s2 + $0x28] sm:$0xff]
        %v306 = vld [vmem:[%s2 + $0x30] sm:$0xff]
        %v307 = vld [vmem:[%s2 + $0x38] sm:$0xff]
        %v308 = vld [vmem:[%s2 + $0x40] sm:$0xff]
        %v309 = vld [vmem:[%s2 + $0x48] sm:$0xff]
        %v310 = vld [vmem:[%s2 + $0x50] sm:$0xff]
        %v311 = vld [vmem:[%s2 + $0x58] sm:$0xff]
        %v312 = vld [vmem:[%s2 + $0x60] sm:$0xf]
        %v313 = vld [vmem:[%s3] sm:$0xff]
        %vm314 = vcmask 818176
        %v316 = vsel %vm314, %v299, 0
        %vm318 = vcmask 1043456
        %v320 = vsel %vm318, %v312, 0
        %322 = vmatprep.subr.mxu0 0.0
        %v323 = vand.u32 %v300, 4294901760
        %324 = vmatpush1.msra.mxu0 %v323
        %325 = vmatprep.subr.mxu0 0.0
        %v326 = vand.u32 %v301, 4294901760
        %327 = vmatpush1.msra.mxu0 %v326
        %328 = vmatprep.subr.mxu0 0.0
        %v329 = vand.u32 %v302, 4294901760
        %330 = vmatpush1.msra.mxu0 %v329
        %331 = vmatprep.subr.mxu0 0.0
        %v332 = vand.u32 %v303, 4294901760
        %333 = vmatpush1.msra.mxu0 %v332
        %334 = vmatprep.subr.mxu0 0.0
        %v335 = vand.u32 %v304, 4294901760
        %336 = vmatpush1.msra.mxu0 %v335
        %337 = vmatprep.subr.mxu0 0.0
        %v338 = vand.u32 %v305, 4294901760
        %339 = vmatpush1.msra.mxu0 %v338
        %340 = vmatprep.subr.mxu0 0.0
        %v341 = vand.u32 %v306, 4294901760
        %342 = vmatpush1.msra.mxu0 %v341
        %343 = vmatprep.subr.mxu0 0.0
        %v344 = vand.u32 %v307, 4294901760
        %345 = vmatpush1.msra.mxu0 %v344
        %346 = vmatprep.subr.mxu0 0.0
        %v347 = vand.u32 %v308, 4294901760
        %348 = vmatpush1.msra.mxu0 %v347
        %349 = vmatprep.subr.mxu0 0.0
        %v350 = vand.u32 %v309, 4294901760
        %351 = vmatpush1.msra.mxu0 %v350
        %352 = vmatprep.subr.mxu0 0.0
        %v353 = vand.u32 %v310, 4294901760
        %354 = vmatpush1.msra.mxu0 %v353
        %355 = vmatprep.subr.mxu0 0.0
        %v356 = vand.u32 %v311, 4294901760
        %357 = vmatpush1.msra.mxu0 %v356
        %358 = vmatprep.subr.mxu0 0.0
        %v359 = vand.u32 %v320, 4294901760
        %360 = vmatpush1.msra.mxu0 %v359
        %361 = vmatprep.subr.mxu0 0.0
        %362 = vmatpush1.msra.mxu0 0.0
        %363 = vmatprep.subr.mxu0 0.0
        %364 = vmatpush1.msra.mxu0 0.0
        %365 = vmatprep.subr.mxu0 0.0
        %366 = vmatpush1.msra.mxu0 0.0
        %367 = vmatprep.subr.mxu0 0.0
        %368 = vmatpush1.msra.mxu0 0.0
        %369 = vmatprep.subr.mxu0 0.0
        %370 = vmatpush1.msra.mxu0 0.0
        %371 = vmatprep.subr.mxu0 0.0
        %372 = vmatpush1.msra.mxu0 0.0
        %373 = vmatprep.subr.mxu0 0.0
        %374 = vmatpush1.msra.mxu0 0.0
        %375 = vmatprep.subr.mxu0 0.0
        %376 = vmatpush1.msra.mxu0 0.0
        %377 = vmatprep.subr.mxu0 0.0
        %378 = vmatpush1.msra.mxu0 0.0
        %379 = vmatprep.subr.mxu0 0.0
        %380 = vmatpush1.msra.mxu0 0.0
        %381 = vmatprep.subr.mxu0 0.0
        %382 = vmatpush1.msra.mxu0 0.0
        %383 = vmatprep.subr.mxu0 0.0
        %384 = vmatpush1.msra.mxu0 0.0
        %385 = vmatprep.subr.mxu0 0.0
        %386 = vmatpush1.msra.mxu0 0.0
        %387 = vmatprep.subr.mxu0 0.0
        %388 = vmatpush1.msra.mxu0 0.0
        %389 = vmatprep.subr.mxu0 0.0
        %390 = vmatpush1.msra.mxu0 0.0
        %391 = vmatprep.subr.mxu0 0.0
        %392 = vmatpush1.msra.mxu0 0.0
        %393 = vmatprep.subr.mxu0 0.0
        %394 = vmatpush1.msra.mxu0 0.0
        %395 = vmatprep.subr.mxu0 0.0
        %396 = vmatpush1.msra.mxu0 0.0
        %397 = vmatprep.subr.mxu0 0.0
        %398 = vmatpush1.msra.mxu0 0.0
        %399 = vmatprep.mubr.f32.mxu0 0.0
        %v400 = vand.u32 %v316, 4294901760
        %v401 = vsub.f32 %v316, %v400
        %v402 = vand.u32 %v401, 4294901760
        %v403 = vsub.f32 %v401, %v402
        %v404 = vand.u32 %v403, 4294901760
        %405 = vmatmul.mubr.f32.gmra.mrb[0].mxu0 %v404
        %v406 = vpop.f32.mrb[0].mxu0
        %v407 = vadd.f32 %v313, %v406
        %v408 = vpop.f32.mrb[0].mxu0
        %409 = vdwg.mxu0
        %410 = vmatprep.subr.mxu0 0.0
        %v411 = vand.u32 %v300, 4294901760
        %v412 = vsub.f32 %v300, %v411
        %v413 = vand.u32 %v412, 4294901760
        %v414 = vsub.f32 %v412, %v413
        %v415 = vand.u32 %v414, 4294901760
        %416 = vmatpush1.msra.mxu0 %v415
        %417 = vmatprep.subr.mxu0 0.0
        %v418 = vand.u32 %v301, 4294901760
        %v419 = vsub.f32 %v301, %v418
        %v420 = vand.u32 %v419, 4294901760
        %v421 = vsub.f32 %v419, %v420
        %v422 = vand.u32 %v421, 4294901760
        %423 = vmatpush1.msra.mxu0 %v422
        %424 = vmatprep.subr.mxu0 0.0
        %v425 = vand.u32 %v302, 4294901760
        %v426 = vsub.f32 %v302, %v425
        %v427 = vand.u32 %v426, 4294901760
        %v428 = vsub.f32 %v426, %v427
        %v429 = vand.u32 %v428, 4294901760
        %430 = vmatpush1.msra.mxu0 %v429
        %431 = vmatprep.subr.mxu0 0.0
        %v432 = vand.u32 %v303, 4294901760
        %v433 = vsub.f32 %v303, %v432
        %v434 = vand.u32 %v433, 4294901760
        %v435 = vsub.f32 %v433, %v434
        %v436 = vand.u32 %v435, 4294901760
        %437 = vmatpush1.msra.mxu0 %v436
        %438 = vmatprep.subr.mxu0 0.0
        %v439 = vand.u32 %v304, 4294901760
        %v440 = vsub.f32 %v304, %v439
        %v441 = vand.u32 %v440, 4294901760
        %v442 = vsub.f32 %v440, %v441
        %v443 = vand.u32 %v442, 4294901760
        %444 = vmatpush1.msra.mxu0 %v443
        %445 = vmatprep.subr.mxu0 0.0
        %v446 = vand.u32 %v305, 4294901760
        %v447 = vsub.f32 %v305, %v446
        %v448 = vand.u32 %v447, 4294901760
        %v449 = vsub.f32 %v447, %v448
        %v450 = vand.u32 %v449, 4294901760
        %451 = vmatpush1.msra.mxu0 %v450
        %452 = vmatprep.subr.mxu0 0.0
        %v453 = vand.u32 %v306, 4294901760
        %v454 = vsub.f32 %v306, %v453
        %v455 = vand.u32 %v454, 4294901760
        %v456 = vsub.f32 %v454, %v455
        %v457 = vand.u32 %v456, 4294901760
        %458 = vmatpush1.msra.mxu0 %v457
        %459 = vmatprep.subr.mxu0 0.0
        %v460 = vand.u32 %v307, 4294901760
        %v461 = vsub.f32 %v307, %v460
        %v462 = vand.u32 %v461, 4294901760
        %v463 = vsub.f32 %v461, %v462
        %v464 = vand.u32 %v463, 4294901760
        %465 = vmatpush1.msra.mxu0 %v464
        %466 = vmatprep.subr.mxu0 0.0
        %v467 = vand.u32 %v308, 4294901760
        %v468 = vsub.f32 %v308, %v467
        %v469 = vand.u32 %v468, 4294901760
        %v470 = vsub.f32 %v468, %v469
        %v471 = vand.u32 %v470, 4294901760
        %472 = vmatpush1.msra.mxu0 %v471
        %473 = vmatprep.subr.mxu0 0.0
        %v474 = vand.u32 %v309, 4294901760
        %v475 = vsub.f32 %v309, %v474
        %v476 = vand.u32 %v475, 4294901760
        %v477 = vsub.f32 %v475, %v476
        %v478 = vand.u32 %v477, 4294901760
        %479 = vmatpush1.msra.mxu0 %v478
        %480 = vmatprep.subr.mxu0 0.0
        %v481 = vand.u32 %v310, 4294901760
        %v482 = vsub.f32 %v310, %v481
        %v483 = vand.u32 %v482, 4294901760
        %v484 = vsub.f32 %v482, %v483
        %v485 = vand.u32 %v484, 4294901760
        %486 = vmatpush1.msra.mxu0 %v485
        %487 = vmatprep.subr.mxu0 0.0
        %v488 = vand.u32 %v311, 4294901760
        %v489 = vsub.f32 %v311, %v488
        %v490 = vand.u32 %v489, 4294901760
        %v491 = vsub.f32 %v489, %v490
        %v492 = vand.u32 %v491, 4294901760
        %493 = vmatpush1.msra.mxu0 %v492
        %494 = vmatprep.subr.mxu0 0.0
        %v495 = vand.u32 %v320, 4294901760
        %v496 = vsub.f32 %v320, %v495
        %v497 = vand.u32 %v496, 4294901760
        %v498 = vsub.f32 %v496, %v497
        %v499 = vand.u32 %v498, 4294901760
        %500 = vmatpush1.msra.mxu0 %v499
        %501 = vmatprep.subr.mxu0 0.0
        %502 = vmatpush1.msra.mxu0 0.0
        %503 = vmatprep.subr.mxu0 0.0
        %504 = vmatpush1.msra.mxu0 0.0
        %505 = vmatprep.subr.mxu0 0.0
        %506 = vmatpush1.msra.mxu0 0.0
        %507 = vmatprep.subr.mxu0 0.0
        %508 = vmatpush1.msra.mxu0 0.0
        %509 = vmatprep.subr.mxu0 0.0
        %510 = vmatpush1.msra.mxu0 0.0
        %511 = vmatprep.subr.mxu0 0.0
        %512 = vmatpush1.msra.mxu0 0.0
        %513 = vmatprep.subr.mxu0 0.0
        %514 = vmatpush1.msra.mxu0 0.0
        %515 = vmatprep.subr.mxu0 0.0
        %516 = vmatpush1.msra.mxu0 0.0
        %517 = vmatprep.subr.mxu0 0.0
        %518 = vmatpush1.msra.mxu0 0.0
        %519 = vmatprep.subr.mxu0 0.0
        %520 = vmatpush1.msra.mxu0 0.0
        %521 = vmatprep.subr.mxu0 0.0
        %522 = vmatpush1.msra.mxu0 0.0
        %523 = vmatprep.subr.mxu0 0.0
        %524 = vmatpush1.msra.mxu0 0.0
        %525 = vmatprep.subr.mxu0 0.0
        %526 = vmatpush1.msra.mxu0 0.0
        %527 = vmatprep.subr.mxu0 0.0
        %528 = vmatpush1.msra.mxu0 0.0
        %529 = vmatprep.subr.mxu0 0.0
        %530 = vmatpush1.msra.mxu0 0.0
        %531 = vmatprep.subr.mxu0 0.0
        %532 = vmatpush1.msra.mxu0 0.0
        %533 = vmatprep.subr.mxu0 0.0
        %534 = vmatpush1.msra.mxu0 0.0
        %535 = vmatprep.subr.mxu0 0.0
        %536 = vmatpush1.msra.mxu0 0.0
        %537 = vmatprep.subr.mxu0 0.0
        %538 = vmatpush1.msra.mxu0 0.0
        %539 = vmatprep.mubr.f32.mxu0 0.0
        %v540 = vand.u32 %v316, 4294901760
        %541 = vmatmul.mubr.f32.gmra.mrb[0].mxu0 %v540
        %v542 = vpop.f32.mrb[0].mxu0
        %v543 = vadd.f32 %v407, %v542
        %v544 = vpop.f32.mrb[0].mxu0
        %545 = vdwg.mxu0
        %546 = vmatprep.subr.mxu0 0.0
        %v547 = vand.u32 %v300, 4294901760
        %v548 = vsub.f32 %v300, %v547
        %549 = vmatpush1.msra.mxu0 %v548
        %550 = vmatprep.subr.mxu0 0.0
        %v551 = vand.u32 %v301, 4294901760
        %v552 = vsub.f32 %v301, %v551
        %553 = vmatpush1.msra.mxu0 %v552
        %554 = vmatprep.subr.mxu0 0.0
        %v555 = vand.u32 %v302, 4294901760
        %v556 = vsub.f32 %v302, %v555
        %557 = vmatpush1.msra.mxu0 %v556
        %558 = vmatprep.subr.mxu0 0.0
        %v559 = vand.u32 %v303, 4294901760
        %v560 = vsub.f32 %v303, %v559
        %561 = vmatpush1.msra.mxu0 %v560
        %562 = vmatprep.subr.mxu0 0.0
        %v563 = vand.u32 %v304, 4294901760
        %v564 = vsub.f32 %v304, %v563
        %565 = vmatpush1.msra.mxu0 %v564
        %566 = vmatprep.subr.mxu0 0.0
        %v567 = vand.u32 %v305, 4294901760
        %v568 = vsub.f32 %v305, %v567
        %569 = vmatpush1.msra.mxu0 %v568
        %570 = vmatprep.subr.mxu0 0.0
        %v571 = vand.u32 %v306, 4294901760
        %v572 = vsub.f32 %v306, %v571
        %573 = vmatpush1.msra.mxu0 %v572
        %574 = vmatprep.subr.mxu0 0.0
        %v575 = vand.u32 %v307, 4294901760
        %v576 = vsub.f32 %v307, %v575
        %577 = vmatpush1.msra.mxu0 %v576
        %578 = vmatprep.subr.mxu0 0.0
        %v579 = vand.u32 %v308, 4294901760
        %v580 = vsub.f32 %v308, %v579
        %581 = vmatpush1.msra.mxu0 %v580
        %582 = vmatprep.subr.mxu0 0.0
        %v583 = vand.u32 %v309, 4294901760
        %v584 = vsub.f32 %v309, %v583
        %585 = vmatpush1.msra.mxu0 %v584
        %586 = vmatprep.subr.mxu0 0.0
        %v587 = vand.u32 %v310, 4294901760
        %v588 = vsub.f32 %v310, %v587
        %589 = vmatpush1.msra.mxu0 %v588
        %590 = vmatprep.subr.mxu0 0.0
        %v591 = vand.u32 %v311, 4294901760
        %v592 = vsub.f32 %v311, %v591
        %593 = vmatpush1.msra.mxu0 %v592
        %594 = vmatprep.subr.mxu0 0.0
        %v595 = vand.u32 %v320, 4294901760
        %v596 = vsub.f32 %v320, %v595
        %597 = vmatpush1.msra.mxu0 %v596
        %598 = vmatprep.subr.mxu0 0.0
        %599 = vmatpush1.msra.mxu0 0.0
        %600 = vmatprep.subr.mxu0 0.0
        %601 = vmatpush1.msra.mxu0 0.0
        %602 = vmatprep.subr.mxu0 0.0
        %603 = vmatpush1.msra.mxu0 0.0
        %604 = vmatprep.subr.mxu0 0.0
        %605 = vmatpush1.msra.mxu0 0.0
        %606 = vmatprep.subr.mxu0 0.0
        %607 = vmatpush1.msra.mxu0 0.0
        %608 = vmatprep.subr.mxu0 0.0
        %609 = vmatpush1.msra.mxu0 0.0
        %610 = vmatprep.subr.mxu0 0.0
        %611 = vmatpush1.msra.mxu0 0.0
        %612 = vmatprep.subr.mxu0 0.0
        %613 = vmatpush1.msra.mxu0 0.0
        %614 = vmatprep.subr.mxu0 0.0
        %615 = vmatpush1.msra.mxu0 0.0
        %616 = vmatprep.subr.mxu0 0.0
        %617 = vmatpush1.msra.mxu0 0.0
        %618 = vmatprep.subr.mxu0 0.0
        %619 = vmatpush1.msra.mxu0 0.0
        %620 = vmatprep.subr.mxu0 0.0
        %621 = vmatpush1.msra.mxu0 0.0
        %622 = vmatprep.subr.mxu0 0.0
        %623 = vmatpush1.msra.mxu0 0.0
        %624 = vmatprep.subr.mxu0 0.0
        %625 = vmatpush1.msra.mxu0 0.0
        %626 = vmatprep.subr.mxu0 0.0
        %627 = vmatpush1.msra.mxu0 0.0
        %628 = vmatprep.subr.mxu0 0.0
        %629 = vmatpush1.msra.mxu0 0.0
        %630 = vmatprep.subr.mxu0 0.0
        %631 = vmatpush1.msra.mxu0 0.0
        %632 = vmatprep.subr.mxu0 0.0
        %633 = vmatpush1.msra.mxu0 0.0
        %634 = vmatprep.subr.mxu0 0.0
        %635 = vmatpush1.msra.mxu0 0.0
        %636 = vmatprep.mubr.f32.mxu0 0.0
        %v637 = vand.u32 %v316, 4294901760
        %v638 = vsub.f32 %v316, %v637
        %639 = vmatmul.mubr.f32.gmra.mrb[0].mxu0 %v638
        %v640 = vpop.f32.mrb[0].mxu0
        %v641 = vadd.f32 %v543, %v640
        %v642 = vpop.f32.mrb[0].mxu0
        %643 = vdwg.mxu0
        %644 = vmatprep.subr.mxu0 0.0
        %v645 = vand.u32 %v300, 4294901760
        %646 = vmatpush1.msra.mxu0 %v645
        %647 = vmatprep.subr.mxu0 0.0
        %v648 = vand.u32 %v301, 4294901760
        %649 = vmatpush1.msra.mxu0 %v648
        %650 = vmatprep.subr.mxu0 0.0
        %v651 = vand.u32 %v302, 4294901760
        %652 = vmatpush1.msra.mxu0 %v651
        %653 = vmatprep.subr.mxu0 0.0
        %v654 = vand.u32 %v303, 4294901760
        %655 = vmatpush1.msra.mxu0 %v654
        %656 = vmatprep.subr.mxu0 0.0
        %v657 = vand.u32 %v304, 4294901760
        %658 = vmatpush1.msra.mxu0 %v657
        %659 = vmatprep.subr.mxu0 0.0
        %v660 = vand.u32 %v305, 4294901760
        %661 = vmatpush1.msra.mxu0 %v660
        %662 = vmatprep.subr.mxu0 0.0
        %v663 = vand.u32 %v306, 4294901760
        %664 = vmatpush1.msra.mxu0 %v663
        %665 = vmatprep.subr.mxu0 0.0
        %v666 = vand.u32 %v307, 4294901760
        %667 = vmatpush1.msra.mxu0 %v666
        %668 = vmatprep.subr.mxu0 0.0
        %v669 = vand.u32 %v308, 4294901760
        %670 = vmatpush1.msra.mxu0 %v669
        %671 = vmatprep.subr.mxu0 0.0
        %v672 = vand.u32 %v309, 4294901760
        %673 = vmatpush1.msra.mxu0 %v672
        %674 = vmatprep.subr.mxu0 0.0
        %v675 = vand.u32 %v310, 4294901760
        %676 = vmatpush1.msra.mxu0 %v675
        %677 = vmatprep.subr.mxu0 0.0
        %v678 = vand.u32 %v311, 4294901760
        %679 = vmatpush1.msra.mxu0 %v678
        %680 = vmatprep.subr.mxu0 0.0
        %v681 = vand.u32 %v320, 4294901760
        %682 = vmatpush1.msra.mxu0 %v681
        %683 = vmatprep.subr.mxu0 0.0
        %684 = vmatpush1.msra.mxu0 0.0
        %685 = vmatprep.subr.mxu0 0.0
        %686 = vmatpush1.msra.mxu0 0.0
        %687 = vmatprep.subr.mxu0 0.0
        %688 = vmatpush1.msra.mxu0 0.0
        %689 = vmatprep.subr.mxu0 0.0
        %690 = vmatpush1.msra.mxu0 0.0
        %691 = vmatprep.subr.mxu0 0.0
        %692 = vmatpush1.msra.mxu0 0.0
        %693 = vmatprep.subr.mxu0 0.0
        %694 = vmatpush1.msra.mxu0 0.0
        %695 = vmatprep.subr.mxu0 0.0
        %696 = vmatpush1.msra.mxu0 0.0
        %697 = vmatprep.subr.mxu0 0.0
        %698 = vmatpush1.msra.mxu0 0.0
        %699 = vmatprep.subr.mxu0 0.0
        %700 = vmatpush1.msra.mxu0 0.0
        %701 = vmatprep.subr.mxu0 0.0
        %702 = vmatpush1.msra.mxu0 0.0
        %703 = vmatprep.subr.mxu0 0.0
        %704 = vmatpush1.msra.mxu0 0.0
        %705 = vmatprep.subr.mxu0 0.0
        %706 = vmatpush1.msra.mxu0 0.0
        %707 = vmatprep.subr.mxu0 0.0
        %708 = vmatpush1.msra.mxu0 0.0
        %709 = vmatprep.subr.mxu0 0.0
        %710 = vmatpush1.msra.mxu0 0.0
        %711 = vmatprep.subr.mxu0 0.0
        %712 = vmatpush1.msra.mxu0 0.0
        %713 = vmatprep.subr.mxu0 0.0
        %714 = vmatpush1.msra.mxu0 0.0
        %715 = vmatprep.subr.mxu0 0.0
        %716 = vmatpush1.msra.mxu0 0.0
        %717 = vmatprep.subr.mxu0 0.0
        %718 = vmatpush1.msra.mxu0 0.0
        %719 = vmatprep.subr.mxu0 0.0
        %720 = vmatpush1.msra.mxu0 0.0
        %721 = vmatprep.mubr.f32.mxu0 0.0
        %v722 = vand.u32 %v316, 4294901760
        %v723 = vsub.f32 %v316, %v722
        %v724 = vand.u32 %v723, 4294901760
        %725 = vmatmul.mubr.f32.gmra.mrb[0].mxu0 %v724
        %v726 = vpop.f32.mrb[0].mxu0
        %v727 = vadd.f32 %v641, %v726
        %v728 = vpop.f32.mrb[0].mxu0
        %729 = vdwg.mxu0
        %730 = vmatprep.subr.mxu0 0.0
        %v731 = vand.u32 %v300, 4294901760
        %v732 = vsub.f32 %v300, %v731
        %v733 = vand.u32 %v732, 4294901760
        %734 = vmatpush1.msra.mxu0 %v733
        %735 = vmatprep.subr.mxu0 0.0
        %v736 = vand.u32 %v301, 4294901760
        %v737 = vsub.f32 %v301, %v736
        %v738 = vand.u32 %v737, 4294901760
        %739 = vmatpush1.msra.mxu0 %v738
        %740 = vmatprep.subr.mxu0 0.0
        %v741 = vand.u32 %v302, 4294901760
        %v742 = vsub.f32 %v302, %v741
        %v743 = vand.u32 %v742, 4294901760
        %744 = vmatpush1.msra.mxu0 %v743
        %745 = vmatprep.subr.mxu0 0.0
        %v746 = vand.u32 %v303, 4294901760
        %v747 = vsub.f32 %v303, %v746
        %v748 = vand.u32 %v747, 4294901760
        %749 = vmatpush1.msra.mxu0 %v748
        %750 = vmatprep.subr.mxu0 0.0
        %v751 = vand.u32 %v304, 4294901760
        %v752 = vsub.f32 %v304, %v751
        %v753 = vand.u32 %v752, 4294901760
        %754 = vmatpush1.msra.mxu0 %v753
        %755 = vmatprep.subr.mxu0 0.0
        %v756 = vand.u32 %v305, 4294901760
        %v757 = vsub.f32 %v305, %v756
        %v758 = vand.u32 %v757, 4294901760
        %759 = vmatpush1.msra.mxu0 %v758
        %760 = vmatprep.subr.mxu0 0.0
        %v761 = vand.u32 %v306, 4294901760
        %v762 = vsub.f32 %v306, %v761
        %v763 = vand.u32 %v762, 4294901760
        %764 = vmatpush1.msra.mxu0 %v763
        %765 = vmatprep.subr.mxu0 0.0
        %v766 = vand.u32 %v307, 4294901760
        %v767 = vsub.f32 %v307, %v766
        %v768 = vand.u32 %v767, 4294901760
        %769 = vmatpush1.msra.mxu0 %v768
        %770 = vmatprep.subr.mxu0 0.0
        %v771 = vand.u32 %v308, 4294901760
        %v772 = vsub.f32 %v308, %v771
        %v773 = vand.u32 %v772, 4294901760
        %774 = vmatpush1.msra.mxu0 %v773
        %775 = vmatprep.subr.mxu0 0.0
        %v776 = vand.u32 %v309, 4294901760
        %v777 = vsub.f32 %v309, %v776
        %v778 = vand.u32 %v777, 4294901760
        %779 = vmatpush1.msra.mxu0 %v778
        %780 = vmatprep.subr.mxu0 0.0
        %v781 = vand.u32 %v310, 4294901760
        %v782 = vsub.f32 %v310, %v781
        %v783 = vand.u32 %v782, 4294901760
        %784 = vmatpush1.msra.mxu0 %v783
        %785 = vmatprep.subr.mxu0 0.0
        %v786 = vand.u32 %v311, 4294901760
        %v787 = vsub.f32 %v311, %v786
        %v788 = vand.u32 %v787, 4294901760
        %789 = vmatpush1.msra.mxu0 %v788
        %790 = vmatprep.subr.mxu0 0.0
        %v791 = vand.u32 %v320, 4294901760
        %v792 = vsub.f32 %v320, %v791
        %v793 = vand.u32 %v792, 4294901760
        %794 = vmatpush1.msra.mxu0 %v793
        %795 = vmatprep.subr.mxu0 0.0
        %796 = vmatpush1.msra.mxu0 0.0
        %797 = vmatprep.subr.mxu0 0.0
        %798 = vmatpush1.msra.mxu0 0.0
        %799 = vmatprep.subr.mxu0 0.0
        %800 = vmatpush1.msra.mxu0 0.0
        %801 = vmatprep.subr.mxu0 0.0
        %802 = vmatpush1.msra.mxu0 0.0
        %803 = vmatprep.subr.mxu0 0.0
        %804 = vmatpush1.msra.mxu0 0.0
        %805 = vmatprep.subr.mxu0 0.0
        %806 = vmatpush1.msra.mxu0 0.0
        %807 = vmatprep.subr.mxu0 0.0
        %808 = vmatpush1.msra.mxu0 0.0
        %809 = vmatprep.subr.mxu0 0.0
        %810 = vmatpush1.msra.mxu0 0.0
        %811 = vmatprep.subr.mxu0 0.0
        %812 = vmatpush1.msra.mxu0 0.0
        %813 = vmatprep.subr.mxu0 0.0
        %814 = vmatpush1.msra.mxu0 0.0
        %815 = vmatprep.subr.mxu0 0.0
        %816 = vmatpush1.msra.mxu0 0.0
        %817 = vmatprep.subr.mxu0 0.0
        %818 = vmatpush1.msra.mxu0 0.0
        %819 = vmatprep.subr.mxu0 0.0
        %820 = vmatpush1.msra.mxu0 0.0
        %821 = vmatprep.subr.mxu0 0.0
        %822 = vmatpush1.msra.mxu0 0.0
        %823 = vmatprep.subr.mxu0 0.0
        %824 = vmatpush1.msra.mxu0 0.0
        %825 = vmatprep.subr.mxu0 0.0
        %826 = vmatpush1.msra.mxu0 0.0
        %827 = vmatprep.subr.mxu0 0.0
        %828 = vmatpush1.msra.mxu0 0.0
        %829 = vmatprep.subr.mxu0 0.0
        %830 = vmatpush1.msra.mxu0 0.0
        %831 = vmatprep.subr.mxu0 0.0
        %832 = vmatpush1.msra.mxu0 0.0
        %833 = vmatprep.mubr.f32.mxu0 0.0
        %v834 = vand.u32 %v316, 4294901760
        %835 = vmatmul.mubr.f32.gmra.mrb[0].mxu0 %v834
        %v836 = vpop.f32.mrb[0].mxu0
        %v837 = vadd.f32 %v727, %v836
        %v838 = vpop.f32.mrb[0].mxu0
        %839 = vdwg.mxu0
        %840 = vmatprep.subr.mxu0 0.0
        %v841 = vand.u32 %v300, 4294901760
        %842 = vmatpush1.msra.mxu0 %v841
        %843 = vmatprep.subr.mxu0 0.0
        %v844 = vand.u32 %v301, 4294901760
        %845 = vmatpush1.msra.mxu0 %v844
        %846 = vmatprep.subr.mxu0 0.0
        %v847 = vand.u32 %v302, 4294901760
        %848 = vmatpush1.msra.mxu0 %v847
        %849 = vmatprep.subr.mxu0 0.0
        %v850 = vand.u32 %v303, 4294901760
        %851 = vmatpush1.msra.mxu0 %v850
        %852 = vmatprep.subr.mxu0 0.0
        %v853 = vand.u32 %v304, 4294901760
        %854 = vmatpush1.msra.mxu0 %v853
        %855 = vmatprep.subr.mxu0 0.0
        %v856 = vand.u32 %v305, 4294901760
        %857 = vmatpush1.msra.mxu0 %v856
        %858 = vmatprep.subr.mxu0 0.0
        %v859 = vand.u32 %v306, 4294901760
        %860 = vmatpush1.msra.mxu0 %v859
        %861 = vmatprep.subr.mxu0 0.0
        %v862 = vand.u32 %v307, 4294901760
        %863 = vmatpush1.msra.mxu0 %v862
        %864 = vmatprep.subr.mxu0 0.0
        %v865 = vand.u32 %v308, 4294901760
        %866 = vmatpush1.msra.mxu0 %v865
        %867 = vmatprep.subr.mxu0 0.0
        %v868 = vand.u32 %v309, 4294901760
        %869 = vmatpush1.msra.mxu0 %v868
        %870 = vmatprep.subr.mxu0 0.0
        %v871 = vand.u32 %v310, 4294901760
        %872 = vmatpush1.msra.mxu0 %v871
        %873 = vmatprep.subr.mxu0 0.0
        %v874 = vand.u32 %v311, 4294901760
        %875 = vmatpush1.msra.mxu0 %v874
        %876 = vmatprep.subr.mxu0 0.0
        %v877 = vand.u32 %v320, 4294901760
        %878 = vmatpush1.msra.mxu0 %v877
        %879 = vmatprep.subr.mxu0 0.0
        %880 = vmatpush1.msra.mxu0 0.0
        %881 = vmatprep.subr.mxu0 0.0
        %882 = vmatpush1.msra.mxu0 0.0
        %883 = vmatprep.subr.mxu0 0.0
        %884 = vmatpush1.msra.mxu0 0.0
        %885 = vmatprep.subr.mxu0 0.0
        %886 = vmatpush1.msra.mxu0 0.0
        %887 = vmatprep.subr.mxu0 0.0
        %888 = vmatpush1.msra.mxu0 0.0
        %889 = vmatprep.subr.mxu0 0.0
        %890 = vmatpush1.msra.mxu0 0.0
        %891 = vmatprep.subr.mxu0 0.0
        %892 = vmatpush1.msra.mxu0 0.0
        %893 = vmatprep.subr.mxu0 0.0
        %894 = vmatpush1.msra.mxu0 0.0
        %895 = vmatprep.subr.mxu0 0.0
        %896 = vmatpush1.msra.mxu0 0.0
        %897 = vmatprep.subr.mxu0 0.0
        %898 = vmatpush1.msra.mxu0 0.0
        %899 = vmatprep.subr.mxu0 0.0
        %900 = vmatpush1.msra.mxu0 0.0
        %901 = vmatprep.subr.mxu0 0.0
        %902 = vmatpush1.msra.mxu0 0.0
        %903 = vmatprep.subr.mxu0 0.0
        %904 = vmatpush1.msra.mxu0 0.0
        %905 = vmatprep.subr.mxu0 0.0
        %906 = vmatpush1.msra.mxu0 0.0
        %907 = vmatprep.subr.mxu0 0.0
        %908 = vmatpush1.msra.mxu0 0.0
        %909 = vmatprep.subr.mxu0 0.0
        %910 = vmatpush1.msra.mxu0 0.0
        %911 = vmatprep.subr.mxu0 0.0
        %912 = vmatpush1.msra.mxu0 0.0
        %913 = vmatprep.subr.mxu0 0.0
        %914 = vmatpush1.msra.mxu0 0.0
        %915 = vmatprep.subr.mxu0 0.0
        %916 = vmatpush1.msra.mxu0 0.0
        %917 = vmatprep.mubr.f32.mxu0 0.0
        %v918 = vand.u32 %v316, 4294901760
        %919 = vmatmul.mubr.f32.gmra.mrb[0].mxu0 %v918
        %v920 = vpop.f32.mrb[0].mxu0
        %v921 = vadd.f32 %v837, %v920
        %v922 = vpop.f32.mrb[0].mxu0
        %923 = vdwg.mxu0
        %vm924 = vcmask 261120
        %v925 = vsel %vm924, %v921, 0.0
        %926 = vadd.xlane.f32.xlu0 %v925
        %v927 = vpop.xlane.xlu0 %926
        %v928 = vrcp.pop 32.0
        %v929 = vmul.f32 %v927, %v928
        %v930 = vsub.f32 %v921, %v929
        %v931 = vmul.f32 %v930, %v930
        %v932 = vsel %vm924, %v931, 0.0
        %933 = vadd.xlane.f32.xlu0 %v932
        %v934 = vpop.xlane.xlu0 %933
        %v935 = vmul.f32 %v934, %v928
        %v936 = vadd.f32 %v935, 1e-05
        %v937 = vrsqrt.pop %v936
        %v938 = vmul.f32 %v930, %v937
        %v939 = vlaneseq
        %v940 = vshrl.u32 %v939, 7
        %v941 = vsub.s32 0, %v940
        %v942 = vrot.slane %v289, %v941
        %v943 = vmul.f32 %v938, %v942
        %v944 = vlaneseq
        %v945 = vshrl.u32 %v944, 7
        %v946 = vsub.s32 1, %v945
        %v947 = vrot.slane %v289, %v946
        %v948 = vadd.f32 %v943, %v947
        %v949 = vld [vmem:[%s4] sm:$0xf]
        %v950 = vld [vmem:[%s4 + $0x4] sm:$0xf]
        %v951 = vld [vmem:[%s4 + $0x8] sm:$0xf]
        %v952 = vld [vmem:[%s4 + $0xc] sm:$0xf]
        %v953 = vld [vmem:[%s4 + $0x10] sm:$0xf]
        %v954 = vld [vmem:[%s4 + $0x14] sm:$0xf]
        %v955 = vpack.c.bf16 %v948, %v948
        %v956 = vlaneseq
        %v957 = vshrl.u32 %v956, 7
        %v958 = vsub.s32 1, %v957
        %v959 = vrot.slane %v290, %v958
        %v964 = vunpack.c.l.b16 %v949
        %v965 = vunpack.c.l.b16 %v950
        %v966 = vunpack.c.l.b16 %v951
        %v967 = vunpack.c.l.b16 %v952
        %v968 = vpack.c.b16 %v965, %v964
        %v969 = vpack.c.b16 %v967, %v966
        %v973 = vsel %vm924, %v955, 0
        %975 = vmatprep.subr.bf16.mxu0 0
        %976 = vmatpush1.bf16.msra.mxu0 %v968
        %977 = vmatprep.subr.bf16.mxu0 0
        %978 = vmatpush1.bf16.msra.mxu0 %v969
        %979 = vmatprep.subr.bf16.mxu0 0
        %980 = vmatpush1.bf16.msra.mxu0 0
        %981 = vmatprep.subr.bf16.mxu0 0
        %982 = vmatpush1.bf16.msra.mxu0 0
        %983 = vmatprep.subr.bf16.mxu0 0
        %984 = vmatpush1.bf16.msra.mxu0 0
        %985 = vmatprep.subr.bf16.mxu0 0
        %986 = vmatpush1.bf16.msra.mxu0 0
        %987 = vmatprep.subr.bf16.mxu0 0
        %988 = vmatpush1.bf16.msra.mxu0 0
        %989 = vmatprep.subr.bf16.mxu0 0
        %990 = vmatpush1.bf16.msra.mxu0 0
        %991 = vmatprep.subr.bf16.mxu0 0
        %992 = vmatpush1.bf16.msra.mxu0 0
        %993 = vmatprep.subr.bf16.mxu0 0
        %994 = vmatpush1.bf16.msra.mxu0 0
        %995 = vmatprep.subr.bf16.mxu0 0
        %996 = vmatpush1.bf16.msra.mxu0 0
        %997 = vmatprep.subr.bf16.mxu0 0
        %998 = vmatpush1.bf16.msra.mxu0 0
        %999 = vmatprep.subr.bf16.mxu0 0
        %1000 = vmatpush1.bf16.msra.mxu0 0
        %1001 = vmatprep.subr.bf16.mxu0 0
        %1002 = vmatpush1.bf16.msra.mxu0 0
        %1003 = vmatprep.subr.bf16.mxu0 0
        %1004 = vmatpush1.bf16.msra.mxu0 0
        %1005 = vmatprep.subr.bf16.mxu0 0
        %1006 = vmatpush1.bf16.msra.mxu0 0
        %1007 = vmatprep.mubr.bf16.mxu0 0
        %1008 = vmatmul.mubr.bf16.gmra.mrb[0].mxu0 %v973
        %v1009 = vpop.f32.mrb[0].mxu0
        %v1010 = vadd.f32 %v959, %v1009
        %v1011 = vpop.f32.mrb[0].mxu0
        %v1012 = vpop.f32.mrb[0].mxu0
        %v1013 = vpop.f32.mrb[0].mxu0
        %1014 = vdwg.mxu0
        %v1017 = vunpack.c.l.b16 %v953
        %v1018 = vunpack.c.l.b16 %v954
        %v1019 = vpack.c.b16 %v1018, %v1017
        %vm1021 = vcmask 130048
        %v1023 = vsel %vm1021, 0, 0
        %1025 = vmatprep.subr.bf16.mxu0 0
        %1026 = vmatpush1.bf16.msra.mxu0 %v1019
        %1027 = vmatprep.subr.bf16.mxu0 0
        %1028 = vmatpush1.bf16.msra.mxu0 0
        %1029 = vmatprep.subr.bf16.mxu0 0
        %1030 = vmatpush1.bf16.msra.mxu0 0
        %1031 = vmatprep.subr.bf16.mxu0 0
        %1032 = vmatpush1.bf16.msra.mxu0 0
        %1033 = vmatprep.subr.bf16.mxu0 0
        %1034 = vmatpush1.bf16.msra.mxu0 0
        %1035 = vmatprep.subr.bf16.mxu0 0
        %1036 = vmatpush1.bf16.msra.mxu0 0
        %1037 = vmatprep.subr.bf16.mxu0 0
        %1038 = vmatpush1.bf16.msra.mxu0 0
        %1039 = vmatprep.subr.bf16.mxu0 0
        %1040 = vmatpush1.bf16.msra.mxu0 0
        %1041 = vmatprep.subr.bf16.mxu0 0
        %1042 = vmatpush1.bf16.msra.mxu0 0
        %1043 = vmatprep.subr.bf16.mxu0 0
        %1044 = vmatpush1.bf16.msra.mxu0 0
        %1045 = vmatprep.subr.bf16.mxu0 0
        %1046 = vmatpush1.bf16.msra.mxu0 0
        %1047 = vmatprep.subr.bf16.mxu0 0
        %1048 = vmatpush1.bf16.msra.mxu0 0
        %1049 = vmatprep.subr.bf16.mxu0 0
        %1050 = vmatpush1.bf16.msra.mxu0 0
        %1051 = vmatprep.subr.bf16.mxu0 0
        %1052 = vmatpush1.bf16.msra.mxu0 0
        %1053 = vmatprep.subr.bf16.mxu0 0
        %1054 = vmatpush1.bf16.msra.mxu0 0
        %1055 = vmatprep.subr.bf16.mxu0 0
        %1056 = vmatpush1.bf16.msra.mxu0 0
        %1057 = vmatprep.mubr.bf16.mxu0 0
        %1058 = vmatmul.mubr.bf16.gmra.mrb[0].mxu0 %v1023
        %v1059 = vpop.f32.mrb[0].mxu0
        %v1060 = vadd.f32 0.0, %v1059
        %v1061 = vpop.f32.mrb[0].mxu0
        %v1062 = vpop.f32.mrb[0].mxu0
        %v1063 = vpop.f32.mrb[0].mxu0
        %1064 = vdwg.mxu0
        %v1065 = vadd.f32 %v1010, %v1060
        %v1067 = vrot.slane %v1060, 2
        %v1069 = vadd.f32 %v1010, %v1067
        %v1071 = vrot.slane %v1069, 6
        %1072 = vrot.lane.b32.xlu0 %v1071, 64
        %v1073 = vpop.permute.xlu0 %1072
        %vm1075 = vcmask 1040384
        %v1076 = vsel %vm1075, %v1065, %v1073
        %v1077 = vxor.u32 %v1076, 2147483648
        %v1078 = vmul.f32 %v1077, 1.442695
        %v1079 = vpow.pop %v1078
        %v1080 = vadd.f32 %v1079, 1.0
        %v1081 = vrcp.pop %v1080
        %v1082 = vmul.f32 1.0, %v1081
        %v1083 = vtanh.pop %v1076
        %v1084 = vmul.f32 %v1082, 0.0
        %1086 = vrot.lane.b32.xlu0 %v1083, 80
        %v1087 = vpop.permute.xlu0 %1086
        %v1089 = vmul.f32 %v1082, %v1087
        %1091 = vrot.lane.b32.xlu0 %v1089, 16
        %v1092 = vpop.permute.xlu0 %1091
        %v1094 = vadd.f32 %v1084, %v1092
        %v1095 = vtanh.pop %v1094
        %1097 = vrot.lane.b32.xlu0 %v1095, 16
        %v1098 = vpop.permute.xlu0 %1097
        %v1100 = vmul.f32 %v1082, %v1098
        %v1101 = vpack.c.bf16 %v1100, %v1100
        %1103 = vrot.lane.b32.xlu0 %v1101, 96
        %v1104 = vpop.permute.xlu0 %1103
        %v1106 = vsel %vm1021, %v1104, 0
        %1108 = vmatprep.subr.bf16.mxu0 0
        %1109 = vmatpush1.bf16.msra.mxu0 %v1019
        %1110 = vmatprep.subr.bf16.mxu0 0
        %1111 = vmatpush1.bf16.msra.mxu0 0
        %1112 = vmatprep.subr.bf16.mxu0 0
        %1113 = vmatpush1.bf16.msra.mxu0 0
        %1114 = vmatprep.subr.bf16.mxu0 0
        %1115 = vmatpush1.bf16.msra.mxu0 0
        %1116 = vmatprep.subr.bf16.mxu0 0
        %1117 = vmatpush1.bf16.msra.mxu0 0
        %1118 = vmatprep.subr.bf16.mxu0 0
        %1119 = vmatpush1.bf16.msra.mxu0 0
        %1120 = vmatprep.subr.bf16.mxu0 0
        %1121 = vmatpush1.bf16.msra.mxu0 0
        %1122 = vmatprep.subr.bf16.mxu0 0
        %1123 = vmatpush1.bf16.msra.mxu0 0
        %1124 = vmatprep.subr.bf16.mxu0 0
        %1125 = vmatpush1.bf16.msra.mxu0 0
        %1126 = vmatprep.subr.bf16.mxu0 0
        %1127 = vmatpush1.bf16.msra.mxu0 0
        %1128 = vmatprep.subr.bf16.mxu0 0
        %1129 = vmatpush1.bf16.msra.mxu0 0
        %1130 = vmatprep.subr.bf16.mxu0 0
        %1131 = vmatpush1.bf16.msra.mxu0 0
        %1132 = vmatprep.subr.bf16.mxu0 0
        %1133 = vmatpush1.bf16.msra.mxu0 0
        %1134 = vmatprep.subr.bf16.mxu0 0
        %1135 = vmatpush1.bf16.msra.mxu0 0
        %1136 = vmatprep.subr.bf16.mxu0 0
        %1137 = vmatpush1.bf16.msra.mxu0 0
        %1138 = vmatprep.subr.bf16.mxu0 0
        %1139 = vmatpush1.bf16.msra.mxu0 0
        %1140 = vmatprep.mubr.bf16.mxu0 0
        %1141 = vmatmul.mubr.bf16.gmra.mrb[0].mxu0 %v1106
        %v1142 = vpop.f32.mrb[0].mxu0
        %v1143 = vadd.f32 0.0, %v1142
        %v1144 = vpop.f32.mrb[0].mxu0
        %v1145 = vpop.f32.mrb[0].mxu0
        %v1146 = vpop.f32.mrb[0].mxu0
        %1147 = vdwg.mxu0
        %v1149 = vrot.slane %v1143, 7
        %v1151 = vadd.f32 %v1010, %v1149
        %v1152 = vrot.slane %v1143, 3
        %v1154 = vadd.f32 %v1010, %v1152
        %v1156 = vrot.slane %v1151, 1
        %v1159 = vrot.slane %v1154, 5
        %1160 = vrot.lane.b32.xlu0 %v1159, 64
        %v1161 = vpop.permute.xlu0 %1160
        %v1163 = vsel %vm1075, %v1156, %v1161
        %v1164 = vxor.u32 %v1163, 2147483648
        %v1165 = vmul.f32 %v1164, 1.442695
        %v1166 = vpow.pop %v1165
        %v1167 = vadd.f32 %v1166, 1.0
        %v1168 = vrcp.pop %v1167
        %v1169 = vmul.f32 1.0, %v1168
        %v1170 = vtanh.pop %v1163
        %v1171 = vmul.f32 %v1169, %v1094
        %1173 = vrot.lane.b32.xlu0 %v1170, 80
        %v1174 = vpop.permute.xlu0 %1173
        %v1176 = vmul.f32 %v1169, %v1174
        %1178 = vrot.lane.b32.xlu0 %v1176, 16
        %v1179 = vpop.permute.xlu0 %1178
        %v1181 = vadd.f32 %v1171, %v1179
        %v1182 = vtanh.pop %v1181
        %1184 = vrot.lane.b32.xlu0 %v1182, 16
        %v1185 = vpop.permute.xlu0 %1184
        %v1187 = vmul.f32 %v1169, %v1185
        %v1188 = vpack.c.bf16 %v1187, %v1187
        %1190 = vrot.lane.b32.xlu0 %v1188, 96
        %v1191 = vpop.permute.xlu0 %1190
        %v1193 = vsel %vm1021, %v1191, 0
        %1195 = vmatprep.subr.bf16.mxu0 0
        %1196 = vmatpush1.bf16.msra.mxu0 %v1019
        %1197 = vmatprep.subr.bf16.mxu0 0
        %1198 = vmatpush1.bf16.msra.mxu0 0
        %1199 = vmatprep.subr.bf16.mxu0 0
        %1200 = vmatpush1.bf16.msra.mxu0 0
        %1201 = vmatprep.subr.bf16.mxu0 0
        %1202 = vmatpush1.bf16.msra.mxu0 0
        %1203 = vmatprep.subr.bf16.mxu0 0
        %1204 = vmatpush1.bf16.msra.mxu0 0
        %1205 = vmatprep.subr.bf16.mxu0 0
        %1206 = vmatpush1.bf16.msra.mxu0 0
        %1207 = vmatprep.subr.bf16.mxu0 0
        %1208 = vmatpush1.bf16.msra.mxu0 0
        %1209 = vmatprep.subr.bf16.mxu0 0
        %1210 = vmatpush1.bf16.msra.mxu0 0
        %1211 = vmatprep.subr.bf16.mxu0 0
        %1212 = vmatpush1.bf16.msra.mxu0 0
        %1213 = vmatprep.subr.bf16.mxu0 0
        %1214 = vmatpush1.bf16.msra.mxu0 0
        %1215 = vmatprep.subr.bf16.mxu0 0
        %1216 = vmatpush1.bf16.msra.mxu0 0
        %1217 = vmatprep.subr.bf16.mxu0 0
        %1218 = vmatpush1.bf16.msra.mxu0 0
        %1219 = vmatprep.subr.bf16.mxu0 0
        %1220 = vmatpush1.bf16.msra.mxu0 0
        %1221 = vmatprep.subr.bf16.mxu0 0
        %1222 = vmatpush1.bf16.msra.mxu0 0
        %1223 = vmatprep.subr.bf16.mxu0 0
        %1224 = vmatpush1.bf16.msra.mxu0 0
        %1225 = vmatprep.subr.bf16.mxu0 0
        %1226 = vmatpush1.bf16.msra.mxu0 0
        %1227 = vmatprep.mubr.bf16.mxu0 0
        %1228 = vmatmul.mubr.bf16.gmra.mrb[0].mxu0 %v1193
        %v1229 = vpop.f32.mrb[0].mxu0
        %v1230 = vadd.f32 0.0, %v1229
        %v1231 = vpop.f32.mrb[0].mxu0
        %v1232 = vpop.f32.mrb[0].mxu0
        %v1233 = vpop.f32.mrb[0].mxu0
        %1234 = vdwg.mxu0
        %v1236 = vrot.slane %v1230, 6
        %v1238 = vadd.f32 %v1010, %v1236
        %v1239 = vrot.slane %v1230, 4
        %v1241 = vadd.f32 %v1010, %v1239
        %v1243 = vrot.slane %v1238, 2
        %v1246 = vrot.slane %v1241, 4
        %1247 = vrot.lane.b32.xlu0 %v1246, 64
        %v1248 = vpop.permute.xlu0 %1247
        %v1250 = vsel %vm1075, %v1243, %v1248
        %v1251 = vxor.u32 %v1250, 2147483648
        %v1252 = vmul.f32 %v1251, 1.442695
        %v1253 = vpow.pop %v1252
        %v1254 = vadd.f32 %v1253, 1.0
        %v1255 = vrcp.pop %v1254
        %v1256 = vmul.f32 1.0, %v1255
        %v1257 = vtanh.pop %v1250
        %v1258 = vmul.f32 %v1256, %v1181
        %1260 = vrot.lane.b32.xlu0 %v1257, 80
        %v1261 = vpop.permute.xlu0 %1260
        %v1263 = vmul.f32 %v1256, %v1261
        %1265 = vrot.lane.b32.xlu0 %v1263, 16
        %v1266 = vpop.permute.xlu0 %1265
        %v1268 = vadd.f32 %v1258, %v1266
        %v1269 = vtanh.pop %v1268
        %1271 = vrot.lane.b32.xlu0 %v1269, 16
        %v1272 = vpop.permute.xlu0 %1271
        %v1274 = vmul.f32 %v1256, %v1272
        %v1275 = vpack.c.bf16 %v1274, %v1274
        %1277 = vrot.lane.b32.xlu0 %v1275, 96
        %v1278 = vpop.permute.xlu0 %1277
        %v1280 = vsel %vm1021, %v1278, 0
        %1282 = vmatprep.subr.bf16.mxu0 0
        %1283 = vmatpush1.bf16.msra.mxu0 %v1019
        %1284 = vmatprep.subr.bf16.mxu0 0
        %1285 = vmatpush1.bf16.msra.mxu0 0
        %1286 = vmatprep.subr.bf16.mxu0 0
        %1287 = vmatpush1.bf16.msra.mxu0 0
        %1288 = vmatprep.subr.bf16.mxu0 0
        %1289 = vmatpush1.bf16.msra.mxu0 0
        %1290 = vmatprep.subr.bf16.mxu0 0
        %1291 = vmatpush1.bf16.msra.mxu0 0
        %1292 = vmatprep.subr.bf16.mxu0 0
        %1293 = vmatpush1.bf16.msra.mxu0 0
        %1294 = vmatprep.subr.bf16.mxu0 0
        %1295 = vmatpush1.bf16.msra.mxu0 0
        %1296 = vmatprep.subr.bf16.mxu0 0
        %1297 = vmatpush1.bf16.msra.mxu0 0
        %1298 = vmatprep.subr.bf16.mxu0 0
        %1299 = vmatpush1.bf16.msra.mxu0 0
        %1300 = vmatprep.subr.bf16.mxu0 0
        %1301 = vmatpush1.bf16.msra.mxu0 0
        %1302 = vmatprep.subr.bf16.mxu0 0
        %1303 = vmatpush1.bf16.msra.mxu0 0
        %1304 = vmatprep.subr.bf16.mxu0 0
        %1305 = vmatpush1.bf16.msra.mxu0 0
        %1306 = vmatprep.subr.bf16.mxu0 0
        %1307 = vmatpush1.bf16.msra.mxu0 0
        %1308 = vmatprep.subr.bf16.mxu0 0
        %1309 = vmatpush1.bf16.msra.mxu0 0
        %1310 = vmatprep.subr.bf16.mxu0 0
        %1311 = vmatpush1.bf16.msra.mxu0 0
        %1312 = vmatprep.subr.bf16.mxu0 0
        %1313 = vmatpush1.bf16.msra.mxu0 0
        %1314 = vmatprep.mubr.bf16.mxu0 0
        %1315 = vmatmul.mubr.bf16.gmra.mrb[0].mxu0 %v1280
        %v1316 = vpop.f32.mrb[0].mxu0
        %v1317 = vadd.f32 0.0, %v1316
        %v1318 = vpop.f32.mrb[0].mxu0
        %v1319 = vpop.f32.mrb[0].mxu0
        %v1320 = vpop.f32.mrb[0].mxu0
        %1321 = vdwg.mxu0
        %v1323 = vrot.slane %v1317, 5
        %v1325 = vadd.f32 %v1010, %v1323
        %v1327 = vrot.slane %v1325, 3
        %1329 = vrot.lane.b32.xlu0 %v1327, 64
        %v1330 = vpop.permute.xlu0 %1329
        %v1332 = vsel %vm1075, %v1327, %v1330
        %v1333 = vxor.u32 %v1332, 2147483648
        %v1334 = vmul.f32 %v1333, 1.442695
        %v1335 = vpow.pop %v1334
        %v1336 = vadd.f32 %v1335, 1.0
        %v1337 = vrcp.pop %v1336
        %v1338 = vmul.f32 1.0, %v1337
        %v1339 = vtanh.pop %v1332
        %v1340 = vmul.f32 %v1338, %v1268
        %1342 = vrot.lane.b32.xlu0 %v1339, 80
        %v1343 = vpop.permute.xlu0 %1342
        %v1345 = vmul.f32 %v1338, %v1343
        %1347 = vrot.lane.b32.xlu0 %v1345, 16
        %v1348 = vpop.permute.xlu0 %1347
        %v1350 = vadd.f32 %v1340, %v1348
        %v1351 = vtanh.pop %v1350
        %1353 = vrot.lane.b32.xlu0 %v1351, 16
        %v1354 = vpop.permute.xlu0 %1353
        %v1356 = vmul.f32 %v1338, %v1354
        %v1357 = vpack.c.bf16 %v1356, %v1356
        %1359 = vrot.lane.b32.xlu0 %v1357, 96
        %v1360 = vpop.permute.xlu0 %1359
        %v1362 = vsel %vm1021, %v1360, 0
        %1364 = vmatprep.subr.bf16.mxu0 0
        %1365 = vmatpush1.bf16.msra.mxu0 %v1019
        %1366 = vmatprep.subr.bf16.mxu0 0
        %1367 = vmatpush1.bf16.msra.mxu0 0
        %1368 = vmatprep.subr.bf16.mxu0 0
        %1369 = vmatpush1.bf16.msra.mxu0 0
        %1370 = vmatprep.subr.bf16.mxu0 0
        %1371 = vmatpush1.bf16.msra.mxu0 0
        %1372 = vmatprep.subr.bf16.mxu0 0
        %1373 = vmatpush1.bf16.msra.mxu0 0
        %1374 = vmatprep.subr.bf16.mxu0 0
        %1375 = vmatpush1.bf16.msra.mxu0 0
        %1376 = vmatprep.subr.bf16.mxu0 0
        %1377 = vmatpush1.bf16.msra.mxu0 0
        %1378 = vmatprep.subr.bf16.mxu0 0
        %1379 = vmatpush1.bf16.msra.mxu0 0
        %1380 = vmatprep.subr.bf16.mxu0 0
        %1381 = vmatpush1.bf16.msra.mxu0 0
        %1382 = vmatprep.subr.bf16.mxu0 0
        %1383 = vmatpush1.bf16.msra.mxu0 0
        %1384 = vmatprep.subr.bf16.mxu0 0
        %1385 = vmatpush1.bf16.msra.mxu0 0
        %1386 = vmatprep.subr.bf16.mxu0 0
        %1387 = vmatpush1.bf16.msra.mxu0 0
        %1388 = vmatprep.subr.bf16.mxu0 0
        %1389 = vmatpush1.bf16.msra.mxu0 0
        %1390 = vmatprep.subr.bf16.mxu0 0
        %1391 = vmatpush1.bf16.msra.mxu0 0
        %1392 = vmatprep.subr.bf16.mxu0 0
        %1393 = vmatpush1.bf16.msra.mxu0 0
        %1394 = vmatprep.subr.bf16.mxu0 0
        %1395 = vmatpush1.bf16.msra.mxu0 0
        %1396 = vmatprep.mubr.bf16.mxu0 0
        %1397 = vmatmul.mubr.bf16.gmra.mrb[0].mxu0 %v1362
        %v1398 = vpop.f32.mrb[0].mxu0
        %v1399 = vadd.f32 0.0, %v1398
        %v1400 = vpop.f32.mrb[0].mxu0
        %v1401 = vpop.f32.mrb[0].mxu0
        %v1402 = vpop.f32.mrb[0].mxu0
        %1403 = vdwg.mxu0
        %v1405 = vrot.slane %v1399, 4
        %v1407 = vadd.f32 %v1010, %v1405
        %v1408 = vrot.slane %v1399, 6
        %v1410 = vadd.f32 %v1010, %v1408
        %v1412 = vrot.slane %v1407, 4
        %v1415 = vrot.slane %v1410, 2
        %1416 = vrot.lane.b32.xlu0 %v1415, 64
        %v1417 = vpop.permute.xlu0 %1416
        %v1419 = vsel %vm1075, %v1412, %v1417
        %v1420 = vxor.u32 %v1419, 2147483648
        %v1421 = vmul.f32 %v1420, 1.442695
        %v1422 = vpow.pop %v1421
        %v1423 = vadd.f32 %v1422, 1.0
        %v1424 = vrcp.pop %v1423
        %v1425 = vmul.f32 1.0, %v1424
        %v1426 = vtanh.pop %v1419
        %v1427 = vmul.f32 %v1425, %v1350
        %1429 = vrot.lane.b32.xlu0 %v1426, 80
        %v1430 = vpop.permute.xlu0 %1429
        %v1432 = vmul.f32 %v1425, %v1430
        %1434 = vrot.lane.b32.xlu0 %v1432, 16
        %v1435 = vpop.permute.xlu0 %1434
        %v1437 = vadd.f32 %v1427, %v1435
        %v1438 = vtanh.pop %v1437
        %1440 = vrot.lane.b32.xlu0 %v1438, 16
        %v1441 = vpop.permute.xlu0 %1440
        %v1443 = vmul.f32 %v1425, %v1441
        %v1444 = vpack.c.bf16 %v1443, %v1443
        %1446 = vrot.lane.b32.xlu0 %v1444, 96
        %v1447 = vpop.permute.xlu0 %1446
        %v1449 = vsel %vm1021, %v1447, 0
        %1451 = vmatprep.subr.bf16.mxu0 0
        %1452 = vmatpush1.bf16.msra.mxu0 %v1019
        %1453 = vmatprep.subr.bf16.mxu0 0
        %1454 = vmatpush1.bf16.msra.mxu0 0
        %1455 = vmatprep.subr.bf16.mxu0 0
        %1456 = vmatpush1.bf16.msra.mxu0 0
        %1457 = vmatprep.subr.bf16.mxu0 0
        %1458 = vmatpush1.bf16.msra.mxu0 0
        %1459 = vmatprep.subr.bf16.mxu0 0
        %1460 = vmatpush1.bf16.msra.mxu0 0
        %1461 = vmatprep.subr.bf16.mxu0 0
        %1462 = vmatpush1.bf16.msra.mxu0 0
        %1463 = vmatprep.subr.bf16.mxu0 0
        %1464 = vmatpush1.bf16.msra.mxu0 0
        %1465 = vmatprep.subr.bf16.mxu0 0
        %1466 = vmatpush1.bf16.msra.mxu0 0
        %1467 = vmatprep.subr.bf16.mxu0 0
        %1468 = vmatpush1.bf16.msra.mxu0 0
        %1469 = vmatprep.subr.bf16.mxu0 0
        %1470 = vmatpush1.bf16.msra.mxu0 0
        %1471 = vmatprep.subr.bf16.mxu0 0
        %1472 = vmatpush1.bf16.msra.mxu0 0
        %1473 = vmatprep.subr.bf16.mxu0 0
        %1474 = vmatpush1.bf16.msra.mxu0 0
        %1475 = vmatprep.subr.bf16.mxu0 0
        %1476 = vmatpush1.bf16.msra.mxu0 0
        %1477 = vmatprep.subr.bf16.mxu0 0
        %1478 = vmatpush1.bf16.msra.mxu0 0
        %1479 = vmatprep.subr.bf16.mxu0 0
        %1480 = vmatpush1.bf16.msra.mxu0 0
        %1481 = vmatprep.subr.bf16.mxu0 0
        %1482 = vmatpush1.bf16.msra.mxu0 0
        %1483 = vmatprep.mubr.bf16.mxu0 0
        %1484 = vmatmul.mubr.bf16.gmra.mrb[0].mxu0 %v1449
        %v1485 = vpop.f32.mrb[0].mxu0
        %v1486 = vadd.f32 0.0, %v1485
        %v1487 = vpop.f32.mrb[0].mxu0
        %v1488 = vpop.f32.mrb[0].mxu0
        %v1489 = vpop.f32.mrb[0].mxu0
        %1490 = vdwg.mxu0
        %v1492 = vrot.slane %v1486, 3
        %v1494 = vadd.f32 %v1010, %v1492
        %v1495 = vrot.slane %v1486, 7
        %v1497 = vadd.f32 %v1010, %v1495
        %v1499 = vrot.slane %v1494, 5
        %v1502 = vrot.slane %v1497, 1
        %1503 = vrot.lane.b32.xlu0 %v1502, 64
        %v1504 = vpop.permute.xlu0 %1503
        %v1506 = vsel %vm1075, %v1499, %v1504
        %v1507 = vxor.u32 %v1506, 2147483648
        %v1508 = vmul.f32 %v1507, 1.442695
        %v1509 = vpow.pop %v1508
        %v1510 = vadd.f32 %v1509, 1.0
        %v1511 = vrcp.pop %v1510
        %v1512 = vmul.f32 1.0, %v1511
        %v1513 = vtanh.pop %v1506
        %v1514 = vmul.f32 %v1512, %v1437
        %1516 = vrot.lane.b32.xlu0 %v1513, 80
        %v1517 = vpop.permute.xlu0 %1516
        %v1519 = vmul.f32 %v1512, %v1517
        %1521 = vrot.lane.b32.xlu0 %v1519, 16
        %v1522 = vpop.permute.xlu0 %1521
        %v1524 = vadd.f32 %v1514, %v1522
        %v1525 = vtanh.pop %v1524
        %1527 = vrot.lane.b32.xlu0 %v1525, 16
        %v1528 = vpop.permute.xlu0 %1527
        %v1530 = vmul.f32 %v1512, %v1528
        %v1531 = vpack.c.bf16 %v1530, %v1530
        %1533 = vrot.lane.b32.xlu0 %v1531, 96
        %v1534 = vpop.permute.xlu0 %1533
        %v1536 = vsel %vm1021, %v1534, 0
        %1538 = vmatprep.subr.bf16.mxu0 0
        %1539 = vmatpush1.bf16.msra.mxu0 %v1019
        %1540 = vmatprep.subr.bf16.mxu0 0
        %1541 = vmatpush1.bf16.msra.mxu0 0
        %1542 = vmatprep.subr.bf16.mxu0 0
        %1543 = vmatpush1.bf16.msra.mxu0 0
        %1544 = vmatprep.subr.bf16.mxu0 0
        %1545 = vmatpush1.bf16.msra.mxu0 0
        %1546 = vmatprep.subr.bf16.mxu0 0
        %1547 = vmatpush1.bf16.msra.mxu0 0
        %1548 = vmatprep.subr.bf16.mxu0 0
        %1549 = vmatpush1.bf16.msra.mxu0 0
        %1550 = vmatprep.subr.bf16.mxu0 0
        %1551 = vmatpush1.bf16.msra.mxu0 0
        %1552 = vmatprep.subr.bf16.mxu0 0
        %1553 = vmatpush1.bf16.msra.mxu0 0
        %1554 = vmatprep.subr.bf16.mxu0 0
        %1555 = vmatpush1.bf16.msra.mxu0 0
        %1556 = vmatprep.subr.bf16.mxu0 0
        %1557 = vmatpush1.bf16.msra.mxu0 0
        %1558 = vmatprep.subr.bf16.mxu0 0
        %1559 = vmatpush1.bf16.msra.mxu0 0
        %1560 = vmatprep.subr.bf16.mxu0 0
        %1561 = vmatpush1.bf16.msra.mxu0 0
        %1562 = vmatprep.subr.bf16.mxu0 0
        %1563 = vmatpush1.bf16.msra.mxu0 0
        %1564 = vmatprep.subr.bf16.mxu0 0
        %1565 = vmatpush1.bf16.msra.mxu0 0
        %1566 = vmatprep.subr.bf16.mxu0 0
        %1567 = vmatpush1.bf16.msra.mxu0 0
        %1568 = vmatprep.subr.bf16.mxu0 0
        %1569 = vmatpush1.bf16.msra.mxu0 0
        %1570 = vmatprep.mubr.bf16.mxu0 0
        %1571 = vmatmul.mubr.bf16.gmra.mrb[0].mxu0 %v1536
        %v1572 = vpop.f32.mrb[0].mxu0
        %v1573 = vadd.f32 0.0, %v1572
        %v1574 = vpop.f32.mrb[0].mxu0
        %v1575 = vpop.f32.mrb[0].mxu0
        %v1576 = vpop.f32.mrb[0].mxu0
        %1577 = vdwg.mxu0
        %v1579 = vrot.slane %v1573, 2
        %v1581 = vadd.f32 %v1010, %v1579
        %v1582 = vadd.f32 %v1010, %v1573
        %v1584 = vrot.slane %v1581, 6
        %1587 = vrot.lane.b32.xlu0 %v1582, 64
        %v1588 = vpop.permute.xlu0 %1587
        %v1590 = vsel %vm1075, %v1584, %v1588
        %v1591 = vxor.u32 %v1590, 2147483648
        %v1592 = vmul.f32 %v1591, 1.442695
        %v1593 = vpow.pop %v1592
        %v1594 = vadd.f32 %v1593, 1.0
        %v1595 = vrcp.pop %v1594
        %v1596 = vmul.f32 1.0, %v1595
        %v1597 = vtanh.pop %v1590
        %v1598 = vmul.f32 %v1596, %v1524
        %1600 = vrot.lane.b32.xlu0 %v1597, 80
        %v1601 = vpop.permute.xlu0 %1600
        %v1603 = vmul.f32 %v1596, %v1601
        %1605 = vrot.lane.b32.xlu0 %v1603, 16
        %v1606 = vpop.permute.xlu0 %1605
        %v1608 = vadd.f32 %v1598, %v1606
        %v1609 = vtanh.pop %v1608
        %1611 = vrot.lane.b32.xlu0 %v1609, 16
        %v1612 = vpop.permute.xlu0 %1611
        %v1614 = vmul.f32 %v1596, %v1612
        %v1615 = vpack.c.bf16 %v1614, %v1614
        %1617 = vrot.lane.b32.xlu0 %v1615, 96
        %v1618 = vpop.permute.xlu0 %1617
        %v1620 = vsel %vm1021, %v1618, 0
        %1622 = vmatprep.subr.bf16.mxu0 0
        %1623 = vmatpush1.bf16.msra.mxu0 %v1019
        %1624 = vmatprep.subr.bf16.mxu0 0
        %1625 = vmatpush1.bf16.msra.mxu0 0
        %1626 = vmatprep.subr.bf16.mxu0 0
        %1627 = vmatpush1.bf16.msra.mxu0 0
        %1628 = vmatprep.subr.bf16.mxu0 0
        %1629 = vmatpush1.bf16.msra.mxu0 0
        %1630 = vmatprep.subr.bf16.mxu0 0
        %1631 = vmatpush1.bf16.msra.mxu0 0
        %1632 = vmatprep.subr.bf16.mxu0 0
        %1633 = vmatpush1.bf16.msra.mxu0 0
        %1634 = vmatprep.subr.bf16.mxu0 0
        %1635 = vmatpush1.bf16.msra.mxu0 0
        %1636 = vmatprep.subr.bf16.mxu0 0
        %1637 = vmatpush1.bf16.msra.mxu0 0
        %1638 = vmatprep.subr.bf16.mxu0 0
        %1639 = vmatpush1.bf16.msra.mxu0 0
        %1640 = vmatprep.subr.bf16.mxu0 0
        %1641 = vmatpush1.bf16.msra.mxu0 0
        %1642 = vmatprep.subr.bf16.mxu0 0
        %1643 = vmatpush1.bf16.msra.mxu0 0
        %1644 = vmatprep.subr.bf16.mxu0 0
        %1645 = vmatpush1.bf16.msra.mxu0 0
        %1646 = vmatprep.subr.bf16.mxu0 0
        %1647 = vmatpush1.bf16.msra.mxu0 0
        %1648 = vmatprep.subr.bf16.mxu0 0
        %1649 = vmatpush1.bf16.msra.mxu0 0
        %1650 = vmatprep.subr.bf16.mxu0 0
        %1651 = vmatpush1.bf16.msra.mxu0 0
        %1652 = vmatprep.subr.bf16.mxu0 0
        %1653 = vmatpush1.bf16.msra.mxu0 0
        %1654 = vmatprep.mubr.bf16.mxu0 0
        %1655 = vmatmul.mubr.bf16.gmra.mrb[0].mxu0 %v1620
        %v1656 = vpop.f32.mrb[0].mxu0
        %v1657 = vadd.f32 0.0, %v1656
        %v1658 = vpop.f32.mrb[0].mxu0
        %v1659 = vpop.f32.mrb[0].mxu0
        %v1660 = vpop.f32.mrb[0].mxu0
        %1661 = vdwg.mxu0
        %v1663 = vrot.slane %v1657, 1
        %v1665 = vadd.f32 %v1010, %v1663
        %v1667 = vrot.slane %v1665, 7
        %1669 = vrot.lane.b32.xlu0 %v1667, 64
        %v1670 = vpop.permute.xlu0 %1669
        %v1672 = vsel %vm1075, %v1667, %v1670
        %v1673 = vxor.u32 %v1672, 2147483648
        %v1674 = vmul.f32 %v1673, 1.442695
        %v1675 = vpow.pop %v1674
        %v1676 = vadd.f32 %v1675, 1.0
        %v1677 = vrcp.pop %v1676
        %v1678 = vmul.f32 1.0, %v1677
        %v1679 = vtanh.pop %v1672
        %v1680 = vmul.f32 %v1678, %v1608
        %1682 = vrot.lane.b32.xlu0 %v1679, 80
        %v1683 = vpop.permute.xlu0 %1682
        %v1685 = vmul.f32 %v1678, %v1683
        %1687 = vrot.lane.b32.xlu0 %v1685, 16
        %v1688 = vpop.permute.xlu0 %1687
        %v1690 = vadd.f32 %v1680, %v1688
        %v1691 = vtanh.pop %v1690
        %1693 = vrot.lane.b32.xlu0 %v1691, 16
        %v1694 = vpop.permute.xlu0 %1693
        %v1696 = vmul.f32 %v1678, %v1694
        %v1698 = vrot.slane %v1187, 7
        %v1701 = vrot.slane %v1274, 6
        %v1704 = vrot.slane %v1356, 5
        %v1707 = vrot.slane %v1443, 4
        %v1710 = vrot.slane %v1530, 3
        %v1713 = vrot.slane %v1614, 2
        %v1716 = vrot.slane %v1696, 1
        %v1718 = vsel %vm1075, %v1100, %v1698
        %vm1719 = vcmask 1041408
        %v1720 = vsel %vm1719, %v1718, %v1701
        %vm1721 = vcmask 1042432
        %v1722 = vsel %vm1721, %v1720, %v1704
        %v1723 = vsel %vm318, %v1722, %v1707
        %vm1724 = vcmask 1044480
        %v1725 = vsel %vm1724, %v1723, %v1710
        %vm1726 = vcmask 1045504
        %v1727 = vsel %vm1726, %v1725, %v1713
        %vm1728 = vcmask 1046528
        %v1729 = vsel %vm1728, %v1727, %v1716
        %v1730 = vrot.slane %v1530, 7
        %v1732 = vrot.slane %v1443, 6
        %v1734 = vrot.slane %v1274, 4
        %v1736 = vrot.slane %v1187, 3
        %v1739 = vrot.slane %v1100, 2
        %v1741 = vsel %vm1075, %v1716, %v1614
        %v1742 = vsel %vm1719, %v1741, %v1730
        %v1743 = vsel %vm1721, %v1742, %v1732
        %v1744 = vsel %vm318, %v1743, %v1704
        %v1745 = vsel %vm1724, %v1744, %v1734
        %v1746 = vsel %vm1726, %v1745, %v1736
        %v1747 = vsel %vm1728, %v1746, %v1739
        %1749 = vrot.lane.b32.xlu0 %v1729, 96
        %v1750 = vpop.permute.xlu0 %1749
        %1753 = vrot.lane.b32.xlu0 %v1747, 112
        %v1754 = vpop.permute.xlu0 %1753
        %v1756 = vsel %vm1021, %v1750, %v1754
        %v1757 = vsel %vm924, %v1756, 0.0
        %1758 = vadd.xlane.f32.xlu0 %v1757
        %v1759 = vpop.xlane.xlu0 %1758
        %v1760 = vmul.f32 %v1759, %v928
        %v1761 = vsub.f32 %v1756, %v1760
        %v1762 = vmul.f32 %v1761, %v1761
        %v1763 = vsel %vm924, %v1762, 0.0
        %1764 = vadd.xlane.f32.xlu0 %v1763
        %v1765 = vpop.xlane.xlu0 %1764
        %v1766 = vmul.f32 %v1765, %v928
        %v1767 = vadd.f32 %v1766, 1e-05
        %v1768 = vrsqrt.pop %v1767
        %v1769 = vmul.f32 %v1761, %v1768
        %v1770 = vlaneseq
        %v1771 = vshrl.u32 %v1770, 7
        %v1772 = vsub.s32 2, %v1771
        %v1773 = vrot.slane %v289, %v1772
        %v1774 = vmul.f32 %v1769, %v1773
        %v1775 = vlaneseq
        %v1776 = vshrl.u32 %v1775, 7
        %v1777 = vsub.s32 3, %v1776
        %v1778 = vrot.slane %v289, %v1777
        %v1779 = vadd.f32 %v1774, %v1778
        %v1780 = vpack.c.bf16 %v1779, %v1779
        %v1781 = vld [vmem:[%s5] sm:$0xff]
        %v1782 = vld [vmem:[%s5 + $0x8] sm:$0xff]
        %v1783 = vld [vmem:[%s5 + $0x10] sm:$0xff]
        %v1784 = vld [vmem:[%s5 + $0x18] sm:$0xff]
        %v1785 = vlaneseq
        %v1786 = vshrl.u32 %v1785, 7
        %v1787 = vsub.s32 6, %v1786
        %v1788 = vrot.slane %v289, %v1787
        %v1793 = vunpack.c.l.b16 %v1781
        %v1794 = vunpack.c.l.b16 %v1782
        %v1795 = vunpack.c.l.b16 %v1783
        %v1796 = vunpack.c.l.b16 %v1784
        %v1797 = vpack.c.b16 %v1794, %v1793
        %v1798 = vpack.c.b16 %v1796, %v1795
        %v1802 = vsel %vm924, %v1780, 0
        %1804 = vmatprep.subr.bf16.mxu0 0
        %1805 = vmatpush1.bf16.msra.mxu0 %v1797
        %1806 = vmatprep.subr.bf16.mxu0 0
        %1807 = vmatpush1.bf16.msra.mxu0 %v1798
        %1808 = vmatprep.subr.bf16.mxu0 0
        %1809 = vmatpush1.bf16.msra.mxu0 0
        %1810 = vmatprep.subr.bf16.mxu0 0
        %1811 = vmatpush1.bf16.msra.mxu0 0
        %1812 = vmatprep.subr.bf16.mxu0 0
        %1813 = vmatpush1.bf16.msra.mxu0 0
        %1814 = vmatprep.subr.bf16.mxu0 0
        %1815 = vmatpush1.bf16.msra.mxu0 0
        %1816 = vmatprep.subr.bf16.mxu0 0
        %1817 = vmatpush1.bf16.msra.mxu0 0
        %1818 = vmatprep.subr.bf16.mxu0 0
        %1819 = vmatpush1.bf16.msra.mxu0 0
        %1820 = vmatprep.subr.bf16.mxu0 0
        %1821 = vmatpush1.bf16.msra.mxu0 0
        %1822 = vmatprep.subr.bf16.mxu0 0
        %1823 = vmatpush1.bf16.msra.mxu0 0
        %1824 = vmatprep.subr.bf16.mxu0 0
        %1825 = vmatpush1.bf16.msra.mxu0 0
        %1826 = vmatprep.subr.bf16.mxu0 0
        %1827 = vmatpush1.bf16.msra.mxu0 0
        %1828 = vmatprep.subr.bf16.mxu0 0
        %1829 = vmatpush1.bf16.msra.mxu0 0
        %1830 = vmatprep.subr.bf16.mxu0 0
        %1831 = vmatpush1.bf16.msra.mxu0 0
        %1832 = vmatprep.subr.bf16.mxu0 0
        %1833 = vmatpush1.bf16.msra.mxu0 0
        %1834 = vmatprep.subr.bf16.mxu0 0
        %1835 = vmatpush1.bf16.msra.mxu0 0
        %1836 = vmatprep.mubr.bf16.mxu0 0
        %1837 = vmatmul.mubr.bf16.gmra.mrb[0].mxu0 %v1802
        %v1838 = vpop.f32.mrb[0].mxu0
        %v1839 = vadd.f32 %v1788, %v1838
        %v1840 = vpop.f32.mrb[0].mxu0
        %v1841 = vpop.f32.mrb[0].mxu0
        %v1842 = vpop.f32.mrb[0].mxu0
        %1843 = vdwg.mxu0
        %v1844 = vpack.c.bf16 %v1839, %v1839
        %v1845 = vld [vmem:[%s287] sm:$0x1]
        %1847 = vrot.lane.b32.xlu0 %v1844, 96
        %v1848 = vpop.permute.xlu0 %1847
        %vm1849 = vcmask 64512
        %v1851 = vsel %vm1849, %v1844, 0
        %v1854 = vsel %vm1849, %v1848, 0
        %1856 = vmatprep.subr.bf16.mxu0 0
        %1857 = vmatpush1.bf16.xpose.msra.mxu0 %v1854
        %1858 = vmatprep.subr.bf16.mxu0 0
        %1859 = vmatpush1.bf16.xpose.msra.mxu0 0
        %1860 = vmatprep.subr.bf16.mxu0 0
        %1861 = vmatpush1.bf16.xpose.msra.mxu0 0
        %1862 = vmatprep.subr.bf16.mxu0 0
        %1863 = vmatpush1.bf16.xpose.msra.mxu0 0
        %1864 = vmatprep.subr.bf16.mxu0 0
        %1865 = vmatpush1.bf16.xpose.msra.mxu0 0
        %1866 = vmatprep.subr.bf16.mxu0 0
        %1867 = vmatpush1.bf16.xpose.msra.mxu0 0
        %1868 = vmatprep.subr.bf16.mxu0 0
        %1869 = vmatpush1.bf16.xpose.msra.mxu0 0
        %1870 = vmatprep.subr.bf16.mxu0 0
        %1871 = vmatpush1.bf16.xpose.msra.mxu0 0
        %1872 = vmatprep.subr.bf16.mxu0 0
        %1873 = vmatpush1.bf16.xpose.msra.mxu0 0
        %1874 = vmatprep.subr.bf16.mxu0 0
        %1875 = vmatpush1.bf16.xpose.msra.mxu0 0
        %1876 = vmatprep.subr.bf16.mxu0 0
        %1877 = vmatpush1.bf16.xpose.msra.mxu0 0
        %1878 = vmatprep.subr.bf16.mxu0 0
        %1879 = vmatpush1.bf16.xpose.msra.mxu0 0
        %1880 = vmatprep.subr.bf16.mxu0 0
        %1881 = vmatpush1.bf16.xpose.msra.mxu0 0
        %1882 = vmatprep.subr.bf16.mxu0 0
        %1883 = vmatpush1.bf16.xpose.msra.mxu0 0
        %1884 = vmatprep.subr.bf16.mxu0 0
        %1885 = vmatpush1.bf16.xpose.msra.mxu0 0
        %1886 = vmatprep.subr.bf16.mxu0 0
        %1887 = vmatpush1.bf16.xpose.msra.mxu0 0
        %1888 = vmatprep.mubr.bf16.mxu0 0
        %1889 = vmatmul.mubr.bf16.gmra.mrb[0].mxu0 %v1851
        %v1890 = vpop.f32.mrb[0].mxu0
        %v1891 = vadd.f32 0.0, %v1890
        %v1892 = vpop.f32.mrb[0].mxu0
        %v1893 = vpop.f32.mrb[0].mxu0
        %v1894 = vpop.f32.mrb[0].mxu0
        %1895 = vdwg.mxu0
        %1896 = vrot.lane.b32.xlu0 %v1844, 120
        %v1897 = vpop.permute.xlu0 %1896
        %1898 = vrot.lane.b32.xlu0 %v1844, 88
        %v1899 = vpop.permute.xlu0 %1898
        %v1901 = vsel %vm1849, %v1897, 0
        %v1904 = vsel %vm1849, %v1899, 0
        %1906 = vmatprep.subr.bf16.mxu0 0
        %1907 = vmatpush1.bf16.xpose.msra.mxu0 %v1904
        %1908 = vmatprep.subr.bf16.mxu0 0
        %1909 = vmatpush1.bf16.xpose.msra.mxu0 0
        %1910 = vmatprep.subr.bf16.mxu0 0
        %1911 = vmatpush1.bf16.xpose.msra.mxu0 0
        %1912 = vmatprep.subr.bf16.mxu0 0
        %1913 = vmatpush1.bf16.xpose.msra.mxu0 0
        %1914 = vmatprep.subr.bf16.mxu0 0
        %1915 = vmatpush1.bf16.xpose.msra.mxu0 0
        %1916 = vmatprep.subr.bf16.mxu0 0
        %1917 = vmatpush1.bf16.xpose.msra.mxu0 0
        %1918 = vmatprep.subr.bf16.mxu0 0
        %1919 = vmatpush1.bf16.xpose.msra.mxu0 0
        %1920 = vmatprep.subr.bf16.mxu0 0
        %1921 = vmatpush1.bf16.xpose.msra.mxu0 0
        %1922 = vmatprep.subr.bf16.mxu0 0
        %1923 = vmatpush1.bf16.xpose.msra.mxu0 0
        %1924 = vmatprep.subr.bf16.mxu0 0
        %1925 = vmatpush1.bf16.xpose.msra.mxu0 0
        %1926 = vmatprep.subr.bf16.mxu0 0
        %1927 = vmatpush1.bf16.xpose.msra.mxu0 0
        %1928 = vmatprep.subr.bf16.mxu0 0
        %1929 = vmatpush1.bf16.xpose.msra.mxu0 0
        %1930 = vmatprep.subr.bf16.mxu0 0
        %1931 = vmatpush1.bf16.xpose.msra.mxu0 0
        %1932 = vmatprep.subr.bf16.mxu0 0
        %1933 = vmatpush1.bf16.xpose.msra.mxu0 0
        %1934 = vmatprep.subr.bf16.mxu0 0
        %1935 = vmatpush1.bf16.xpose.msra.mxu0 0
        %1936 = vmatprep.subr.bf16.mxu0 0
        %1937 = vmatpush1.bf16.xpose.msra.mxu0 0
        %1938 = vmatprep.mubr.bf16.mxu0 0
        %1939 = vmatmul.mubr.bf16.gmra.mrb[0].mxu0 %v1901
        %v1940 = vpop.f32.mrb[0].mxu0
        %v1941 = vadd.f32 0.0, %v1940
        %v1942 = vpop.f32.mrb[0].mxu0
        %v1943 = vpop.f32.mrb[0].mxu0
        %v1944 = vpop.f32.mrb[0].mxu0
        %1945 = vdwg.mxu0
        %1946 = vrot.lane.b32.xlu0 %v1844, 112
        %v1947 = vpop.permute.xlu0 %1946
        %1948 = vrot.lane.b32.xlu0 %v1844, 80
        %v1949 = vpop.permute.xlu0 %1948
        %v1951 = vsel %vm1849, %v1947, 0
        %v1954 = vsel %vm1849, %v1949, 0
        %1956 = vmatprep.subr.bf16.mxu0 0
        %1957 = vmatpush1.bf16.xpose.msra.mxu0 %v1954
        %1958 = vmatprep.subr.bf16.mxu0 0
        %1959 = vmatpush1.bf16.xpose.msra.mxu0 0
        %1960 = vmatprep.subr.bf16.mxu0 0
        %1961 = vmatpush1.bf16.xpose.msra.mxu0 0
        %1962 = vmatprep.subr.bf16.mxu0 0
        %1963 = vmatpush1.bf16.xpose.msra.mxu0 0
        %1964 = vmatprep.subr.bf16.mxu0 0
        %1965 = vmatpush1.bf16.xpose.msra.mxu0 0
        %1966 = vmatprep.subr.bf16.mxu0 0
        %1967 = vmatpush1.bf16.xpose.msra.mxu0 0
        %1968 = vmatprep.subr.bf16.mxu0 0
        %1969 = vmatpush1.bf16.xpose.msra.mxu0 0
        %1970 = vmatprep.subr.bf16.mxu0 0
        %1971 = vmatpush1.bf16.xpose.msra.mxu0 0
        %1972 = vmatprep.subr.bf16.mxu0 0
        %1973 = vmatpush1.bf16.xpose.msra.mxu0 0
        %1974 = vmatprep.subr.bf16.mxu0 0
        %1975 = vmatpush1.bf16.xpose.msra.mxu0 0
        %1976 = vmatprep.subr.bf16.mxu0 0
        %1977 = vmatpush1.bf16.xpose.msra.mxu0 0
        %1978 = vmatprep.subr.bf16.mxu0 0
        %1979 = vmatpush1.bf16.xpose.msra.mxu0 0
        %1980 = vmatprep.subr.bf16.mxu0 0
        %1981 = vmatpush1.bf16.xpose.msra.mxu0 0
        %1982 = vmatprep.subr.bf16.mxu0 0
        %1983 = vmatpush1.bf16.xpose.msra.mxu0 0
        %1984 = vmatprep.subr.bf16.mxu0 0
        %1985 = vmatpush1.bf16.xpose.msra.mxu0 0
        %1986 = vmatprep.subr.bf16.mxu0 0
        %1987 = vmatpush1.bf16.xpose.msra.mxu0 0
        %1988 = vmatprep.mubr.bf16.mxu0 0
        %1989 = vmatmul.mubr.bf16.gmra.mrb[0].mxu0 %v1951
        %v1990 = vpop.f32.mrb[0].mxu0
        %v1991 = vadd.f32 0.0, %v1990
        %v1992 = vpop.f32.mrb[0].mxu0
        %v1993 = vpop.f32.mrb[0].mxu0
        %v1994 = vpop.f32.mrb[0].mxu0
        %1995 = vdwg.mxu0
        %1996 = vrot.lane.b32.xlu0 %v1844, 104
        %v1997 = vpop.permute.xlu0 %1996
        %1998 = vrot.lane.b32.xlu0 %v1844, 72
        %v1999 = vpop.permute.xlu0 %1998
        %v2001 = vsel %vm1849, %v1997, 0
        %v2004 = vsel %vm1849, %v1999, 0
        %2006 = vmatprep.subr.bf16.mxu0 0
        %2007 = vmatpush1.bf16.xpose.msra.mxu0 %v2004
        %2008 = vmatprep.subr.bf16.mxu0 0
        %2009 = vmatpush1.bf16.xpose.msra.mxu0 0
        %2010 = vmatprep.subr.bf16.mxu0 0
        %2011 = vmatpush1.bf16.xpose.msra.mxu0 0
        %2012 = vmatprep.subr.bf16.mxu0 0
        %2013 = vmatpush1.bf16.xpose.msra.mxu0 0
        %2014 = vmatprep.subr.bf16.mxu0 0
        %2015 = vmatpush1.bf16.xpose.msra.mxu0 0
        %2016 = vmatprep.subr.bf16.mxu0 0
        %2017 = vmatpush1.bf16.xpose.msra.mxu0 0
        %2018 = vmatprep.subr.bf16.mxu0 0
        %2019 = vmatpush1.bf16.xpose.msra.mxu0 0
        %2020 = vmatprep.subr.bf16.mxu0 0
        %2021 = vmatpush1.bf16.xpose.msra.mxu0 0
        %2022 = vmatprep.subr.bf16.mxu0 0
        %2023 = vmatpush1.bf16.xpose.msra.mxu0 0
        %2024 = vmatprep.subr.bf16.mxu0 0
        %2025 = vmatpush1.bf16.xpose.msra.mxu0 0
        %2026 = vmatprep.subr.bf16.mxu0 0
        %2027 = vmatpush1.bf16.xpose.msra.mxu0 0
        %2028 = vmatprep.subr.bf16.mxu0 0
        %2029 = vmatpush1.bf16.xpose.msra.mxu0 0
        %2030 = vmatprep.subr.bf16.mxu0 0
        %2031 = vmatpush1.bf16.xpose.msra.mxu0 0
        %2032 = vmatprep.subr.bf16.mxu0 0
        %2033 = vmatpush1.bf16.xpose.msra.mxu0 0
        %2034 = vmatprep.subr.bf16.mxu0 0
        %2035 = vmatpush1.bf16.xpose.msra.mxu0 0
        %2036 = vmatprep.subr.bf16.mxu0 0
        %2037 = vmatpush1.bf16.xpose.msra.mxu0 0
        %2038 = vmatprep.mubr.bf16.mxu0 0
        %2039 = vmatmul.mubr.bf16.gmra.mrb[0].mxu0 %v2001
        %v2040 = vpop.f32.mrb[0].mxu0
        %v2041 = vadd.f32 0.0, %v2040
        %v2042 = vpop.f32.mrb[0].mxu0
        %v2043 = vpop.f32.mrb[0].mxu0
        %v2044 = vpop.f32.mrb[0].mxu0
        %2045 = vdwg.mxu0
        %2047 = vrot.lane.b32.xlu0 %v1941, 8
        %v2048 = vpop.permute.xlu0 %2047
        %2051 = vrot.lane.b32.xlu0 %v1991, 16
        %v2052 = vpop.permute.xlu0 %2051
        %2055 = vrot.lane.b32.xlu0 %v2041, 24
        %v2056 = vpop.permute.xlu0 %2055
        %v2058 = vsel %vm1849, %v1891, %v2048
        %v2059 = vsel %vm1021, %v2058, %v2052
        %vm2060 = vcmask 195584
        %v2061 = vsel %vm2060, %v2059, %v2056
        %v2062 = vmul.f32 %v2061, 0.35355338
        %v2064 = vlaneseq
        %v2065 = vshrl.u32 %v2064, 7
        %v2066 = vsub.s32 0, %v2065
        %v2067 = vrot.slane %v1845, %v2066
        %v2069 = vadd.f32 %v2062, %v2067
        %v2070 = vsel %vm924, %v2069, -inf
        %2071 = vmax.xlane.f32.xlu0 %v2070
        %v2072 = vpop.xlane.xlu0 %2071
        %v2073 = vsub.f32 %v2069, %v2072
        %v2074 = vmul.f32 %v2073, 1.442695
        %v2075 = vpow.pop %v2074
        %v2076 = vsel %vm1849, %v2075, 0.0
        %2077 = vadd.xlane.f32.xlu0 %v2076
        %v2078 = vpop.xlane.xlu0 %2077
        %2080 = vrot.lane.b32.xlu0 %v2075, 120
        %v2081 = vpop.permute.xlu0 %2080
        %v2083 = vsel %vm1849, %v2081, 0.0
        %2084 = vadd.xlane.f32.xlu0 %v2083
        %v2085 = vpop.xlane.xlu0 %2084
        %2086 = vrot.lane.b32.xlu0 %v2075, 112
        %v2087 = vpop.permute.xlu0 %2086
        %v2089 = vsel %vm1849, %v2087, 0.0
        %2090 = vadd.xlane.f32.xlu0 %v2089
        %v2091 = vpop.xlane.xlu0 %2090
        %2092 = vrot.lane.b32.xlu0 %v2075, 104
        %v2093 = vpop.permute.xlu0 %2092
        %v2095 = vsel %vm1849, %v2093, 0.0
        %2096 = vadd.xlane.f32.xlu0 %v2095
        %v2097 = vpop.xlane.xlu0 %2096
        %vm2098 = vcmask 7168
        %v2099 = vsel %vm2098, %v2078, %v2085
        %vm2100 = vcmask 15360
        %v2101 = vsel %vm2100, %v2099, %v2091
        %vm2102 = vcmask 23552
        %v2103 = vsel %vm2102, %v2101, %v2097
        %v2104 = vrcp.pop %v2103
        %2106 = vset.pattern.permute.xlu0 0
        %2107 = vperm.xlu0 %2106, %v2104
        %v2108 = vpop.permute.xlu0 %2107
        %v2110 = vmul.f32 %v2075, %v2108
        %v2111 = vpack.c.bf16 %v2110, %v2110
        %2112 = vrot.lane.b32.xlu0 %v1844, 64
        %v2113 = vpop.permute.xlu0 %2112
        %v2115 = vsel %vm1849, %v2111, 0
        %v2118 = vsel %vm318, %v2113, 0
        %2120 = vmatprep.subr.bf16.mxu0 0
        %2121 = vmatpush1.bf16.msra.mxu0 %v2118
        %2122 = vmatprep.subr.bf16.mxu0 0
        %2123 = vmatpush1.bf16.msra.mxu0 0
        %2124 = vmatprep.subr.bf16.mxu0 0
        %2125 = vmatpush1.bf16.msra.mxu0 0
        %2126 = vmatprep.subr.bf16.mxu0 0
        %2127 = vmatpush1.bf16.msra.mxu0 0
        %2128 = vmatprep.subr.bf16.mxu0 0
        %2129 = vmatpush1.bf16.msra.mxu0 0
        %2130 = vmatprep.subr.bf16.mxu0 0
        %2131 = vmatpush1.bf16.msra.mxu0 0
        %2132 = vmatprep.subr.bf16.mxu0 0
        %2133 = vmatpush1.bf16.msra.mxu0 0
        %2134 = vmatprep.subr.bf16.mxu0 0
        %2135 = vmatpush1.bf16.msra.mxu0 0
        %2136 = vmatprep.subr.bf16.mxu0 0
        %2137 = vmatpush1.bf16.msra.mxu0 0
        %2138 = vmatprep.subr.bf16.mxu0 0
        %2139 = vmatpush1.bf16.msra.mxu0 0
        %2140 = vmatprep.subr.bf16.mxu0 0
        %2141 = vmatpush1.bf16.msra.mxu0 0
        %2142 = vmatprep.subr.bf16.mxu0 0
        %2143 = vmatpush1.bf16.msra.mxu0 0
        %2144 = vmatprep.subr.bf16.mxu0 0
        %2145 = vmatpush1.bf16.msra.mxu0 0
        %2146 = vmatprep.subr.bf16.mxu0 0
        %2147 = vmatpush1.bf16.msra.mxu0 0
        %2148 = vmatprep.subr.bf16.mxu0 0
        %2149 = vmatpush1.bf16.msra.mxu0 0
        %2150 = vmatprep.subr.bf16.mxu0 0
        %2151 = vmatpush1.bf16.msra.mxu0 0
        %2152 = vmatprep.mubr.bf16.mxu0 0
        %2153 = vmatmul.mubr.bf16.gmra.mrb[0].mxu0 %v2115
        %v2154 = vpop.f32.mrb[0].mxu0
        %v2155 = vadd.f32 0.0, %v2154
        %v2156 = vpop.f32.mrb[0].mxu0
        %v2157 = vpop.f32.mrb[0].mxu0
        %v2158 = vpop.f32.mrb[0].mxu0
        %2159 = vdwg.mxu0
        %2160 = vset.pattern.permute.xlu0 1
        %2161 = vperm.xlu0 %2160, %v2104
        %v2162 = vpop.permute.xlu0 %2161
        %v2164 = vmul.f32 %v2075, %v2162
        %v2165 = vpack.c.bf16 %v2164, %v2164
        %2167 = vrot.lane.b32.xlu0 %v2165, 120
        %v2168 = vpop.permute.xlu0 %2167
        %2169 = vrot.lane.b32.xlu0 %v1844, 56
        %v2170 = vpop.permute.xlu0 %2169
        %v2172 = vsel %vm1849, %v2168, 0
        %v2175 = vsel %vm318, %v2170, 0
        %2177 = vmatprep.subr.bf16.mxu0 0
        %2178 = vmatpush1.bf16.msra.mxu0 %v2175
        %2179 = vmatprep.subr.bf16.mxu0 0
        %2180 = vmatpush1.bf16.msra.mxu0 0
        %2181 = vmatprep.subr.bf16.mxu0 0
        %2182 = vmatpush1.bf16.msra.mxu0 0
        %2183 = vmatprep.subr.bf16.mxu0 0
        %2184 = vmatpush1.bf16.msra.mxu0 0
        %2185 = vmatprep.subr.bf16.mxu0 0
        %2186 = vmatpush1.bf16.msra.mxu0 0
        %2187 = vmatprep.subr.bf16.mxu0 0
        %2188 = vmatpush1.bf16.msra.mxu0 0
        %2189 = vmatprep.subr.bf16.mxu0 0
        %2190 = vmatpush1.bf16.msra.mxu0 0
        %2191 = vmatprep.subr.bf16.mxu0 0
        %2192 = vmatpush1.bf16.msra.mxu0 0
        %2193 = vmatprep.subr.bf16.mxu0 0
        %2194 = vmatpush1.bf16.msra.mxu0 0
        %2195 = vmatprep.subr.bf16.mxu0 0
        %2196 = vmatpush1.bf16.msra.mxu0 0
        %2197 = vmatprep.subr.bf16.mxu0 0
        %2198 = vmatpush1.bf16.msra.mxu0 0
        %2199 = vmatprep.subr.bf16.mxu0 0
        %2200 = vmatpush1.bf16.msra.mxu0 0
        %2201 = vmatprep.subr.bf16.mxu0 0
        %2202 = vmatpush1.bf16.msra.mxu0 0
        %2203 = vmatprep.subr.bf16.mxu0 0
        %2204 = vmatpush1.bf16.msra.mxu0 0
        %2205 = vmatprep.subr.bf16.mxu0 0
        %2206 = vmatpush1.bf16.msra.mxu0 0
        %2207 = vmatprep.subr.bf16.mxu0 0
        %2208 = vmatpush1.bf16.msra.mxu0 0
        %2209 = vmatprep.mubr.bf16.mxu0 0
        %2210 = vmatmul.mubr.bf16.gmra.mrb[0].mxu0 %v2172
        %v2211 = vpop.f32.mrb[0].mxu0
        %v2212 = vadd.f32 0.0, %v2211
        %v2213 = vpop.f32.mrb[0].mxu0
        %v2214 = vpop.f32.mrb[0].mxu0
        %v2215 = vpop.f32.mrb[0].mxu0
        %2216 = vdwg.mxu0
        %2217 = vset.pattern.permute.xlu0 2
        %2218 = vperm.xlu0 %2217, %v2104
        %v2219 = vpop.permute.xlu0 %2218
        %v2221 = vmul.f32 %v2075, %v2219
        %v2222 = vpack.c.bf16 %v2221, %v2221
        %2224 = vrot.lane.b32.xlu0 %v2222, 112
        %v2225 = vpop.permute.xlu0 %2224
        %2226 = vrot.lane.b32.xlu0 %v1844, 48
        %v2227 = vpop.permute.xlu0 %2226
        %v2229 = vsel %vm1849, %v2225, 0
        %v2232 = vsel %vm318, %v2227, 0
        %2234 = vmatprep.subr.bf16.mxu0 0
        %2235 = vmatpush1.bf16.msra.mxu0 %v2232
        %2236 = vmatprep.subr.bf16.mxu0 0
        %2237 = vmatpush1.bf16.msra.mxu0 0
        %2238 = vmatprep.subr.bf16.mxu0 0
        %2239 = vmatpush1.bf16.msra.mxu0 0
        %2240 = vmatprep.subr.bf16.mxu0 0
        %2241 = vmatpush1.bf16.msra.mxu0 0
        %2242 = vmatprep.subr.bf16.mxu0 0
        %2243 = vmatpush1.bf16.msra.mxu0 0
        %2244 = vmatprep.subr.bf16.mxu0 0
        %2245 = vmatpush1.bf16.msra.mxu0 0
        %2246 = vmatprep.subr.bf16.mxu0 0
        %2247 = vmatpush1.bf16.msra.mxu0 0
        %2248 = vmatprep.subr.bf16.mxu0 0
        %2249 = vmatpush1.bf16.msra.mxu0 0
        %2250 = vmatprep.subr.bf16.mxu0 0
        %2251 = vmatpush1.bf16.msra.mxu0 0
        %2252 = vmatprep.subr.bf16.mxu0 0
        %2253 = vmatpush1.bf16.msra.mxu0 0
        %2254 = vmatprep.subr.bf16.mxu0 0
        %2255 = vmatpush1.bf16.msra.mxu0 0
        %2256 = vmatprep.subr.bf16.mxu0 0
        %2257 = vmatpush1.bf16.msra.mxu0 0
        %2258 = vmatprep.subr.bf16.mxu0 0
        %2259 = vmatpush1.bf16.msra.mxu0 0
        %2260 = vmatprep.subr.bf16.mxu0 0
        %2261 = vmatpush1.bf16.msra.mxu0 0
        %2262 = vmatprep.subr.bf16.mxu0 0
        %2263 = vmatpush1.bf16.msra.mxu0 0
        %2264 = vmatprep.subr.bf16.mxu0 0
        %2265 = vmatpush1.bf16.msra.mxu0 0
        %2266 = vmatprep.mubr.bf16.mxu0 0
        %2267 = vmatmul.mubr.bf16.gmra.mrb[0].mxu0 %v2229
        %v2268 = vpop.f32.mrb[0].mxu0
        %v2269 = vadd.f32 0.0, %v2268
        %v2270 = vpop.f32.mrb[0].mxu0
        %v2271 = vpop.f32.mrb[0].mxu0
        %v2272 = vpop.f32.mrb[0].mxu0
        %2273 = vdwg.mxu0
        %2274 = vset.pattern.permute.xlu0 3
        %2275 = vperm.xlu0 %2274, %v2104
        %v2276 = vpop.permute.xlu0 %2275
        %v2278 = vmul.f32 %v2075, %v2276
        %v2279 = vpack.c.bf16 %v2278, %v2278
        %2281 = vrot.lane.b32.xlu0 %v2279, 104
        %v2282 = vpop.permute.xlu0 %2281
        %2283 = vrot.lane.b32.xlu0 %v1844, 40
        %v2284 = vpop.permute.xlu0 %2283
        %v2286 = vsel %vm1849, %v2282, 0
        %v2289 = vsel %vm318, %v2284, 0
        %2291 = vmatprep.subr.bf16.mxu0 0
        %2292 = vmatpush1.bf16.msra.mxu0 %v2289
        %2293 = vmatprep.subr.bf16.mxu0 0
        %2294 = vmatpush1.bf16.msra.mxu0 0
        %2295 = vmatprep.subr.bf16.mxu0 0
        %2296 = vmatpush1.bf16.msra.mxu0 0
        %2297 = vmatprep.subr.bf16.mxu0 0
        %2298 = vmatpush1.bf16.msra.mxu0 0
        %2299 = vmatprep.subr.bf16.mxu0 0
        %2300 = vmatpush1.bf16.msra.mxu0 0
        %2301 = vmatprep.subr.bf16.mxu0 0
        %2302 = vmatpush1.bf16.msra.mxu0 0
        %2303 = vmatprep.subr.bf16.mxu0 0
        %2304 = vmatpush1.bf16.msra.mxu0 0
        %2305 = vmatprep.subr.bf16.mxu0 0
        %2306 = vmatpush1.bf16.msra.mxu0 0
        %2307 = vmatprep.subr.bf16.mxu0 0
        %2308 = vmatpush1.bf16.msra.mxu0 0
        %2309 = vmatprep.subr.bf16.mxu0 0
        %2310 = vmatpush1.bf16.msra.mxu0 0
        %2311 = vmatprep.subr.bf16.mxu0 0
        %2312 = vmatpush1.bf16.msra.mxu0 0
        %2313 = vmatprep.subr.bf16.mxu0 0
        %2314 = vmatpush1.bf16.msra.mxu0 0
        %2315 = vmatprep.subr.bf16.mxu0 0
        %2316 = vmatpush1.bf16.msra.mxu0 0
        %2317 = vmatprep.subr.bf16.mxu0 0
        %2318 = vmatpush1.bf16.msra.mxu0 0
        %2319 = vmatprep.subr.bf16.mxu0 0
        %2320 = vmatpush1.bf16.msra.mxu0 0
        %2321 = vmatprep.subr.bf16.mxu0 0
        %2322 = vmatpush1.bf16.msra.mxu0 0
        %2323 = vmatprep.mubr.bf16.mxu0 0
        %2324 = vmatmul.mubr.bf16.gmra.mrb[0].mxu0 %v2286
        %v2325 = vpop.f32.mrb[0].mxu0
        %v2326 = vadd.f32 0.0, %v2325
        %v2327 = vpop.f32.mrb[0].mxu0
        %v2328 = vpop.f32.mrb[0].mxu0
        %v2329 = vpop.f32.mrb[0].mxu0
        %2330 = vdwg.mxu0
        %2332 = vrot.lane.b32.xlu0 %v2212, 8
        %v2333 = vpop.permute.xlu0 %2332
        %2336 = vrot.lane.b32.xlu0 %v2269, 16
        %v2337 = vpop.permute.xlu0 %2336
        %2340 = vrot.lane.b32.xlu0 %v2326, 24
        %v2341 = vpop.permute.xlu0 %2340
        %v2343 = vsel %vm1849, %v2155, %v2333
        %v2344 = vsel %vm1021, %v2343, %v2337
        %v2345 = vsel %vm2060, %v2344, %v2341
        %v2346 = vpack.c.bf16 %v2345, %v2345
        %v2347 = vlaneseq
        %v2348 = vshrl.u32 %v2347, 7
        %v2349 = vsub.s32 7, %v2348
        %v2350 = vrot.slane %v289, %v2349
        %2351 = vrot.lane.b32.xlu0 %v1797, 32
        %v2352 = vpop.permute.xlu0 %2351
        %2353 = vrot.lane.b32.xlu0 %v1798, 32
        %v2354 = vpop.permute.xlu0 %2353
        %v2358 = vsel %vm924, %v2346, 0
        %2360 = vmatprep.subr.bf16.mxu0 0
        %2361 = vmatpush1.bf16.msra.mxu0 %v2352
        %2362 = vmatprep.subr.bf16.mxu0 0
        %2363 = vmatpush1.bf16.msra.mxu0 %v2354
        %2364 = vmatprep.subr.bf16.mxu0 0
        %2365 = vmatpush1.bf16.msra.mxu0 0
        %2366 = vmatprep.subr.bf16.mxu0 0
        %2367 = vmatpush1.bf16.msra.mxu0 0
        %2368 = vmatprep.subr.bf16.mxu0 0
        %2369 = vmatpush1.bf16.msra.mxu0 0
        %2370 = vmatprep.subr.bf16.mxu0 0
        %2371 = vmatpush1.bf16.msra.mxu0 0
        %2372 = vmatprep.subr.bf16.mxu0 0
        %2373 = vmatpush1.bf16.msra.mxu0 0
        %2374 = vmatprep.subr.bf16.mxu0 0
        %2375 = vmatpush1.bf16.msra.mxu0 0
        %2376 = vmatprep.subr.bf16.mxu0 0
        %2377 = vmatpush1.bf16.msra.mxu0 0
        %2378 = vmatprep.subr.bf16.mxu0 0
        %2379 = vmatpush1.bf16.msra.mxu0 0
        %2380 = vmatprep.subr.bf16.mxu0 0
        %2381 = vmatpush1.bf16.msra.mxu0 0
        %2382 = vmatprep.subr.bf16.mxu0 0
        %2383 = vmatpush1.bf16.msra.mxu0 0
        %2384 = vmatprep.subr.bf16.mxu0 0
        %2385 = vmatpush1.bf16.msra.mxu0 0
        %2386 = vmatprep.subr.bf16.mxu0 0
        %2387 = vmatpush1.bf16.msra.mxu0 0
        %2388 = vmatprep.subr.bf16.mxu0 0
        %2389 = vmatpush1.bf16.msra.mxu0 0
        %2390 = vmatprep.subr.bf16.mxu0 0
        %2391 = vmatpush1.bf16.msra.mxu0 0
        %2392 = vmatprep.mubr.bf16.mxu0 0
        %2393 = vmatmul.mubr.bf16.gmra.mrb[0].mxu0 %v2358
        %v2394 = vpop.f32.mrb[0].mxu0
        %v2395 = vadd.f32 %v2350, %v2394
        %v2396 = vpop.f32.mrb[0].mxu0
        %v2397 = vpop.f32.mrb[0].mxu0
        %v2398 = vpop.f32.mrb[0].mxu0
        %2399 = vdwg.mxu0
        %v2400 = vadd.f32 %v1779, %v2395
        %v2401 = vsel %vm924, %v2400, 0.0
        %2402 = vadd.xlane.f32.xlu0 %v2401
        %v2403 = vpop.xlane.xlu0 %2402
        %v2404 = vmul.f32 %v2403, %v928
        %v2405 = vsub.f32 %v2400, %v2404
        %v2406 = vmul.f32 %v2405, %v2405
        %v2407 = vsel %vm924, %v2406, 0.0
        %2408 = vadd.xlane.f32.xlu0 %v2407
        %v2409 = vpop.xlane.xlu0 %2408
        %v2410 = vmul.f32 %v2409, %v928
        %v2411 = vadd.f32 %v2410, 1e-05
        %v2412 = vrsqrt.pop %v2411
        %v2413 = vmul.f32 %v2405, %v2412
        %v2414 = vlaneseq
        %v2415 = vshrl.u32 %v2414, 7
        %v2416 = vsub.s32 4, %v2415
        %v2417 = vrot.slane %v289, %v2416
        %v2418 = vmul.f32 %v2413, %v2417
        %v2419 = vlaneseq
        %v2420 = vshrl.u32 %v2419, 7
        %v2421 = vsub.s32 5, %v2420
        %v2422 = vrot.slane %v289, %v2421
        %v2423 = vadd.f32 %v2418, %v2422
        %v2424 = vpack.c.bf16 %v2423, %v2423
        %v2425 = vlaneseq
        %v2426 = vshrl.u32 %v2425, 7
        %v2427 = vsub.s32 0, %v2426
        %v2428 = vrot.slane %v290, %v2427
        %v2429 = vunpack.c.h.b16 %v1781
        %v2430 = vunpack.c.h.b16 %v1782
        %v2431 = vunpack.c.h.b16 %v1783
        %v2432 = vunpack.c.h.b16 %v1784
        %v2433 = vpack.c.b16 %v2430, %v2429
        %v2434 = vpack.c.b16 %v2432, %v2431
        %v2438 = vsel %vm924, %v2424, 0
        %2440 = vmatprep.subr.bf16.mxu0 0
        %2441 = vmatpush1.bf16.msra.mxu0 %v2433
        %2442 = vmatprep.subr.bf16.mxu0 0
        %2443 = vmatpush1.bf16.msra.mxu0 %v2434
        %2444 = vmatprep.subr.bf16.mxu0 0
        %2445 = vmatpush1.bf16.msra.mxu0 0
        %2446 = vmatprep.subr.bf16.mxu0 0
        %2447 = vmatpush1.bf16.msra.mxu0 0
        %2448 = vmatprep.subr.bf16.mxu0 0
        %2449 = vmatpush1.bf16.msra.mxu0 0
        %2450 = vmatprep.subr.bf16.mxu0 0
        %2451 = vmatpush1.bf16.msra.mxu0 0
        %2452 = vmatprep.subr.bf16.mxu0 0
        %2453 = vmatpush1.bf16.msra.mxu0 0
        %2454 = vmatprep.subr.bf16.mxu0 0
        %2455 = vmatpush1.bf16.msra.mxu0 0
        %2456 = vmatprep.subr.bf16.mxu0 0
        %2457 = vmatpush1.bf16.msra.mxu0 0
        %2458 = vmatprep.subr.bf16.mxu0 0
        %2459 = vmatpush1.bf16.msra.mxu0 0
        %2460 = vmatprep.subr.bf16.mxu0 0
        %2461 = vmatpush1.bf16.msra.mxu0 0
        %2462 = vmatprep.subr.bf16.mxu0 0
        %2463 = vmatpush1.bf16.msra.mxu0 0
        %2464 = vmatprep.subr.bf16.mxu0 0
        %2465 = vmatpush1.bf16.msra.mxu0 0
        %2466 = vmatprep.subr.bf16.mxu0 0
        %2467 = vmatpush1.bf16.msra.mxu0 0
        %2468 = vmatprep.subr.bf16.mxu0 0
        %2469 = vmatpush1.bf16.msra.mxu0 0
        %2470 = vmatprep.subr.bf16.mxu0 0
        %2471 = vmatpush1.bf16.msra.mxu0 0
        %2472 = vmatprep.mubr.bf16.mxu0 0
        %2473 = vmatmul.mubr.bf16.gmra.mrb[0].mxu0 %v2438
        %v2474 = vpop.f32.mrb[0].mxu0
        %v2475 = vadd.f32 %v2428, %v2474
        %v2476 = vpop.f32.mrb[0].mxu0
        %v2477 = vpop.f32.mrb[0].mxu0
        %v2478 = vpop.f32.mrb[0].mxu0
        %2479 = vdwg.mxu0
        %2480 = vst [vmem:[%s280] sm:$0xff] %v2475
        %s2481 = sand.u32 %s186, 1
        %s2482 = scalar_lea.sflag [#allocation3], %s2481
        %s2483 = sand.u32 %s186, 1
        %s2484 = smul.addr %s2483, 8
        %s2485 = scalar_lea.vmem [#allocation2], %s2484
        // Predicated region
        $region49: #{punctuation_forward.1} parent=47 // pred_check
          %p2486 = pneg %p196
        $region50: #{punctuation_forward.1} parent=47 // pred_check_branch
          %2488 = sbr.rel (%p2486) target = $region52
        $region51: #{punctuation_forward.1} parent=47 // pred_region
          %s2490 = ssub.s32 128, 128
          %2491 = vsyncadd %s2482, %s2490
          %s2492 = smul.addr %s21, 128
          %s2493 = scalar_lea.hbm %s7, %s2492
          %s2495 = sshll.u32 %s2485, 4
          %s2496 = int_to_ptr.vmem [resolvable:$true] %s2495
          %2498 = dma.vmem_to_hbm [thread:$0]  %s2496, 128, %s2493, %s2482
        $region52: #{punctuation_forward.1} parent=47 // pred_fallthru
          _
      $region48: #{punctuation_forward.1} parent=5 // pred_fallthru
        _
      %p2499 = scmp.le.s32.totalorder 2, %s16
      // Predicated region
      $region53: #{punctuation_forward.1} parent=5 // pred_check
        %p2500 = pneg %p2499
      $region54: #{punctuation_forward.1} parent=5 // pred_check_branch
        %2502 = sbr.rel (%p2500) target = $region56
      $region55: #{punctuation_forward.1} parent=5 // pred_region
        %s2503 = ssub.s32 %s16, 2
        // Predicated region
        $region57: #{punctuation_forward.1} parent=55 // pred_check
          %p2504 = pneg %p202
        $region58: #{punctuation_forward.1} parent=55 // pred_check_branch
          %2506 = sbr.rel (%p2504) target = $region60
        $region59: #{punctuation_forward.1} parent=55 // pred_region
          %s2507 = sand.u32 %s187, 1
          %s2508 = scalar_lea.sflag [#allocation3], %s2507
          %s2509 = sand.u32 %s187, 1
          %s2510 = smul.addr %s2509, 8
          %s2511 = scalar_lea.vmem [#allocation2], %s2510
          %2512 = dma.done %s2508, 128
        $region60: #{punctuation_forward.1} parent=55 // pred_fallthru
          _
      $region56: #{punctuation_forward.1} parent=5 // pred_fallthru
        _
    $region6: #{punctuation_forward.1} parent=1 // loop_footer
      %s20 = sadd.s32 1, %s16
    $region7: #{punctuation_forward.1} parent=1 // loop_footer_branch
      %15 = sbr.rel target = $region3
    $region8: #{punctuation_forward.1} parent=1 // loop_exit
      _
    %2513 = vsyncpa [#allocation3], 1
    %s2514 = scalar_lea.sflag [#allocation3], 1
    %2515 = vsyncpa %s2514, 1

</llo_original>
